<compile_context>
chip_gen: v5e
topology: v5e:2x2
jax: 0.10.0
libtpu: 0.0.40
codegen_flags: <defaults>
</compile_context>

<pallas_src>
import functools

import jax
import jax.numpy as jnp
import numpy as np
from jax import lax
from jax.experimental import pallas as pl

# ---- small deterministic config (attention=True, both regularizers on) ----
NUM_NOTES = 3          # num_of_notes
NUM_WORDS = 8          # num_of_words
BATCH = 2              # batch_size
WORDS_DIM = 16         # words_dim
VOCAB = 50             # vocab_size
H_NOTE = 8             # bigru_max_note_hidden
H_SUB = 8              # bigru_max_sub_hidden
N_CLASSES = 5          # target_class
TIME_CLASSES = 3       # len(split_points) + 1

PACKED_WIDTH = 128     # lane-dense packed output / slab width


# ----------------------------------------------------------------------------
# direction-fused GRU cell (PyTorch gate order r, z, n), input proj hoisted
# ----------------------------------------------------------------------------
def _gru_cell(gi, h, whh, bhh, H):
    """One fused GRU step on h=[h_f|h_b]; gi = x @ W_ih + b_ih was hoisted."""
    gh = jnp.dot(h, whh, preferred_element_type=jnp.float32) + bhh
    r = jax.nn.sigmoid(gi[:, :H] + gh[:, :H])
    z = jax.nn.sigmoid(gi[:, H:2 * H] + gh[:, H:2 * H])
    n = jnp.tanh(gi[:, 2 * H:] + r * gh[:, 2 * H:])
    return (1.0 - z) * n + z * h


# ----------------------------------------------------------------------------
# fused kernel: embedding + note BiGRU + word attn/maxpool + subject BiGRU +
#               note attn/maxpool + final / per-note / per-time linears
# ----------------------------------------------------------------------------
def fused_hbgm_kernel(slab_ref, out_ref, *, layout, N, T, B, Hn, Hs,
                      n_cls, t_cls, out_w):
    f32 = jnp.float32
    NTB = N * T * B

    def rd(name):                                   # static slab view (8-aligned rows)
        r0, nr, nc = layout[name]
        return slab_ref[r0:r0 + nr, 0:nc]

    # ---- embedding lookup: wrapper-built one-hot @ table on the MXU ----
    emb_all = jnp.dot(rd('onehot'), rd('embed'),
                      preferred_element_type=f32)    # (2*NTB, D)
    emb_f = emb_all[:NTB, :]                         # natural word order
    emb_b = emb_all[NTB:, :]                         # word-reversed within each note

    # ---- note level: hoisted fused-direction input projections ----
    gi_note = (jnp.dot(emb_f, rd('note_wih_f'), preferred_element_type=f32)
               + jnp.dot(emb_b, rd('note_wih_b'), preferred_element_type=f32)
               + rd('note_bih'))                     # (N*T*B, 6*Hn)
    note_whh = rd('note_whh')
    note_bhh = rd('note_bhh')
    w_word = rd('w_word'); b_word = rd('b_word'); p_word = rd('p_word')

    Hn2 = 2 * Hn
    h = rd('h_note0')                                # (B, 2*Hn) = [h_f | h_b]
    s_feats = []
    for i in range(N):
        hs = [None] * T
        for s in range(T):
            gi = gi_note[(i * T + s) * B:(i * T + s + 1) * B, :]   # (B, 6*Hn)
            h = _gru_cell(gi, h, note_whh, note_bhh, Hn2)
            hs[s] = h                                # fwd part = word s, bwd part = word T-1-s
        # per-word bidirectional outputs
        x_ts = [jnp.concatenate([hs[t][:, :Hn], hs[T - 1 - t][:, Hn:]], axis=-1)
                for t in range(T)]
        X = jnp.concatenate(x_ts, axis=0)            # (T*B, 2*Hn)

        # word attention (batched over words): tanh(X W + b) . proj
        sq = jnp.tanh(jnp.dot(X, w_word, preferred_element_type=f32) + b_word)
        sc = jnp.sum(sq * p_word, axis=-1, keepdims=True)          # (T*B, 1)
        att = jnp.concatenate([sc[t * B:(t + 1) * B, :] for t in range(T)],
                              axis=1)                # (B, T)
        att = att - jnp.max(att, axis=-1, keepdims=True)
        e = jnp.exp(att)
        att = e * pl.reciprocal(jnp.sum(e, axis=-1, keepdims=True), approx=True)

        attn_vec = x_ts[0] * att[:, 0:1]
        mp = x_ts[0]
        for t in range(1, T):
            attn_vec = attn_vec + x_ts[t] * att[:, t:t + 1]
            mp = jnp.maximum(mp, x_ts[t])
        # TODO(synk): F.max_pool1d return_indices (test_model-only path) not emitted.
        s_feats.append(jnp.concatenate([mp, attn_vec], axis=-1))   # (B, 4*Hn)

    # ---- subject level: hoisted fused-direction input projections ----
    S_f = jnp.concatenate(s_feats, axis=0)           # (N*B, 4*Hn), natural note order
    S_b = jnp.concatenate(s_feats[::-1], axis=0)     # note order reversed
    gi_sub = (jnp.dot(S_f, rd('sub_wih_f'), preferred_element_type=f32)
              + jnp.dot(S_b, rd('sub_wih_b'), preferred_element_type=f32)
              + rd('sub_bih'))                       # (N*B, 6*Hs)
    sub_whh = rd('sub_whh')
    sub_bhh = rd('sub_bhh')

    Hs2 = 2 * Hs
    g = rd('h_sub0')                                 # (B, 2*Hs)
    gs = [None] * N
    for s in range(N):
        gi = gi_sub[s * B:(s + 1) * B, :]
        g = _gru_cell(gi, g, sub_whh, sub_bhh, Hs2)
        gs[s] = g
    out_notes = [jnp.concatenate([gs[i][:, :Hs], gs[N - 1 - i][:, Hs:]], axis=-1)
                 for i in range(N)]
    O = jnp.concatenate(out_notes, axis=0)           # (N*B, 2*Hs)

    # ---- note attention + max pool over notes (batched squish matmul) ----
    sqn = jnp.tanh(jnp.dot(O, rd('w_note'), preferred_element_type=f32) + rd('b_note'))
    nsc = jnp.sum(sqn * rd('p_note'), axis=-1, keepdims=True)      # (N*B, 1)
    natt = jnp.concatenate([nsc[i * B:(i + 1) * B, :] for i in range(N)], axis=1)
    natt = natt - jnp.max(natt, axis=-1, keepdims=True)
    e = jnp.exp(natt)
    natt = e * pl.reciprocal(jnp.sum(e, axis=-1, keepdims=True), approx=True)

    nattn_vec = out_notes[0] * natt[:, 0:1]
    nmp = out_notes[0]
    for i in range(1, N):
        nattn_vec = nattn_vec + out_notes[i] * natt[:, i:i + 1]
        nmp = jnp.maximum(nmp, out_notes[i])
    note_emb = jnp.concatenate([nmp, nattn_vec], axis=-1)          # (B, 4*Hs)

    final = (jnp.dot(note_emb, rd('final_w'), preferred_element_type=f32)
             + rd('final_b'))                                      # (B, n_cls)

    # ---- per-note regularizer heads: lin_out | lin_time fused, batched ----
    heads = (jnp.dot(O, rd('w_heads'), preferred_element_type=f32)
             + rd('b_heads'))                                      # (N*B, n_cls+t_cls)

    pieces = [final] + [heads[i * B:(i + 1) * B, :] for i in range(N)]
    packed = jnp.concatenate(pieces, axis=-1)                      # (B, used)
    pad = jnp.zeros((B, out_w - packed.shape[-1]), f32)
    out_ref[...] = jnp.concatenate([packed, pad], axis=-1)         # lane-dense (B, 128)


# ----------------------------------------------------------------------------
# wrapper-side packing helpers
# ----------------------------------------------------------------------------
def _pad8(n):
    return ((n + 7) // 8) * 8


def _pack_slab(entries):
    """Pack 2D arrays (cols <= 128) into one (R,128) slab; 8-aligned row starts."""
    layout = {}
    parts = []
    row = 0
    for name, arr in entries:
        arr = jnp.asarray(arr, jnp.float32)
        nr, nc = arr.shape
        layout[name] = (row, nr, nc)
        nr_p = _pad8(nr)
        block = jnp.zeros((nr_p, PACKED_WIDTH), jnp.float32).at[:nr, :nc].set(arr)
        parts.append(block)
        row += nr_p
    return jnp.concatenate(parts, axis=0), layout


def _fuse_bigru_params(wih_f, whh_f, bih_f, bhh_f, wih_b, whh_b, bih_b, bhh_b, H):
    """Direction-fused GRU params; gate-column layout [r_f,r_b,z_f,z_b,n_f,n_b]."""
    def place(w, fwd):
        out = jnp.zeros((w.shape[0], 6 * H), jnp.float32)
        off = 0 if fwd else H
        for gate in range(3):
            out = out.at[:, 2 * gate * H + off:2 * gate * H + off + H].set(
                w[:, gate * H:(gate + 1) * H])
        return out
    wih_fp = place(wih_f, True)                       # (D, 6H), zeros in bwd columns
    wih_bp = place(wih_b, False)                      # (D, 6H), zeros in fwd columns
    whh = jnp.concatenate([place(whh_f, True), place(whh_b, False)], axis=0)  # (2H,6H)
    bih = place(bih_f, True) + place(bih_b, False)    # (1, 6H)
    bhh = place(bhh_f, True) + place(bhh_b, False)    # (1, 6H)
    return wih_fp, wih_bp, whh, bih, bhh


# ----------------------------------------------------------------------------
# wrapper
# ----------------------------------------------------------------------------
@jax.jit
def hierarchical_bigru_max_forward(tokens, h_note0, h_sub0, p):
    """Returns (final_logits, [per-note logits], time_feature)."""
    N, T, B = tokens.shape
    NTB = N * T * B

    # tokens in natural order followed by word-reversed order (backward dir)
    tok_all = jnp.concatenate([tokens, tokens[:, ::-1, :]], axis=0).reshape(2 * NTB)
    onehot = (tok_all[:, None]
              == jnp.arange(VOCAB, dtype=tokens.dtype)[None, :]).astype(jnp.float32)

    nwf, nwb, nwhh, nbih, nbhh = _fuse_bigru_params(
        p['note_wih_f'], p['note_whh_f'], p['note_bih_f'], p['note_bhh_f'],
        p['note_wih_b'], p['note_whh_b'], p['note_bih_b'], p['note_bhh_b'], H_NOTE)
    swf, swb, swhh, sbih, sbhh = _fuse_bigru_params(
        p['sub_wih_f'], p['sub_whh_f'], p['sub_bih_f'], p['sub_bhh_f'],
        p['sub_wih_b'], p['sub_whh_b'], p['sub_bih_b'], p['sub_bhh_b'], H_SUB)

    entries = [
        ('onehot', onehot),
        ('embed', p['embed']),
        ('note_wih_f', nwf), ('note_wih_b', nwb), ('note_whh', nwhh),
        ('note_bih', nbih), ('note_bhh', nbhh),
        ('w_word', p['w_word']), ('b_word', p['b_word']), ('p_word', p['p_word'].T),
        ('sub_wih_f', swf), ('sub_wih_b', swb), ('sub_whh', swhh),
        ('sub_bih', sbih), ('sub_bhh', sbhh),
        ('w_note', p['w_note']), ('b_note', p['b_note']), ('p_note', p['p_note'].T),
        ('w_heads', jnp.concatenate([p['lin_out_w'], p['lin_time_w']], axis=1)),
        ('b_heads', jnp.concatenate([p['lin_out_b'], p['lin_time_b']], axis=1)),
        ('final_w', p['final_w']), ('final_b', p['final_b']),
        ('h_note0', jnp.concatenate([h_note0[0], h_note0[1]], axis=1)),
        ('h_sub0', jnp.concatenate([h_sub0[0], h_sub0[1]], axis=1)),
    ]
    slab, layout = _pack_slab(entries)

    kern = functools.partial(
        fused_hbgm_kernel, layout=layout, N=N, T=T, B=B, Hn=H_NOTE, Hs=H_SUB,
        n_cls=N_CLASSES, t_cls=TIME_CLASSES, out_w=PACKED_WIDTH)

    packed = pl.pallas_call(
        kern,
        out_shape=jax.ShapeDtypeStruct((B, PACKED_WIDTH), jnp.float32),
        cost_estimate=pl.CostEstimate(flops=400_000, transcendentals=4_000,
                                      bytes_accessed=250_000),
    )(slab)

    # unpack the lane-dense slab (pure-JAX glue; free slices/reshapes)
    final = packed[:, :N_CLASSES]
    blk = N_CLASSES + TIME_CLASSES
    predict_by_note, time_cols = [], []
    for i in range(N):
        base = N_CLASSES + i * blk
        predict_by_note.append(packed[:, base:base + N_CLASSES])
        time_cols.append(packed[:, base + N_CLASSES:base + blk])
    # "reorga": per batch element, its per-note time logits stacked -> (B*N, t_cls)
    time_feature = jnp.stack(time_cols, axis=1).reshape(B * N, TIME_CLASSES)
    return final, predict_by_note, time_feature


# ----------------------------------------------------------------------------
# pure-JAX reference (full f32 precision) for the correctness check
# ----------------------------------------------------------------------------
def _mm(a, b):
    return jnp.matmul(a, b, precision=jax.lax.Precision.HIGHEST)


def _gru_step_ref(x_t, h, wih, whh, bih, bhh, H):
    gi = _mm(x_t, wih) + bih
    gh = _mm(h, whh) + bhh
    r = jax.nn.sigmoid(gi[:, :H] + gh[:, :H])
    z = jax.nn.sigmoid(gi[:, H:2 * H] + gh[:, H:2 * H])
    n = jnp.tanh(gi[:, 2 * H:] + r * gh[:, 2 * H:])
    return (1.0 - z) * n + z * h


def _bigru_ref(x_seq, h0, wf, hf, bif, bhf, wb, hb, bib, bhb, H):
    T = x_seq.shape[0]
    outs_f, outs_b = [], [None] * T
    h = h0[0]
    for t in range(T):
        h = _gru_step_ref(x_seq[t], h, wf, hf, bif, bhf, H)
        outs_f.append(h)
    hf_final = h
    h = h0[1]
    for t in range(T - 1, -1, -1):
        h = _gru_step_ref(x_seq[t], h, wb, hb, bib, bhb, H)
        outs_b[t] = h
    hb_final = h
    out = jnp.concatenate([jnp.stack(outs_f), jnp.stack(outs_b)], axis=-1)
    return out, jnp.stack([hf_final, hb_final])


def reference_forward(tokens, h_note0, h_sub0, p):
    N, T, B = tokens.shape
    emb = p['embed'][tokens].astype(jnp.float32)
    h_note = h_note0
    s_list = []
    for i in range(N):
        x, h_note = _bigru_ref(emb[i], h_note,
                               p['note_wih_f'], p['note_whh_f'], p['note_bih_f'], p['note_bhh_f'],
                               p['note_wih_b'], p['note_whh_b'], p['note_bih_b'], p['note_bhh_b'],
                               H_NOTE)
        squish = jnp.tanh(_mm(x, p['w_word']) + p['b_word'])
        attn = jnp.squeeze(_mm(squish, p['p_word']), -1)
        attn_norm = jax.nn.softmax(attn, axis=0)
        attn_vec = jnp.sum(attn_norm[..., None] * x, axis=0)
        mp = jnp.max(x, axis=0)
        s_list.append(jnp.concatenate([mp, attn_vec], axis=-1))
    s = jnp.stack(s_list)
    out_note, _ = _bigru_ref(s, h_sub0,
                             p['sub_wih_f'], p['sub_whh_f'], p['sub_bih_f'], p['sub_bhh_f'],
                             p['sub_wih_b'], p['sub_whh_b'], p['sub_bih_b'], p['sub_bhh_b'],
                             H_SUB)
    squish = jnp.tanh(_mm(out_note, p['w_note']) + p['b_note'])
    attn = jnp.squeeze(_mm(squish, p['p_note']), -1)
    attn_norm = jax.nn.softmax(attn, axis=0)
    attn_vec = jnp.sum(attn_norm[..., None] * out_note, axis=0)
    mp = jnp.max(out_note, axis=0)
    note_emb = jnp.concatenate([mp, attn_vec], axis=-1)
    final = _mm(note_emb, p['final_w']) + p['final_b']
    pred = _mm(out_note, p['lin_out_w']) + p['lin_out_b']
    time = _mm(out_note, p['lin_time_w']) + p['lin_time_b']
    time_feature = jnp.transpose(time, (1, 0, 2)).reshape(B * N, TIME_CLASSES)
    return final, pred, time_feature


# ----------------------------------------------------------------------------
# deterministic synthetic parameters (matrices stored pre-transposed for x @ W)
# ----------------------------------------------------------------------------
def init_params(key):
    shapes = {
        'embed': (VOCAB, WORDS_DIM),
        'note_wih_f': (WORDS_DIM, 3 * H_NOTE), 'note_whh_f': (H_NOTE, 3 * H_NOTE),
        'note_bih_f': (1, 3 * H_NOTE), 'note_bhh_f': (1, 3 * H_NOTE),
        'note_wih_b': (WORDS_DIM, 3 * H_NOTE), 'note_whh_b': (H_NOTE, 3 * H_NOTE),
        'note_bih_b': (1, 3 * H_NOTE), 'note_bhh_b': (1, 3 * H_NOTE),
        'w_word': (2 * H_NOTE, 2 * H_NOTE), 'b_word': (1, 2 * H_NOTE),
        'p_word': (2 * H_NOTE, 1),
        'sub_wih_f': (4 * H_NOTE, 3 * H_SUB), 'sub_whh_f': (H_SUB, 3 * H_SUB),
        'sub_bih_f': (1, 3 * H_SUB), 'sub_bhh_f': (1, 3 * H_SUB),
        'sub_wih_b': (4 * H_NOTE, 3 * H_SUB), 'sub_whh_b': (H_SUB, 3 * H_SUB),
        'sub_bih_b': (1, 3 * H_SUB), 'sub_bhh_b': (1, 3 * H_SUB),
        'w_note': (2 * H_SUB, 2 * H_SUB), 'b_note': (1, 2 * H_SUB),
        'p_note': (2 * H_SUB, 1),
        'lin_out_w': (2 * H_SUB, N_CLASSES), 'lin_out_b': (1, N_CLASSES),
        'lin_time_w': (2 * H_SUB, TIME_CLASSES), 'lin_time_b': (1, TIME_CLASSES),
        'final_w': (4 * H_SUB, N_CLASSES), 'final_b': (1, N_CLASSES),
    }
    keys = jax.random.split(key, len(shapes))
    return {name: jax.random.uniform(k, shp, jnp.float32, -0.1, 0.1)
            for (name, shp), k in zip(shapes.items(), keys)}


if __name__ == "__main__":
    key = jax.random.PRNGKey(0)
    k_tok, k_par = jax.random.split(key)
    params = init_params(k_par)
    tokens = jax.random.randint(k_tok, (NUM_NOTES, NUM_WORDS, BATCH), 0, VOCAB,
                                dtype=jnp.int32)
    # init_hidden(): zeros
    h_note0 = jnp.zeros((2, BATCH, H_NOTE), jnp.float32)
    h_sub0 = jnp.zeros((2, BATCH, H_SUB), jnp.float32)

    final, predict_by_note, time_feature = hierarchical_bigru_max_forward(
        tokens, h_note0, h_sub0, params)
    jax.block_until_ready(final)
    jax.block_until_ready(time_feature)

    # correctness check against a full-precision pure-JAX reference
    final_ref, pred_ref, time_ref = reference_forward(tokens, h_note0, h_sub0, params)
    np.testing.assert_allclose(np.asarray(final), np.asarray(final_ref),
                               rtol=2e-3, atol=2e-3)
    np.testing.assert_allclose(np.asarray(jnp.stack(predict_by_note)),
                               np.asarray(pred_ref), rtol=2e-3, atol=2e-3)
    np.testing.assert_allclose(np.asarray(time_feature), np.asarray(time_ref),
                               rtol=2e-3, atol=2e-3)
    print("KERNEL_OK")
</pallas_src>

<mosaic_0001>
module attributes {stable_mosaic.version = 11 : i64} {
  func.func @fused_hbgm_kernel(%arg0: memref<456x128xf32, #tpu.memory_space<vmem>>, %arg1: memref<2x128xf32, #tpu.memory_space<vmem>>) attributes {dimension_semantics = [], scalar_prefetch = 0 : i64, scratch_operands = 0 : i64, tpu.core_type = #tpu.core_type<tc>} {
    %c0 = arith.constant 0 : index
    %c0_0 = arith.constant 0 : index
    %0 = vector.load %arg0[%c0, %c0_0] : memref<456x128xf32, #tpu.memory_space<vmem>>, vector<96x50xf32>
    %c96 = arith.constant 96 : index
    %c0_1 = arith.constant 0 : index
    %1 = vector.load %arg0[%c96, %c0_1] : memref<456x128xf32, #tpu.memory_space<vmem>>, vector<50x16xf32>
    %cst = arith.constant dense<0.000000e+00> : vector<96x16xf32>
    %2 = tpu.matmul %0, %1, %cst {dimension_numbers = #tpu.dot_dimension_numbers<[1], [0], [0], [1], [0, 0, 1, 1], [], []>} : vector<96x50xf32>, vector<50x16xf32>, vector<96x16xf32> -> vector<96x16xf32>
    %3 = vector.extract_strided_slice %2 {offsets = [0, 0], sizes = [48, 16], strides = [1, 1]} : vector<96x16xf32> to vector<48x16xf32>
    %4 = vector.extract_strided_slice %2 {offsets = [48, 0], sizes = [48, 16], strides = [1, 1]} : vector<96x16xf32> to vector<48x16xf32>
    %c152 = arith.constant 152 : index
    %c0_2 = arith.constant 0 : index
    %5 = vector.load %arg0[%c152, %c0_2] : memref<456x128xf32, #tpu.memory_space<vmem>>, vector<16x48xf32>
    %cst_3 = arith.constant dense<0.000000e+00> : vector<48x48xf32>
    %6 = tpu.matmul %3, %5, %cst_3 {dimension_numbers = #tpu.dot_dimension_numbers<[1], [0], [0], [1], [0, 0, 1, 1], [], []>} : vector<48x16xf32>, vector<16x48xf32>, vector<48x48xf32> -> vector<48x48xf32>
    %c168 = arith.constant 168 : index
    %c0_4 = arith.constant 0 : index
    %7 = vector.load %arg0[%c168, %c0_4] : memref<456x128xf32, #tpu.memory_space<vmem>>, vector<16x48xf32>
    %cst_5 = arith.constant dense<0.000000e+00> : vector<48x48xf32>
    %8 = tpu.matmul %4, %7, %cst_5 {dimension_numbers = #tpu.dot_dimension_numbers<[1], [0], [0], [1], [0, 0, 1, 1], [], []>} : vector<48x16xf32>, vector<16x48xf32>, vector<48x48xf32> -> vector<48x48xf32>
    %9 = arith.addf %6, %8 : vector<48x48xf32>
    %c200 = arith.constant 200 : index
    %c0_6 = arith.constant 0 : index
    %10 = vector.load %arg0[%c200, %c0_6] : memref<456x128xf32, #tpu.memory_space<vmem>>, vector<1x48xf32>
    %11 = vector.broadcast %10 : vector<1x48xf32> to vector<48x48xf32>
    %12 = arith.addf %9, %11 : vector<48x48xf32>
    %c184 = arith.constant 184 : index
    %c0_7 = arith.constant 0 : index
    %13 = vector.load %arg0[%c184, %c0_7] : memref<456x128xf32, #tpu.memory_space<vmem>>, vector<16x48xf32>
    %c208 = arith.constant 208 : index
    %c0_8 = arith.constant 0 : index
    %14 = vector.load %arg0[%c208, %c0_8] : memref<456x128xf32, #tpu.memory_space<vmem>>, vector<1x48xf32>
    %c216 = arith.constant 216 : index
    %c0_9 = arith.constant 0 : index
    %15 = vector.load %arg0[%c216, %c0_9] : memref<456x128xf32, #tpu.memory_space<vmem>>, vector<16x16xf32>
    %c232 = arith.constant 232 : index
    %c0_10 = arith.constant 0 : index
    %16 = vector.load %arg0[%c232, %c0_10] : memref<456x128xf32, #tpu.memory_space<vmem>>, vector<1x16xf32>
    %c240 = arith.constant 240 : index
    %c0_11 = arith.constant 0 : index
    %17 = vector.load %arg0[%c240, %c0_11] : memref<456x128xf32, #tpu.memory_space<vmem>>, vector<1x16xf32>
    %c440 = arith.constant 440 : index
    %c0_12 = arith.constant 0 : index
    %18 = vector.load %arg0[%c440, %c0_12] : memref<456x128xf32, #tpu.memory_space<vmem>>, vector<2x16xf32>
    %19 = vector.extract_strided_slice %12 {offsets = [0, 0], sizes = [2, 48], strides = [1, 1]} : vector<48x48xf32> to vector<2x48xf32>
    %cst_13 = arith.constant dense<0.000000e+00> : vector<2x48xf32>
    %20 = tpu.matmul %18, %13, %cst_13 {dimension_numbers = #tpu.dot_dimension_numbers<[1], [0], [0], [1], [0, 0, 1, 1], [], []>} : vector<2x16xf32>, vector<16x48xf32>, vector<2x48xf32> -> vector<2x48xf32>
    %21 = vector.broadcast %14 : vector<1x48xf32> to vector<2x48xf32>
    %22 = arith.addf %20, %21 : vector<2x48xf32>
    %23 = vector.extract_strided_slice %19 {offsets = [0, 0], sizes = [2, 16], strides = [1, 1]} : vector<2x48xf32> to vector<2x16xf32>
    %24 = vector.extract_strided_slice %22 {offsets = [0, 0], sizes = [2, 16], strides = [1, 1]} : vector<2x48xf32> to vector<2x16xf32>
    %25 = arith.addf %23, %24 : vector<2x16xf32>
    %26 = arith.negf %25 : vector<2x16xf32>
    %27 = math.exp %26 : vector<2x16xf32>
    %cst_14 = arith.constant 1.000000e+00 : f32
    %28 = vector.broadcast %cst_14 : f32 to vector<2x16xf32>
    %29 = arith.addf %28, %27 : vector<2x16xf32>
    %30 = arith.divf %28, %29 : vector<2x16xf32>
    %31 = vector.extract_strided_slice %19 {offsets = [0, 16], sizes = [2, 16], strides = [1, 1]} : vector<2x48xf32> to vector<2x16xf32>
    %32 = vector.extract_strided_slice %22 {offsets = [0, 16], sizes = [2, 16], strides = [1, 1]} : vector<2x48xf32> to vector<2x16xf32>
    %33 = arith.addf %31, %32 : vector<2x16xf32>
    %34 = arith.negf %33 : vector<2x16xf32>
    %35 = math.exp %34 : vector<2x16xf32>
    %cst_15 = arith.constant 1.000000e+00 : f32
    %36 = vector.broadcast %cst_15 : f32 to vector<2x16xf32>
    %37 = arith.addf %36, %35 : vector<2x16xf32>
    %38 = arith.divf %36, %37 : vector<2x16xf32>
    %39 = vector.extract_strided_slice %19 {offsets = [0, 32], sizes = [2, 16], strides = [1, 1]} : vector<2x48xf32> to vector<2x16xf32>
    %40 = vector.extract_strided_slice %22 {offsets = [0, 32], sizes = [2, 16], strides = [1, 1]} : vector<2x48xf32> to vector<2x16xf32>
    %41 = arith.mulf %30, %40 : vector<2x16xf32>
    %42 = arith.addf %39, %41 : vector<2x16xf32>
    %43 = math.tanh %42 : vector<2x16xf32>
    %cst_16 = arith.constant 1.000000e+00 : f32
    %44 = vector.broadcast %cst_16 : f32 to vector<2x16xf32>
    %45 = arith.subf %44, %38 : vector<2x16xf32>
    %46 = arith.mulf %45, %43 : vector<2x16xf32>
    %47 = arith.mulf %38, %18 : vector<2x16xf32>
    %48 = arith.addf %46, %47 : vector<2x16xf32>
    %49 = vector.extract_strided_slice %12 {offsets = [2, 0], sizes = [2, 48], strides = [1, 1]} : vector<48x48xf32> to vector<2x48xf32>
    %cst_17 = arith.constant dense<0.000000e+00> : vector<2x48xf32>
    %50 = tpu.matmul %48, %13, %cst_17 {dimension_numbers = #tpu.dot_dimension_numbers<[1], [0], [0], [1], [0, 0, 1, 1], [], []>} : vector<2x16xf32>, vector<16x48xf32>, vector<2x48xf32> -> vector<2x48xf32>
    %51 = vector.broadcast %14 : vector<1x48xf32> to vector<2x48xf32>
    %52 = arith.addf %50, %51 : vector<2x48xf32>
    %53 = vector.extract_strided_slice %49 {offsets = [0, 0], sizes = [2, 16], strides = [1, 1]} : vector<2x48xf32> to vector<2x16xf32>
    %54 = vector.extract_strided_slice %52 {offsets = [0, 0], sizes = [2, 16], strides = [1, 1]} : vector<2x48xf32> to vector<2x16xf32>
    %55 = arith.addf %53, %54 : vector<2x16xf32>
    %56 = arith.negf %55 : vector<2x16xf32>
    %57 = math.exp %56 : vector<2x16xf32>
    %cst_18 = arith.constant 1.000000e+00 : f32
    %58 = vector.broadcast %cst_18 : f32 to vector<2x16xf32>
    %59 = arith.addf %58, %57 : vector<2x16xf32>
    %60 = arith.divf %58, %59 : vector<2x16xf32>
    %61 = vector.extract_strided_slice %49 {offsets = [0, 16], sizes = [2, 16], strides = [1, 1]} : vector<2x48xf32> to vector<2x16xf32>
    %62 = vector.extract_strided_slice %52 {offsets = [0, 16], sizes = [2, 16], strides = [1, 1]} : vector<2x48xf32> to vector<2x16xf32>
    %63 = arith.addf %61, %62 : vector<2x16xf32>
    %64 = arith.negf %63 : vector<2x16xf32>
    %65 = math.exp %64 : vector<2x16xf32>
    %cst_19 = arith.constant 1.000000e+00 : f32
    %66 = vector.broadcast %cst_19 : f32 to vector<2x16xf32>
    %67 = arith.addf %66, %65 : vector<2x16xf32>
    %68 = arith.divf %66, %67 : vector<2x16xf32>
    %69 = vector.extract_strided_slice %49 {offsets = [0, 32], sizes = [2, 16], strides = [1, 1]} : vector<2x48xf32> to vector<2x16xf32>
    %70 = vector.extract_strided_slice %52 {offsets = [0, 32], sizes = [2, 16], strides = [1, 1]} : vector<2x48xf32> to vector<2x16xf32>
    %71 = arith.mulf %60, %70 : vector<2x16xf32>
    %72 = arith.addf %69, %71 : vector<2x16xf32>
    %73 = math.tanh %72 : vector<2x16xf32>
    %cst_20 = arith.constant 1.000000e+00 : f32
    %74 = vector.broadcast %cst_20 : f32 to vector<2x16xf32>
    %75 = arith.subf %74, %68 : vector<2x16xf32>
    %76 = arith.mulf %75, %73 : vector<2x16xf32>
    %77 = arith.mulf %68, %48 : vector<2x16xf32>
    %78 = arith.addf %76, %77 : vector<2x16xf32>
    %79 = vector.extract_strided_slice %12 {offsets = [4, 0], sizes = [2, 48], strides = [1, 1]} : vector<48x48xf32> to vector<2x48xf32>
    %cst_21 = arith.constant dense<0.000000e+00> : vector<2x48xf32>
    %80 = tpu.matmul %78, %13, %cst_21 {dimension_numbers = #tpu.dot_dimension_numbers<[1], [0], [0], [1], [0, 0, 1, 1], [], []>} : vector<2x16xf32>, vector<16x48xf32>, vector<2x48xf32> -> vector<2x48xf32>
    %81 = vector.broadcast %14 : vector<1x48xf32> to vector<2x48xf32>
    %82 = arith.addf %80, %81 : vector<2x48xf32>
    %83 = vector.extract_strided_slice %79 {offsets = [0, 0], sizes = [2, 16], strides = [1, 1]} : vector<2x48xf32> to vector<2x16xf32>
    %84 = vector.extract_strided_slice %82 {offsets = [0, 0], sizes = [2, 16], strides = [1, 1]} : vector<2x48xf32> to vector<2x16xf32>
    %85 = arith.addf %83, %84 : vector<2x16xf32>
    %86 = arith.negf %85 : vector<2x16xf32>
    %87 = math.exp %86 : vector<2x16xf32>
    %cst_22 = arith.constant 1.000000e+00 : f32
    %88 = vector.broadcast %cst_22 : f32 to vector<2x16xf32>
    %89 = arith.addf %88, %87 : vector<2x16xf32>
    %90 = arith.divf %88, %89 : vector<2x16xf32>
    %91 = vector.extract_strided_slice %79 {offsets = [0, 16], sizes = [2, 16], strides = [1, 1]} : vector<2x48xf32> to vector<2x16xf32>
    %92 = vector.extract_strided_slice %82 {offsets = [0, 16], sizes = [2, 16], strides = [1, 1]} : vector<2x48xf32> to vector<2x16xf32>
    %93 = arith.addf %91, %92 : vector<2x16xf32>
    %94 = arith.negf %93 : vector<2x16xf32>
    %95 = math.exp %94 : vector<2x16xf32>
    %cst_23 = arith.constant 1.000000e+00 : f32
    %96 = vector.broadcast %cst_23 : f32 to vector<2x16xf32>
    %97 = arith.addf %96, %95 : vector<2x16xf32>
    %98 = arith.divf %96, %97 : vector<2x16xf32>
    %99 = vector.extract_strided_slice %79 {offsets = [0, 32], sizes = [2, 16], strides = [1, 1]} : vector<2x48xf32> to vector<2x16xf32>
    %100 = vector.extract_strided_slice %82 {offsets = [0, 32], sizes = [2, 16], strides = [1, 1]} : vector<2x48xf32> to vector<2x16xf32>
    %101 = arith.mulf %90, %100 : vector<2x16xf32>
    %102 = arith.addf %99, %101 : vector<2x16xf32>
    %103 = math.tanh %102 : vector<2x16xf32>
    %cst_24 = arith.constant 1.000000e+00 : f32
    %104 = vector.broadcast %cst_24 : f32 to vector<2x16xf32>
    %105 = arith.subf %104, %98 : vector<2x16xf32>
    %106 = arith.mulf %105, %103 : vector<2x16xf32>
    %107 = arith.mulf %98, %78 : vector<2x16xf32>
    %108 = arith.addf %106, %107 : vector<2x16xf32>
    %109 = vector.extract_strided_slice %12 {offsets = [6, 0], sizes = [2, 48], strides = [1, 1]} : vector<48x48xf32> to vector<2x48xf32>
    %cst_25 = arith.constant dense<0.000000e+00> : vector<2x48xf32>
    %110 = tpu.matmul %108, %13, %cst_25 {dimension_numbers = #tpu.dot_dimension_numbers<[1], [0], [0], [1], [0, 0, 1, 1], [], []>} : vector<2x16xf32>, vector<16x48xf32>, vector<2x48xf32> -> vector<2x48xf32>
    %111 = vector.broadcast %14 : vector<1x48xf32> to vector<2x48xf32>
    %112 = arith.addf %110, %111 : vector<2x48xf32>
    %113 = vector.extract_strided_slice %109 {offsets = [0, 0], sizes = [2, 16], strides = [1, 1]} : vector<2x48xf32> to vector<2x16xf32>
    %114 = vector.extract_strided_slice %112 {offsets = [0, 0], sizes = [2, 16], strides = [1, 1]} : vector<2x48xf32> to vector<2x16xf32>
    %115 = arith.addf %113, %114 : vector<2x16xf32>
    %116 = arith.negf %115 : vector<2x16xf32>
    %117 = math.exp %116 : vector<2x16xf32>
    %cst_26 = arith.constant 1.000000e+00 : f32
    %118 = vector.broadcast %cst_26 : f32 to vector<2x16xf32>
    %119 = arith.addf %118, %117 : vector<2x16xf32>
    %120 = arith.divf %118, %119 : vector<2x16xf32>
    %121 = vector.extract_strided_slice %109 {offsets = [0, 16], sizes = [2, 16], strides = [1, 1]} : vector<2x48xf32> to vector<2x16xf32>
    %122 = vector.extract_strided_slice %112 {offsets = [0, 16], sizes = [2, 16], strides = [1, 1]} : vector<2x48xf32> to vector<2x16xf32>
    %123 = arith.addf %121, %122 : vector<2x16xf32>
    %124 = arith.negf %123 : vector<2x16xf32>
    %125 = math.exp %124 : vector<2x16xf32>
    %cst_27 = arith.constant 1.000000e+00 : f32
    %126 = vector.broadcast %cst_27 : f32 to vector<2x16xf32>
    %127 = arith.addf %126, %125 : vector<2x16xf32>
    %128 = arith.divf %126, %127 : vector<2x16xf32>
    %129 = vector.extract_strided_slice %109 {offsets = [0, 32], sizes = [2, 16], strides = [1, 1]} : vector<2x48xf32> to vector<2x16xf32>
    %130 = vector.extract_strided_slice %112 {offsets = [0, 32], sizes = [2, 16], strides = [1, 1]} : vector<2x48xf32> to vector<2x16xf32>
    %131 = arith.mulf %120, %130 : vector<2x16xf32>
    %132 = arith.addf %129, %131 : vector<2x16xf32>
    %133 = math.tanh %132 : vector<2x16xf32>
    %cst_28 = arith.constant 1.000000e+00 : f32
    %134 = vector.broadcast %cst_28 : f32 to vector<2x16xf32>
    %135 = arith.subf %134, %128 : vector<2x16xf32>
    %136 = arith.mulf %135, %133 : vector<2x16xf32>
    %137 = arith.mulf %128, %108 : vector<2x16xf32>
    %138 = arith.addf %136, %137 : vector<2x16xf32>
    %139 = vector.extract_strided_slice %12 {offsets = [8, 0], sizes = [2, 48], strides = [1, 1]} : vector<48x48xf32> to vector<2x48xf32>
    %cst_29 = arith.constant dense<0.000000e+00> : vector<2x48xf32>
    %140 = tpu.matmul %138, %13, %cst_29 {dimension_numbers = #tpu.dot_dimension_numbers<[1], [0], [0], [1], [0, 0, 1, 1], [], []>} : vector<2x16xf32>, vector<16x48xf32>, vector<2x48xf32> -> vector<2x48xf32>
    %141 = vector.broadcast %14 : vector<1x48xf32> to vector<2x48xf32>
    %142 = arith.addf %140, %141 : vector<2x48xf32>
    %143 = vector.extract_strided_slice %139 {offsets = [0, 0], sizes = [2, 16], strides = [1, 1]} : vector<2x48xf32> to vector<2x16xf32>
    %144 = vector.extract_strided_slice %142 {offsets = [0, 0], sizes = [2, 16], strides = [1, 1]} : vector<2x48xf32> to vector<2x16xf32>
    %145 = arith.addf %143, %144 : vector<2x16xf32>
    %146 = arith.negf %145 : vector<2x16xf32>
    %147 = math.exp %146 : vector<2x16xf32>
    %cst_30 = arith.constant 1.000000e+00 : f32
    %148 = vector.broadcast %cst_30 : f32 to vector<2x16xf32>
    %149 = arith.addf %148, %147 : vector<2x16xf32>
    %150 = arith.divf %148, %149 : vector<2x16xf32>
    %151 = vector.extract_strided_slice %139 {offsets = [0, 16], sizes = [2, 16], strides = [1, 1]} : vector<2x48xf32> to vector<2x16xf32>
    %152 = vector.extract_strided_slice %142 {offsets = [0, 16], sizes = [2, 16], strides = [1, 1]} : vector<2x48xf32> to vector<2x16xf32>
    %153 = arith.addf %151, %152 : vector<2x16xf32>
    %154 = arith.negf %153 : vector<2x16xf32>
    %155 = math.exp %154 : vector<2x16xf32>
    %cst_31 = arith.constant 1.000000e+00 : f32
    %156 = vector.broadcast %cst_31 : f32 to vector<2x16xf32>
    %157 = arith.addf %156, %155 : vector<2x16xf32>
    %158 = arith.divf %156, %157 : vector<2x16xf32>
    %159 = vector.extract_strided_slice %139 {offsets = [0, 32], sizes = [2, 16], strides = [1, 1]} : vector<2x48xf32> to vector<2x16xf32>
    %160 = vector.extract_strided_slice %142 {offsets = [0, 32], sizes = [2, 16], strides = [1, 1]} : vector<2x48xf32> to vector<2x16xf32>
    %161 = arith.mulf %150, %160 : vector<2x16xf32>
    %162 = arith.addf %159, %161 : vector<2x16xf32>
    %163 = math.tanh %162 : vector<2x16xf32>
    %cst_32 = arith.constant 1.000000e+00 : f32
    %164 = vector.broadcast %cst_32 : f32 to vector<2x16xf32>
    %165 = arith.subf %164, %158 : vector<2x16xf32>
    %166 = arith.mulf %165, %163 : vector<2x16xf32>
    %167 = arith.mulf %158, %138 : vector<2x16xf32>
    %168 = arith.addf %166, %167 : vector<2x16xf32>
    %169 = vector.extract_strided_slice %12 {offsets = [10, 0], sizes = [2, 48], strides = [1, 1]} : vector<48x48xf32> to vector<2x48xf32>
    %cst_33 = arith.constant dense<0.000000e+00> : vector<2x48xf32>
    %170 = tpu.matmul %168, %13, %cst_33 {dimension_numbers = #tpu.dot_dimension_numbers<[1], [0], [0], [1], [0, 0, 1, 1], [], []>} : vector<2x16xf32>, vector<16x48xf32>, vector<2x48xf32> -> vector<2x48xf32>
    %171 = vector.broadcast %14 : vector<1x48xf32> to vector<2x48xf32>
    %172 = arith.addf %170, %171 : vector<2x48xf32>
    %173 = vector.extract_strided_slice %169 {offsets = [0, 0], sizes = [2, 16], strides = [1, 1]} : vector<2x48xf32> to vector<2x16xf32>
    %174 = vector.extract_strided_slice %172 {offsets = [0, 0], sizes = [2, 16], strides = [1, 1]} : vector<2x48xf32> to vector<2x16xf32>
    %175 = arith.addf %173, %174 : vector<2x16xf32>
    %176 = arith.negf %175 : vector<2x16xf32>
    %177 = math.exp %176 : vector<2x16xf32>
    %cst_34 = arith.constant 1.000000e+00 : f32
    %178 = vector.broadcast %cst_34 : f32 to vector<2x16xf32>
    %179 = arith.addf %178, %177 : vector<2x16xf32>
    %180 = arith.divf %178, %179 : vector<2x16xf32>
    %181 = vector.extract_strided_slice %169 {offsets = [0, 16], sizes = [2, 16], strides = [1, 1]} : vector<2x48xf32> to vector<2x16xf32>
    %182 = vector.extract_strided_slice %172 {offsets = [0, 16], sizes = [2, 16], strides = [1, 1]} : vector<2x48xf32> to vector<2x16xf32>
    %183 = arith.addf %181, %182 : vector<2x16xf32>
    %184 = arith.negf %183 : vector<2x16xf32>
    %185 = math.exp %184 : vector<2x16xf32>
    %cst_35 = arith.constant 1.000000e+00 : f32
    %186 = vector.broadcast %cst_35 : f32 to vector<2x16xf32>
    %187 = arith.addf %186, %185 : vector<2x16xf32>
    %188 = arith.divf %186, %187 : vector<2x16xf32>
    %189 = vector.extract_strided_slice %169 {offsets = [0, 32], sizes = [2, 16], strides = [1, 1]} : vector<2x48xf32> to vector<2x16xf32>
    %190 = vector.extract_strided_slice %172 {offsets = [0, 32], sizes = [2, 16], strides = [1, 1]} : vector<2x48xf32> to vector<2x16xf32>
    %191 = arith.mulf %180, %190 : vector<2x16xf32>
    %192 = arith.addf %189, %191 : vector<2x16xf32>
    %193 = math.tanh %192 : vector<2x16xf32>
    %cst_36 = arith.constant 1.000000e+00 : f32
    %194 = vector.broadcast %cst_36 : f32 to vector<2x16xf32>
    %195 = arith.subf %194, %188 : vector<2x16xf32>
    %196 = arith.mulf %195, %193 : vector<2x16xf32>
    %197 = arith.mulf %188, %168 : vector<2x16xf32>
    %198 = arith.addf %196, %197 : vector<2x16xf32>
    %199 = vector.extract_strided_slice %12 {offsets = [12, 0], sizes = [2, 48], strides = [1, 1]} : vector<48x48xf32> to vector<2x48xf32>
    %cst_37 = arith.constant dense<0.000000e+00> : vector<2x48xf32>
    %200 = tpu.matmul %198, %13, %cst_37 {dimension_numbers = #tpu.dot_dimension_numbers<[1], [0], [0], [1], [0, 0, 1, 1], [], []>} : vector<2x16xf32>, vector<16x48xf32>, vector<2x48xf32> -> vector<2x48xf32>
    %201 = vector.broadcast %14 : vector<1x48xf32> to vector<2x48xf32>
    %202 = arith.addf %200, %201 : vector<2x48xf32>
    %203 = vector.extract_strided_slice %199 {offsets = [0, 0], sizes = [2, 16], strides = [1, 1]} : vector<2x48xf32> to vector<2x16xf32>
    %204 = vector.extract_strided_slice %202 {offsets = [0, 0], sizes = [2, 16], strides = [1, 1]} : vector<2x48xf32> to vector<2x16xf32>
    %205 = arith.addf %203, %204 : vector<2x16xf32>
    %206 = arith.negf %205 : vector<2x16xf32>
    %207 = math.exp %206 : vector<2x16xf32>
    %cst_38 = arith.constant 1.000000e+00 : f32
    %208 = vector.broadcast %cst_38 : f32 to vector<2x16xf32>
    %209 = arith.addf %208, %207 : vector<2x16xf32>
    %210 = arith.divf %208, %209 : vector<2x16xf32>
    %211 = vector.extract_strided_slice %199 {offsets = [0, 16], sizes = [2, 16], strides = [1, 1]} : vector<2x48xf32> to vector<2x16xf32>
    %212 = vector.extract_strided_slice %202 {offsets = [0, 16], sizes = [2, 16], strides = [1, 1]} : vector<2x48xf32> to vector<2x16xf32>
    %213 = arith.addf %211, %212 : vector<2x16xf32>
    %214 = arith.negf %213 : vector<2x16xf32>
    %215 = math.exp %214 : vector<2x16xf32>
    %cst_39 = arith.constant 1.000000e+00 : f32
    %216 = vector.broadcast %cst_39 : f32 to vector<2x16xf32>
    %217 = arith.addf %216, %215 : vector<2x16xf32>
    %218 = arith.divf %216, %217 : vector<2x16xf32>
    %219 = vector.extract_strided_slice %199 {offsets = [0, 32], sizes = [2, 16], strides = [1, 1]} : vector<2x48xf32> to vector<2x16xf32>
    %220 = vector.extract_strided_slice %202 {offsets = [0, 32], sizes = [2, 16], strides = [1, 1]} : vector<2x48xf32> to vector<2x16xf32>
    %221 = arith.mulf %210, %220 : vector<2x16xf32>
    %222 = arith.addf %219, %221 : vector<2x16xf32>
    %223 = math.tanh %222 : vector<2x16xf32>
    %cst_40 = arith.constant 1.000000e+00 : f32
    %224 = vector.broadcast %cst_40 : f32 to vector<2x16xf32>
    %225 = arith.subf %224, %218 : vector<2x16xf32>
    %226 = arith.mulf %225, %223 : vector<2x16xf32>
    %227 = arith.mulf %218, %198 : vector<2x16xf32>
    %228 = arith.addf %226, %227 : vector<2x16xf32>
    %229 = vector.extract_strided_slice %12 {offsets = [14, 0], sizes = [2, 48], strides = [1, 1]} : vector<48x48xf32> to vector<2x48xf32>
    %cst_41 = arith.constant dense<0.000000e+00> : vector<2x48xf32>
    %230 = tpu.matmul %228, %13, %cst_41 {dimension_numbers = #tpu.dot_dimension_numbers<[1], [0], [0], [1], [0, 0, 1, 1], [], []>} : vector<2x16xf32>, vector<16x48xf32>, vector<2x48xf32> -> vector<2x48xf32>
    %231 = vector.broadcast %14 : vector<1x48xf32> to vector<2x48xf32>
    %232 = arith.addf %230, %231 : vector<2x48xf32>
    %233 = vector.extract_strided_slice %229 {offsets = [0, 0], sizes = [2, 16], strides = [1, 1]} : vector<2x48xf32> to vector<2x16xf32>
    %234 = vector.extract_strided_slice %232 {offsets = [0, 0], sizes = [2, 16], strides = [1, 1]} : vector<2x48xf32> to vector<2x16xf32>
    %235 = arith.addf %233, %234 : vector<2x16xf32>
    %236 = arith.negf %235 : vector<2x16xf32>
    %237 = math.exp %236 : vector<2x16xf32>
    %cst_42 = arith.constant 1.000000e+00 : f32
    %238 = vector.broadcast %cst_42 : f32 to vector<2x16xf32>
    %239 = arith.addf %238, %237 : vector<2x16xf32>
    %240 = arith.divf %238, %239 : vector<2x16xf32>
    %241 = vector.extract_strided_slice %229 {offsets = [0, 16], sizes = [2, 16], strides = [1, 1]} : vector<2x48xf32> to vector<2x16xf32>
    %242 = vector.extract_strided_slice %232 {offsets = [0, 16], sizes = [2, 16], strides = [1, 1]} : vector<2x48xf32> to vector<2x16xf32>
    %243 = arith.addf %241, %242 : vector<2x16xf32>
    %244 = arith.negf %243 : vector<2x16xf32>
    %245 = math.exp %244 : vector<2x16xf32>
    %cst_43 = arith.constant 1.000000e+00 : f32
    %246 = vector.broadcast %cst_43 : f32 to vector<2x16xf32>
    %247 = arith.addf %246, %245 : vector<2x16xf32>
    %248 = arith.divf %246, %247 : vector<2x16xf32>
    %249 = vector.extract_strided_slice %229 {offsets = [0, 32], sizes = [2, 16], strides = [1, 1]} : vector<2x48xf32> to vector<2x16xf32>
    %250 = vector.extract_strided_slice %232 {offsets = [0, 32], sizes = [2, 16], strides = [1, 1]} : vector<2x48xf32> to vector<2x16xf32>
    %251 = arith.mulf %240, %250 : vector<2x16xf32>
    %252 = arith.addf %249, %251 : vector<2x16xf32>
    %253 = math.tanh %252 : vector<2x16xf32>
    %cst_44 = arith.constant 1.000000e+00 : f32
    %254 = vector.broadcast %cst_44 : f32 to vector<2x16xf32>
    %255 = arith.subf %254, %248 : vector<2x16xf32>
    %256 = arith.mulf %255, %253 : vector<2x16xf32>
    %257 = arith.mulf %248, %228 : vector<2x16xf32>
    %258 = arith.addf %256, %257 : vector<2x16xf32>
    %259 = vector.extract_strided_slice %48 {offsets = [0, 0], sizes = [2, 8], strides = [1, 1]} : vector<2x16xf32> to vector<2x8xf32>
    %260 = vector.extract_strided_slice %258 {offsets = [0, 8], sizes = [2, 8], strides = [1, 1]} : vector<2x16xf32> to vector<2x8xf32>
    %261 = tpu.concatenate %259, %260 in 1 : vector<2x8xf32>, vector<2x8xf32> -> vector<2x16xf32>
    %262 = vector.extract_strided_slice %78 {offsets = [0, 0], sizes = [2, 8], strides = [1, 1]} : vector<2x16xf32> to vector<2x8xf32>
    %263 = vector.extract_strided_slice %228 {offsets = [0, 8], sizes = [2, 8], strides = [1, 1]} : vector<2x16xf32> to vector<2x8xf32>
    %264 = tpu.concatenate %262, %263 in 1 : vector<2x8xf32>, vector<2x8xf32> -> vector<2x16xf32>
    %265 = vector.extract_strided_slice %108 {offsets = [0, 0], sizes = [2, 8], strides = [1, 1]} : vector<2x16xf32> to vector<2x8xf32>
    %266 = vector.extract_strided_slice %198 {offsets = [0, 8], sizes = [2, 8], strides = [1, 1]} : vector<2x16xf32> to vector<2x8xf32>
    %267 = tpu.concatenate %265, %266 in 1 : vector<2x8xf32>, vector<2x8xf32> -> vector<2x16xf32>
    %268 = vector.extract_strided_slice %138 {offsets = [0, 0], sizes = [2, 8], strides = [1, 1]} : vector<2x16xf32> to vector<2x8xf32>
    %269 = vector.extract_strided_slice %168 {offsets = [0, 8], sizes = [2, 8], strides = [1, 1]} : vector<2x16xf32> to vector<2x8xf32>
    %270 = tpu.concatenate %268, %269 in 1 : vector<2x8xf32>, vector<2x8xf32> -> vector<2x16xf32>
    %271 = vector.extract_strided_slice %168 {offsets = [0, 0], sizes = [2, 8], strides = [1, 1]} : vector<2x16xf32> to vector<2x8xf32>
    %272 = vector.extract_strided_slice %138 {offsets = [0, 8], sizes = [2, 8], strides = [1, 1]} : vector<2x16xf32> to vector<2x8xf32>
    %273 = tpu.concatenate %271, %272 in 1 : vector<2x8xf32>, vector<2x8xf32> -> vector<2x16xf32>
    %274 = vector.extract_strided_slice %198 {offsets = [0, 0], sizes = [2, 8], strides = [1, 1]} : vector<2x16xf32> to vector<2x8xf32>
    %275 = vector.extract_strided_slice %108 {offsets = [0, 8], sizes = [2, 8], strides = [1, 1]} : vector<2x16xf32> to vector<2x8xf32>
    %276 = tpu.concatenate %274, %275 in 1 : vector<2x8xf32>, vector<2x8xf32> -> vector<2x16xf32>
    %277 = vector.extract_strided_slice %228 {offsets = [0, 0], sizes = [2, 8], strides = [1, 1]} : vector<2x16xf32> to vector<2x8xf32>
    %278 = vector.extract_strided_slice %78 {offsets = [0, 8], sizes = [2, 8], strides = [1, 1]} : vector<2x16xf32> to vector<2x8xf32>
    %279 = tpu.concatenate %277, %278 in 1 : vector<2x8xf32>, vector<2x8xf32> -> vector<2x16xf32>
    %280 = vector.extract_strided_slice %258 {offsets = [0, 0], sizes = [2, 8], strides = [1, 1]} : vector<2x16xf32> to vector<2x8xf32>
    %281 = vector.extract_strided_slice %48 {offsets = [0, 8], sizes = [2, 8], strides = [1, 1]} : vector<2x16xf32> to vector<2x8xf32>
    %282 = tpu.concatenate %280, %281 in 1 : vector<2x8xf32>, vector<2x8xf32> -> vector<2x16xf32>
    %283 = tpu.concatenate %261, %264, %267, %270, %273, %276, %279, %282 in 0 : vector<2x16xf32>, vector<2x16xf32>, vector<2x16xf32>, vector<2x16xf32>, vector<2x16xf32>, vector<2x16xf32>, vector<2x16xf32>, vector<2x16xf32> -> vector<16x16xf32>
    %cst_45 = arith.constant dense<0.000000e+00> : vector<16x16xf32>
    %284 = tpu.matmul %283, %15, %cst_45 {dimension_numbers = #tpu.dot_dimension_numbers<[1], [0], [0], [1], [0, 0, 1, 1], [], []>} : vector<16x16xf32>, vector<16x16xf32>, vector<16x16xf32> -> vector<16x16xf32>
    %285 = vector.broadcast %16 : vector<1x16xf32> to vector<16x16xf32>
    %286 = arith.addf %284, %285 : vector<16x16xf32>
    %287 = math.tanh %286 : vector<16x16xf32>
    %288 = vector.broadcast %17 : vector<1x16xf32> to vector<16x16xf32>
    %289 = arith.mulf %287, %288 : vector<16x16xf32>
    %cst_46 = arith.constant dense<0.000000e+00> : vector<16xf32>
    %290 = vector.multi_reduction <add>, %289, %cst_46 [1] : vector<16x16xf32> to vector<16xf32>
    %291 = vector.shape_cast %290 : vector<16xf32> to vector<16x1xf32>
    %292 = vector.extract_strided_slice %291 {offsets = [0, 0], sizes = [2, 1], strides = [1, 1]} : vector<16x1xf32> to vector<2x1xf32>
    %293 = vector.extract_strided_slice %291 {offsets = [2, 0], sizes = [2, 1], strides = [1, 1]} : vector<16x1xf32> to vector<2x1xf32>
    %294 = vector.extract_strided_slice %291 {offsets = [4, 0], sizes = [2, 1], strides = [1, 1]} : vector<16x1xf32> to vector<2x1xf32>
    %295 = vector.extract_strided_slice %291 {offsets = [6, 0], sizes = [2, 1], strides = [1, 1]} : vector<16x1xf32> to vector<2x1xf32>
    %296 = vector.extract_strided_slice %291 {offsets = [8, 0], sizes = [2, 1], strides = [1, 1]} : vector<16x1xf32> to vector<2x1xf32>
    %297 = vector.extract_strided_slice %291 {offsets = [10, 0], sizes = [2, 1], strides = [1, 1]} : vector<16x1xf32> to vector<2x1xf32>
    %298 = vector.extract_strided_slice %291 {offsets = [12, 0], sizes = [2, 1], strides = [1, 1]} : vector<16x1xf32> to vector<2x1xf32>
    %299 = vector.extract_strided_slice %291 {offsets = [14, 0], sizes = [2, 1], strides = [1, 1]} : vector<16x1xf32> to vector<2x1xf32>
    %300 = tpu.concatenate %292, %293, %294, %295, %296, %297, %298, %299 in 1 : vector<2x1xf32>, vector<2x1xf32>, vector<2x1xf32>, vector<2x1xf32>, vector<2x1xf32>, vector<2x1xf32>, vector<2x1xf32>, vector<2x1xf32> -> vector<2x8xf32>
    %cst_47 = arith.constant dense<0xFF800000> : vector<2xf32>
    %301 = vector.multi_reduction <maximumf>, %300, %cst_47 [1] : vector<2x8xf32> to vector<2xf32>
    %302 = vector.shape_cast %301 : vector<2xf32> to vector<2x1xf32>
    %303 = vector.broadcast %302 : vector<2x1xf32> to vector<2x8xf32>
    %304 = arith.subf %300, %303 : vector<2x8xf32>
    %305 = math.exp %304 : vector<2x8xf32>
    %cst_48 = arith.constant dense<0.000000e+00> : vector<2xf32>
    %306 = vector.multi_reduction <add>, %305, %cst_48 [1] : vector<2x8xf32> to vector<2xf32>
    %307 = vector.shape_cast %306 : vector<2xf32> to vector<2x1xf32>
    %308 = tpu.reciprocal %307 {approx = true} : vector<2x1xf32> -> vector<2x1xf32>
    %309 = vector.broadcast %308 : vector<2x1xf32> to vector<2x8xf32>
    %310 = arith.mulf %305, %309 : vector<2x8xf32>
    %311 = vector.extract_strided_slice %310 {offsets = [0, 0], sizes = [2, 1], strides = [1, 1]} : vector<2x8xf32> to vector<2x1xf32>
    %312 = vector.broadcast %311 : vector<2x1xf32> to vector<2x16xf32>
    %313 = arith.mulf %261, %312 : vector<2x16xf32>
    %314 = vector.extract_strided_slice %310 {offsets = [0, 1], sizes = [2, 1], strides = [1, 1]} : vector<2x8xf32> to vector<2x1xf32>
    %315 = vector.broadcast %314 : vector<2x1xf32> to vector<2x16xf32>
    %316 = arith.mulf %264, %315 : vector<2x16xf32>
    %317 = arith.addf %313, %316 : vector<2x16xf32>
    %318 = arith.maximumf %261, %264 : vector<2x16xf32>
    %319 = vector.extract_strided_slice %310 {offsets = [0, 2], sizes = [2, 1], strides = [1, 1]} : vector<2x8xf32> to vector<2x1xf32>
    %320 = vector.broadcast %319 : vector<2x1xf32> to vector<2x16xf32>
    %321 = arith.mulf %267, %320 : vector<2x16xf32>
    %322 = arith.addf %317, %321 : vector<2x16xf32>
    %323 = arith.maximumf %318, %267 : vector<2x16xf32>
    %324 = vector.extract_strided_slice %310 {offsets = [0, 3], sizes = [2, 1], strides = [1, 1]} : vector<2x8xf32> to vector<2x1xf32>
    %325 = vector.broadcast %324 : vector<2x1xf32> to vector<2x16xf32>
    %326 = arith.mulf %270, %325 : vector<2x16xf32>
    %327 = arith.addf %322, %326 : vector<2x16xf32>
    %328 = arith.maximumf %323, %270 : vector<2x16xf32>
    %329 = vector.extract_strided_slice %310 {offsets = [0, 4], sizes = [2, 1], strides = [1, 1]} : vector<2x8xf32> to vector<2x1xf32>
    %330 = vector.broadcast %329 : vector<2x1xf32> to vector<2x16xf32>
    %331 = arith.mulf %273, %330 : vector<2x16xf32>
    %332 = arith.addf %327, %331 : vector<2x16xf32>
    %333 = arith.maximumf %328, %273 : vector<2x16xf32>
    %334 = vector.extract_strided_slice %310 {offsets = [0, 5], sizes = [2, 1], strides = [1, 1]} : vector<2x8xf32> to vector<2x1xf32>
    %335 = vector.broadcast %334 : vector<2x1xf32> to vector<2x16xf32>
    %336 = arith.mulf %276, %335 : vector<2x16xf32>
    %337 = arith.addf %332, %336 : vector<2x16xf32>
    %338 = arith.maximumf %333, %276 : vector<2x16xf32>
    %339 = vector.extract_strided_slice %310 {offsets = [0, 6], sizes = [2, 1], strides = [1, 1]} : vector<2x8xf32> to vector<2x1xf32>
    %340 = vector.broadcast %339 : vector<2x1xf32> to vector<2x16xf32>
    %341 = arith.mulf %279, %340 : vector<2x16xf32>
    %342 = arith.addf %337, %341 : vector<2x16xf32>
    %343 = arith.maximumf %338, %279 : vector<2x16xf32>
    %344 = vector.extract_strided_slice %310 {offsets = [0, 7], sizes = [2, 1], strides = [1, 1]} : vector<2x8xf32> to vector<2x1xf32>
    %345 = vector.broadcast %344 : vector<2x1xf32> to vector<2x16xf32>
    %346 = arith.mulf %282, %345 : vector<2x16xf32>
    %347 = arith.addf %342, %346 : vector<2x16xf32>
    %348 = arith.maximumf %343, %282 : vector<2x16xf32>
    %349 = tpu.concatenate %348, %347 in 1 : vector<2x16xf32>, vector<2x16xf32> -> vector<2x32xf32>
    %350 = vector.extract_strided_slice %12 {offsets = [16, 0], sizes = [2, 48], strides = [1, 1]} : vector<48x48xf32> to vector<2x48xf32>
    %cst_49 = arith.constant dense<0.000000e+00> : vector<2x48xf32>
    %351 = tpu.matmul %258, %13, %cst_49 {dimension_numbers = #tpu.dot_dimension_numbers<[1], [0], [0], [1], [0, 0, 1, 1], [], []>} : vector<2x16xf32>, vector<16x48xf32>, vector<2x48xf32> -> vector<2x48xf32>
    %352 = vector.broadcast %14 : vector<1x48xf32> to vector<2x48xf32>
    %353 = arith.addf %351, %352 : vector<2x48xf32>
    %354 = vector.extract_strided_slice %350 {offsets = [0, 0], sizes = [2, 16], strides = [1, 1]} : vector<2x48xf32> to vector<2x16xf32>
    %355 = vector.extract_strided_slice %353 {offsets = [0, 0], sizes = [2, 16], strides = [1, 1]} : vector<2x48xf32> to vector<2x16xf32>
    %356 = arith.addf %354, %355 : vector<2x16xf32>
    %357 = arith.negf %356 : vector<2x16xf32>
    %358 = math.exp %357 : vector<2x16xf32>
    %cst_50 = arith.constant 1.000000e+00 : f32
    %359 = vector.broadcast %cst_50 : f32 to vector<2x16xf32>
    %360 = arith.addf %359, %358 : vector<2x16xf32>
    %361 = arith.divf %359, %360 : vector<2x16xf32>
    %362 = vector.extract_strided_slice %350 {offsets = [0, 16], sizes = [2, 16], strides = [1, 1]} : vector<2x48xf32> to vector<2x16xf32>
    %363 = vector.extract_strided_slice %353 {offsets = [0, 16], sizes = [2, 16], strides = [1, 1]} : vector<2x48xf32> to vector<2x16xf32>
    %364 = arith.addf %362, %363 : vector<2x16xf32>
    %365 = arith.negf %364 : vector<2x16xf32>
    %366 = math.exp %365 : vector<2x16xf32>
    %cst_51 = arith.constant 1.000000e+00 : f32
    %367 = vector.broadcast %cst_51 : f32 to vector<2x16xf32>
    %368 = arith.addf %367, %366 : vector<2x16xf32>
    %369 = arith.divf %367, %368 : vector<2x16xf32>
    %370 = vector.extract_strided_slice %350 {offsets = [0, 32], sizes = [2, 16], strides = [1, 1]} : vector<2x48xf32> to vector<2x16xf32>
    %371 = vector.extract_strided_slice %353 {offsets = [0, 32], sizes = [2, 16], strides = [1, 1]} : vector<2x48xf32> to vector<2x16xf32>
    %372 = arith.mulf %361, %371 : vector<2x16xf32>
    %373 = arith.addf %370, %372 : vector<2x16xf32>
    %374 = math.tanh %373 : vector<2x16xf32>
    %cst_52 = arith.constant 1.000000e+00 : f32
    %375 = vector.broadcast %cst_52 : f32 to vector<2x16xf32>
    %376 = arith.subf %375, %369 : vector<2x16xf32>
    %377 = arith.mulf %376, %374 : vector<2x16xf32>
    %378 = arith.mulf %369, %258 : vector<2x16xf32>
    %379 = arith.addf %377, %378 : vector<2x16xf32>
    %380 = vector.extract_strided_slice %12 {offsets = [18, 0], sizes = [2, 48], strides = [1, 1]} : vector<48x48xf32> to vector<2x48xf32>
    %cst_53 = arith.constant dense<0.000000e+00> : vector<2x48xf32>
    %381 = tpu.matmul %379, %13, %cst_53 {dimension_numbers = #tpu.dot_dimension_numbers<[1], [0], [0], [1], [0, 0, 1, 1], [], []>} : vector<2x16xf32>, vector<16x48xf32>, vector<2x48xf32> -> vector<2x48xf32>
    %382 = vector.broadcast %14 : vector<1x48xf32> to vector<2x48xf32>
    %383 = arith.addf %381, %382 : vector<2x48xf32>
    %384 = vector.extract_strided_slice %380 {offsets = [0, 0], sizes = [2, 16], strides = [1, 1]} : vector<2x48xf32> to vector<2x16xf32>
    %385 = vector.extract_strided_slice %383 {offsets = [0, 0], sizes = [2, 16], strides = [1, 1]} : vector<2x48xf32> to vector<2x16xf32>
    %386 = arith.addf %384, %385 : vector<2x16xf32>
    %387 = arith.negf %386 : vector<2x16xf32>
    %388 = math.exp %387 : vector<2x16xf32>
    %cst_54 = arith.constant 1.000000e+00 : f32
    %389 = vector.broadcast %cst_54 : f32 to vector<2x16xf32>
    %390 = arith.addf %389, %388 : vector<2x16xf32>
    %391 = arith.divf %389, %390 : vector<2x16xf32>
    %392 = vector.extract_strided_slice %380 {offsets = [0, 16], sizes = [2, 16], strides = [1, 1]} : vector<2x48xf32> to vector<2x16xf32>
    %393 = vector.extract_strided_slice %383 {offsets = [0, 16], sizes = [2, 16], strides = [1, 1]} : vector<2x48xf32> to vector<2x16xf32>
    %394 = arith.addf %392, %393 : vector<2x16xf32>
    %395 = arith.negf %394 : vector<2x16xf32>
    %396 = math.exp %395 : vector<2x16xf32>
    %cst_55 = arith.constant 1.000000e+00 : f32
    %397 = vector.broadcast %cst_55 : f32 to vector<2x16xf32>
    %398 = arith.addf %397, %396 : vector<2x16xf32>
    %399 = arith.divf %397, %398 : vector<2x16xf32>
    %400 = vector.extract_strided_slice %380 {offsets = [0, 32], sizes = [2, 16], strides = [1, 1]} : vector<2x48xf32> to vector<2x16xf32>
    %401 = vector.extract_strided_slice %383 {offsets = [0, 32], sizes = [2, 16], strides = [1, 1]} : vector<2x48xf32> to vector<2x16xf32>
    %402 = arith.mulf %391, %401 : vector<2x16xf32>
    %403 = arith.addf %400, %402 : vector<2x16xf32>
    %404 = math.tanh %403 : vector<2x16xf32>
    %cst_56 = arith.constant 1.000000e+00 : f32
    %405 = vector.broadcast %cst_56 : f32 to vector<2x16xf32>
    %406 = arith.subf %405, %399 : vector<2x16xf32>
    %407 = arith.mulf %406, %404 : vector<2x16xf32>
    %408 = arith.mulf %399, %379 : vector<2x16xf32>
    %409 = arith.addf %407, %408 : vector<2x16xf32>
    %410 = vector.extract_strided_slice %12 {offsets = [20, 0], sizes = [2, 48], strides = [1, 1]} : vector<48x48xf32> to vector<2x48xf32>
    %cst_57 = arith.constant dense<0.000000e+00> : vector<2x48xf32>
    %411 = tpu.matmul %409, %13, %cst_57 {dimension_numbers = #tpu.dot_dimension_numbers<[1], [0], [0], [1], [0, 0, 1, 1], [], []>} : vector<2x16xf32>, vector<16x48xf32>, vector<2x48xf32> -> vector<2x48xf32>
    %412 = vector.broadcast %14 : vector<1x48xf32> to vector<2x48xf32>
    %413 = arith.addf %411, %412 : vector<2x48xf32>
    %414 = vector.extract_strided_slice %410 {offsets = [0, 0], sizes = [2, 16], strides = [1, 1]} : vector<2x48xf32> to vector<2x16xf32>
    %415 = vector.extract_strided_slice %413 {offsets = [0, 0], sizes = [2, 16], strides = [1, 1]} : vector<2x48xf32> to vector<2x16xf32>
    %416 = arith.addf %414, %415 : vector<2x16xf32>
    %417 = arith.negf %416 : vector<2x16xf32>
    %418 = math.exp %417 : vector<2x16xf32>
    %cst_58 = arith.constant 1.000000e+00 : f32
    %419 = vector.broadcast %cst_58 : f32 to vector<2x16xf32>
    %420 = arith.addf %419, %418 : vector<2x16xf32>
    %421 = arith.divf %419, %420 : vector<2x16xf32>
    %422 = vector.extract_strided_slice %410 {offsets = [0, 16], sizes = [2, 16], strides = [1, 1]} : vector<2x48xf32> to vector<2x16xf32>
    %423 = vector.extract_strided_slice %413 {offsets = [0, 16], sizes = [2, 16], strides = [1, 1]} : vector<2x48xf32> to vector<2x16xf32>
    %424 = arith.addf %422, %423 : vector<2x16xf32>
    %425 = arith.negf %424 : vector<2x16xf32>
    %426 = math.exp %425 : vector<2x16xf32>
    %cst_59 = arith.constant 1.000000e+00 : f32
    %427 = vector.broadcast %cst_59 : f32 to vector<2x16xf32>
    %428 = arith.addf %427, %426 : vector<2x16xf32>
    %429 = arith.divf %427, %428 : vector<2x16xf32>
    %430 = vector.extract_strided_slice %410 {offsets = [0, 32], sizes = [2, 16], strides = [1, 1]} : vector<2x48xf32> to vector<2x16xf32>
    %431 = vector.extract_strided_slice %413 {offsets = [0, 32], sizes = [2, 16], strides = [1, 1]} : vector<2x48xf32> to vector<2x16xf32>
    %432 = arith.mulf %421, %431 : vector<2x16xf32>
    %433 = arith.addf %430, %432 : vector<2x16xf32>
    %434 = math.tanh %433 : vector<2x16xf32>
    %cst_60 = arith.constant 1.000000e+00 : f32
    %435 = vector.broadcast %cst_60 : f32 to vector<2x16xf32>
    %436 = arith.subf %435, %429 : vector<2x16xf32>
    %437 = arith.mulf %436, %434 : vector<2x16xf32>
    %438 = arith.mulf %429, %409 : vector<2x16xf32>
    %439 = arith.addf %437, %438 : vector<2x16xf32>
    %440 = vector.extract_strided_slice %12 {offsets = [22, 0], sizes = [2, 48], strides = [1, 1]} : vector<48x48xf32> to vector<2x48xf32>
    %cst_61 = arith.constant dense<0.000000e+00> : vector<2x48xf32>
    %441 = tpu.matmul %439, %13, %cst_61 {dimension_numbers = #tpu.dot_dimension_numbers<[1], [0], [0], [1], [0, 0, 1, 1], [], []>} : vector<2x16xf32>, vector<16x48xf32>, vector<2x48xf32> -> vector<2x48xf32>
    %442 = vector.broadcast %14 : vector<1x48xf32> to vector<2x48xf32>
    %443 = arith.addf %441, %442 : vector<2x48xf32>
    %444 = vector.extract_strided_slice %440 {offsets = [0, 0], sizes = [2, 16], strides = [1, 1]} : vector<2x48xf32> to vector<2x16xf32>
    %445 = vector.extract_strided_slice %443 {offsets = [0, 0], sizes = [2, 16], strides = [1, 1]} : vector<2x48xf32> to vector<2x16xf32>
    %446 = arith.addf %444, %445 : vector<2x16xf32>
    %447 = arith.negf %446 : vector<2x16xf32>
    %448 = math.exp %447 : vector<2x16xf32>
    %cst_62 = arith.constant 1.000000e+00 : f32
    %449 = vector.broadcast %cst_62 : f32 to vector<2x16xf32>
    %450 = arith.addf %449, %448 : vector<2x16xf32>
    %451 = arith.divf %449, %450 : vector<2x16xf32>
    %452 = vector.extract_strided_slice %440 {offsets = [0, 16], sizes = [2, 16], strides = [1, 1]} : vector<2x48xf32> to vector<2x16xf32>
    %453 = vector.extract_strided_slice %443 {offsets = [0, 16], sizes = [2, 16], strides = [1, 1]} : vector<2x48xf32> to vector<2x16xf32>
    %454 = arith.addf %452, %453 : vector<2x16xf32>
    %455 = arith.negf %454 : vector<2x16xf32>
    %456 = math.exp %455 : vector<2x16xf32>
    %cst_63 = arith.constant 1.000000e+00 : f32
    %457 = vector.broadcast %cst_63 : f32 to vector<2x16xf32>
    %458 = arith.addf %457, %456 : vector<2x16xf32>
    %459 = arith.divf %457, %458 : vector<2x16xf32>
    %460 = vector.extract_strided_slice %440 {offsets = [0, 32], sizes = [2, 16], strides = [1, 1]} : vector<2x48xf32> to vector<2x16xf32>
    %461 = vector.extract_strided_slice %443 {offsets = [0, 32], sizes = [2, 16], strides = [1, 1]} : vector<2x48xf32> to vector<2x16xf32>
    %462 = arith.mulf %451, %461 : vector<2x16xf32>
    %463 = arith.addf %460, %462 : vector<2x16xf32>
    %464 = math.tanh %463 : vector<2x16xf32>
    %cst_64 = arith.constant 1.000000e+00 : f32
    %465 = vector.broadcast %cst_64 : f32 to vector<2x16xf32>
    %466 = arith.subf %465, %459 : vector<2x16xf32>
    %467 = arith.mulf %466, %464 : vector<2x16xf32>
    %468 = arith.mulf %459, %439 : vector<2x16xf32>
    %469 = arith.addf %467, %468 : vector<2x16xf32>
    %470 = vector.extract_strided_slice %12 {offsets = [24, 0], sizes = [2, 48], strides = [1, 1]} : vector<48x48xf32> to vector<2x48xf32>
    %cst_65 = arith.constant dense<0.000000e+00> : vector<2x48xf32>
    %471 = tpu.matmul %469, %13, %cst_65 {dimension_numbers = #tpu.dot_dimension_numbers<[1], [0], [0], [1], [0, 0, 1, 1], [], []>} : vector<2x16xf32>, vector<16x48xf32>, vector<2x48xf32> -> vector<2x48xf32>
    %472 = vector.broadcast %14 : vector<1x48xf32> to vector<2x48xf32>
    %473 = arith.addf %471, %472 : vector<2x48xf32>
    %474 = vector.extract_strided_slice %470 {offsets = [0, 0], sizes = [2, 16], strides = [1, 1]} : vector<2x48xf32> to vector<2x16xf32>
    %475 = vector.extract_strided_slice %473 {offsets = [0, 0], sizes = [2, 16], strides = [1, 1]} : vector<2x48xf32> to vector<2x16xf32>
    %476 = arith.addf %474, %475 : vector<2x16xf32>
    %477 = arith.negf %476 : vector<2x16xf32>
    %478 = math.exp %477 : vector<2x16xf32>
    %cst_66 = arith.constant 1.000000e+00 : f32
    %479 = vector.broadcast %cst_66 : f32 to vector<2x16xf32>
    %480 = arith.addf %479, %478 : vector<2x16xf32>
    %481 = arith.divf %479, %480 : vector<2x16xf32>
    %482 = vector.extract_strided_slice %470 {offsets = [0, 16], sizes = [2, 16], strides = [1, 1]} : vector<2x48xf32> to vector<2x16xf32>
    %483 = vector.extract_strided_slice %473 {offsets = [0, 16], sizes = [2, 16], strides = [1, 1]} : vector<2x48xf32> to vector<2x16xf32>
    %484 = arith.addf %482, %483 : vector<2x16xf32>
    %485 = arith.negf %484 : vector<2x16xf32>
    %486 = math.exp %485 : vector<2x16xf32>
    %cst_67 = arith.constant 1.000000e+00 : f32
    %487 = vector.broadcast %cst_67 : f32 to vector<2x16xf32>
    %488 = arith.addf %487, %486 : vector<2x16xf32>
    %489 = arith.divf %487, %488 : vector<2x16xf32>
    %490 = vector.extract_strided_slice %470 {offsets = [0, 32], sizes = [2, 16], strides = [1, 1]} : vector<2x48xf32> to vector<2x16xf32>
    %491 = vector.extract_strided_slice %473 {offsets = [0, 32], sizes = [2, 16], strides = [1, 1]} : vector<2x48xf32> to vector<2x16xf32>
    %492 = arith.mulf %481, %491 : vector<2x16xf32>
    %493 = arith.addf %490, %492 : vector<2x16xf32>
    %494 = math.tanh %493 : vector<2x16xf32>
    %cst_68 = arith.constant 1.000000e+00 : f32
    %495 = vector.broadcast %cst_68 : f32 to vector<2x16xf32>
    %496 = arith.subf %495, %489 : vector<2x16xf32>
    %497 = arith.mulf %496, %494 : vector<2x16xf32>
    %498 = arith.mulf %489, %469 : vector<2x16xf32>
    %499 = arith.addf %497, %498 : vector<2x16xf32>
    %500 = vector.extract_strided_slice %12 {offsets = [26, 0], sizes = [2, 48], strides = [1, 1]} : vector<48x48xf32> to vector<2x48xf32>
    %cst_69 = arith.constant dense<0.000000e+00> : vector<2x48xf32>
    %501 = tpu.matmul %499, %13, %cst_69 {dimension_numbers = #tpu.dot_dimension_numbers<[1], [0], [0], [1], [0, 0, 1, 1], [], []>} : vector<2x16xf32>, vector<16x48xf32>, vector<2x48xf32> -> vector<2x48xf32>
    %502 = vector.broadcast %14 : vector<1x48xf32> to vector<2x48xf32>
    %503 = arith.addf %501, %502 : vector<2x48xf32>
    %504 = vector.extract_strided_slice %500 {offsets = [0, 0], sizes = [2, 16], strides = [1, 1]} : vector<2x48xf32> to vector<2x16xf32>
    %505 = vector.extract_strided_slice %503 {offsets = [0, 0], sizes = [2, 16], strides = [1, 1]} : vector<2x48xf32> to vector<2x16xf32>
    %506 = arith.addf %504, %505 : vector<2x16xf32>
    %507 = arith.negf %506 : vector<2x16xf32>
    %508 = math.exp %507 : vector<2x16xf32>
    %cst_70 = arith.constant 1.000000e+00 : f32
    %509 = vector.broadcast %cst_70 : f32 to vector<2x16xf32>
    %510 = arith.addf %509, %508 : vector<2x16xf32>
    %511 = arith.divf %509, %510 : vector<2x16xf32>
    %512 = vector.extract_strided_slice %500 {offsets = [0, 16], sizes = [2, 16], strides = [1, 1]} : vector<2x48xf32> to vector<2x16xf32>
    %513 = vector.extract_strided_slice %503 {offsets = [0, 16], sizes = [2, 16], strides = [1, 1]} : vector<2x48xf32> to vector<2x16xf32>
    %514 = arith.addf %512, %513 : vector<2x16xf32>
    %515 = arith.negf %514 : vector<2x16xf32>
    %516 = math.exp %515 : vector<2x16xf32>
    %cst_71 = arith.constant 1.000000e+00 : f32
    %517 = vector.broadcast %cst_71 : f32 to vector<2x16xf32>
    %518 = arith.addf %517, %516 : vector<2x16xf32>
    %519 = arith.divf %517, %518 : vector<2x16xf32>
    %520 = vector.extract_strided_slice %500 {offsets = [0, 32], sizes = [2, 16], strides = [1, 1]} : vector<2x48xf32> to vector<2x16xf32>
    %521 = vector.extract_strided_slice %503 {offsets = [0, 32], sizes = [2, 16], strides = [1, 1]} : vector<2x48xf32> to vector<2x16xf32>
    %522 = arith.mulf %511, %521 : vector<2x16xf32>
    %523 = arith.addf %520, %522 : vector<2x16xf32>
    %524 = math.tanh %523 : vector<2x16xf32>
    %cst_72 = arith.constant 1.000000e+00 : f32
    %525 = vector.broadcast %cst_72 : f32 to vector<2x16xf32>
    %526 = arith.subf %525, %519 : vector<2x16xf32>
    %527 = arith.mulf %526, %524 : vector<2x16xf32>
    %528 = arith.mulf %519, %499 : vector<2x16xf32>
    %529 = arith.addf %527, %528 : vector<2x16xf32>
    %530 = vector.extract_strided_slice %12 {offsets = [28, 0], sizes = [2, 48], strides = [1, 1]} : vector<48x48xf32> to vector<2x48xf32>
    %cst_73 = arith.constant dense<0.000000e+00> : vector<2x48xf32>
    %531 = tpu.matmul %529, %13, %cst_73 {dimension_numbers = #tpu.dot_dimension_numbers<[1], [0], [0], [1], [0, 0, 1, 1], [], []>} : vector<2x16xf32>, vector<16x48xf32>, vector<2x48xf32> -> vector<2x48xf32>
    %532 = vector.broadcast %14 : vector<1x48xf32> to vector<2x48xf32>
    %533 = arith.addf %531, %532 : vector<2x48xf32>
    %534 = vector.extract_strided_slice %530 {offsets = [0, 0], sizes = [2, 16], strides = [1, 1]} : vector<2x48xf32> to vector<2x16xf32>
    %535 = vector.extract_strided_slice %533 {offsets = [0, 0], sizes = [2, 16], strides = [1, 1]} : vector<2x48xf32> to vector<2x16xf32>
    %536 = arith.addf %534, %535 : vector<2x16xf32>
    %537 = arith.negf %536 : vector<2x16xf32>
    %538 = math.exp %537 : vector<2x16xf32>
    %cst_74 = arith.constant 1.000000e+00 : f32
    %539 = vector.broadcast %cst_74 : f32 to vector<2x16xf32>
    %540 = arith.addf %539, %538 : vector<2x16xf32>
    %541 = arith.divf %539, %540 : vector<2x16xf32>
    %542 = vector.extract_strided_slice %530 {offsets = [0, 16], sizes = [2, 16], strides = [1, 1]} : vector<2x48xf32> to vector<2x16xf32>
    %543 = vector.extract_strided_slice %533 {offsets = [0, 16], sizes = [2, 16], strides = [1, 1]} : vector<2x48xf32> to vector<2x16xf32>
    %544 = arith.addf %542, %543 : vector<2x16xf32>
    %545 = arith.negf %544 : vector<2x16xf32>
    %546 = math.exp %545 : vector<2x16xf32>
    %cst_75 = arith.constant 1.000000e+00 : f32
    %547 = vector.broadcast %cst_75 : f32 to vector<2x16xf32>
    %548 = arith.addf %547, %546 : vector<2x16xf32>
    %549 = arith.divf %547, %548 : vector<2x16xf32>
    %550 = vector.extract_strided_slice %530 {offsets = [0, 32], sizes = [2, 16], strides = [1, 1]} : vector<2x48xf32> to vector<2x16xf32>
    %551 = vector.extract_strided_slice %533 {offsets = [0, 32], sizes = [2, 16], strides = [1, 1]} : vector<2x48xf32> to vector<2x16xf32>
    %552 = arith.mulf %541, %551 : vector<2x16xf32>
    %553 = arith.addf %550, %552 : vector<2x16xf32>
    %554 = math.tanh %553 : vector<2x16xf32>
    %cst_76 = arith.constant 1.000000e+00 : f32
    %555 = vector.broadcast %cst_76 : f32 to vector<2x16xf32>
    %556 = arith.subf %555, %549 : vector<2x16xf32>
    %557 = arith.mulf %556, %554 : vector<2x16xf32>
    %558 = arith.mulf %549, %529 : vector<2x16xf32>
    %559 = arith.addf %557, %558 : vector<2x16xf32>
    %560 = vector.extract_strided_slice %12 {offsets = [30, 0], sizes = [2, 48], strides = [1, 1]} : vector<48x48xf32> to vector<2x48xf32>
    %cst_77 = arith.constant dense<0.000000e+00> : vector<2x48xf32>
    %561 = tpu.matmul %559, %13, %cst_77 {dimension_numbers = #tpu.dot_dimension_numbers<[1], [0], [0], [1], [0, 0, 1, 1], [], []>} : vector<2x16xf32>, vector<16x48xf32>, vector<2x48xf32> -> vector<2x48xf32>
    %562 = vector.broadcast %14 : vector<1x48xf32> to vector<2x48xf32>
    %563 = arith.addf %561, %562 : vector<2x48xf32>
    %564 = vector.extract_strided_slice %560 {offsets = [0, 0], sizes = [2, 16], strides = [1, 1]} : vector<2x48xf32> to vector<2x16xf32>
    %565 = vector.extract_strided_slice %563 {offsets = [0, 0], sizes = [2, 16], strides = [1, 1]} : vector<2x48xf32> to vector<2x16xf32>
    %566 = arith.addf %564, %565 : vector<2x16xf32>
    %567 = arith.negf %566 : vector<2x16xf32>
    %568 = math.exp %567 : vector<2x16xf32>
    %cst_78 = arith.constant 1.000000e+00 : f32
    %569 = vector.broadcast %cst_78 : f32 to vector<2x16xf32>
    %570 = arith.addf %569, %568 : vector<2x16xf32>
    %571 = arith.divf %569, %570 : vector<2x16xf32>
    %572 = vector.extract_strided_slice %560 {offsets = [0, 16], sizes = [2, 16], strides = [1, 1]} : vector<2x48xf32> to vector<2x16xf32>
    %573 = vector.extract_strided_slice %563 {offsets = [0, 16], sizes = [2, 16], strides = [1, 1]} : vector<2x48xf32> to vector<2x16xf32>
    %574 = arith.addf %572, %573 : vector<2x16xf32>
    %575 = arith.negf %574 : vector<2x16xf32>
    %576 = math.exp %575 : vector<2x16xf32>
    %cst_79 = arith.constant 1.000000e+00 : f32
    %577 = vector.broadcast %cst_79 : f32 to vector<2x16xf32>
    %578 = arith.addf %577, %576 : vector<2x16xf32>
    %579 = arith.divf %577, %578 : vector<2x16xf32>
    %580 = vector.extract_strided_slice %560 {offsets = [0, 32], sizes = [2, 16], strides = [1, 1]} : vector<2x48xf32> to vector<2x16xf32>
    %581 = vector.extract_strided_slice %563 {offsets = [0, 32], sizes = [2, 16], strides = [1, 1]} : vector<2x48xf32> to vector<2x16xf32>
    %582 = arith.mulf %571, %581 : vector<2x16xf32>
    %583 = arith.addf %580, %582 : vector<2x16xf32>
    %584 = math.tanh %583 : vector<2x16xf32>
    %cst_80 = arith.constant 1.000000e+00 : f32
    %585 = vector.broadcast %cst_80 : f32 to vector<2x16xf32>
    %586 = arith.subf %585, %579 : vector<2x16xf32>
    %587 = arith.mulf %586, %584 : vector<2x16xf32>
    %588 = arith.mulf %579, %559 : vector<2x16xf32>
    %589 = arith.addf %587, %588 : vector<2x16xf32>
    %590 = vector.extract_strided_slice %379 {offsets = [0, 0], sizes = [2, 8], strides = [1, 1]} : vector<2x16xf32> to vector<2x8xf32>
    %591 = vector.extract_strided_slice %589 {offsets = [0, 8], sizes = [2, 8], strides = [1, 1]} : vector<2x16xf32> to vector<2x8xf32>
    %592 = tpu.concatenate %590, %591 in 1 : vector<2x8xf32>, vector<2x8xf32> -> vector<2x16xf32>
    %593 = vector.extract_strided_slice %409 {offsets = [0, 0], sizes = [2, 8], strides = [1, 1]} : vector<2x16xf32> to vector<2x8xf32>
    %594 = vector.extract_strided_slice %559 {offsets = [0, 8], sizes = [2, 8], strides = [1, 1]} : vector<2x16xf32> to vector<2x8xf32>
    %595 = tpu.concatenate %593, %594 in 1 : vector<2x8xf32>, vector<2x8xf32> -> vector<2x16xf32>
    %596 = vector.extract_strided_slice %439 {offsets = [0, 0], sizes = [2, 8], strides = [1, 1]} : vector<2x16xf32> to vector<2x8xf32>
    %597 = vector.extract_strided_slice %529 {offsets = [0, 8], sizes = [2, 8], strides = [1, 1]} : vector<2x16xf32> to vector<2x8xf32>
    %598 = tpu.concatenate %596, %597 in 1 : vector<2x8xf32>, vector<2x8xf32> -> vector<2x16xf32>
    %599 = vector.extract_strided_slice %469 {offsets = [0, 0], sizes = [2, 8], strides = [1, 1]} : vector<2x16xf32> to vector<2x8xf32>
    %600 = vector.extract_strided_slice %499 {offsets = [0, 8], sizes = [2, 8], strides = [1, 1]} : vector<2x16xf32> to vector<2x8xf32>
    %601 = tpu.concatenate %599, %600 in 1 : vector<2x8xf32>, vector<2x8xf32> -> vector<2x16xf32>
    %602 = vector.extract_strided_slice %499 {offsets = [0, 0], sizes = [2, 8], strides = [1, 1]} : vector<2x16xf32> to vector<2x8xf32>
    %603 = vector.extract_strided_slice %469 {offsets = [0, 8], sizes = [2, 8], strides = [1, 1]} : vector<2x16xf32> to vector<2x8xf32>
    %604 = tpu.concatenate %602, %603 in 1 : vector<2x8xf32>, vector<2x8xf32> -> vector<2x16xf32>
    %605 = vector.extract_strided_slice %529 {offsets = [0, 0], sizes = [2, 8], strides = [1, 1]} : vector<2x16xf32> to vector<2x8xf32>
    %606 = vector.extract_strided_slice %439 {offsets = [0, 8], sizes = [2, 8], strides = [1, 1]} : vector<2x16xf32> to vector<2x8xf32>
    %607 = tpu.concatenate %605, %606 in 1 : vector<2x8xf32>, vector<2x8xf32> -> vector<2x16xf32>
    %608 = vector.extract_strided_slice %559 {offsets = [0, 0], sizes = [2, 8], strides = [1, 1]} : vector<2x16xf32> to vector<2x8xf32>
    %609 = vector.extract_strided_slice %409 {offsets = [0, 8], sizes = [2, 8], strides = [1, 1]} : vector<2x16xf32> to vector<2x8xf32>
    %610 = tpu.concatenate %608, %609 in 1 : vector<2x8xf32>, vector<2x8xf32> -> vector<2x16xf32>
    %611 = vector.extract_strided_slice %589 {offsets = [0, 0], sizes = [2, 8], strides = [1, 1]} : vector<2x16xf32> to vector<2x8xf32>
    %612 = vector.extract_strided_slice %379 {offsets = [0, 8], sizes = [2, 8], strides = [1, 1]} : vector<2x16xf32> to vector<2x8xf32>
    %613 = tpu.concatenate %611, %612 in 1 : vector<2x8xf32>, vector<2x8xf32> -> vector<2x16xf32>
    %614 = tpu.concatenate %592, %595, %598, %601, %604, %607, %610, %613 in 0 : vector<2x16xf32>, vector<2x16xf32>, vector<2x16xf32>, vector<2x16xf32>, vector<2x16xf32>, vector<2x16xf32>, vector<2x16xf32>, vector<2x16xf32> -> vector<16x16xf32>
    %cst_81 = arith.constant dense<0.000000e+00> : vector<16x16xf32>
    %615 = tpu.matmul %614, %15, %cst_81 {dimension_numbers = #tpu.dot_dimension_numbers<[1], [0], [0], [1], [0, 0, 1, 1], [], []>} : vector<16x16xf32>, vector<16x16xf32>, vector<16x16xf32> -> vector<16x16xf32>
    %616 = vector.broadcast %16 : vector<1x16xf32> to vector<16x16xf32>
    %617 = arith.addf %615, %616 : vector<16x16xf32>
    %618 = math.tanh %617 : vector<16x16xf32>
    %619 = vector.broadcast %17 : vector<1x16xf32> to vector<16x16xf32>
    %620 = arith.mulf %618, %619 : vector<16x16xf32>
    %cst_82 = arith.constant dense<0.000000e+00> : vector<16xf32>
    %621 = vector.multi_reduction <add>, %620, %cst_82 [1] : vector<16x16xf32> to vector<16xf32>
    %622 = vector.shape_cast %621 : vector<16xf32> to vector<16x1xf32>
    %623 = vector.extract_strided_slice %622 {offsets = [0, 0], sizes = [2, 1], strides = [1, 1]} : vector<16x1xf32> to vector<2x1xf32>
    %624 = vector.extract_strided_slice %622 {offsets = [2, 0], sizes = [2, 1], strides = [1, 1]} : vector<16x1xf32> to vector<2x1xf32>
    %625 = vector.extract_strided_slice %622 {offsets = [4, 0], sizes = [2, 1], strides = [1, 1]} : vector<16x1xf32> to vector<2x1xf32>
    %626 = vector.extract_strided_slice %622 {offsets = [6, 0], sizes = [2, 1], strides = [1, 1]} : vector<16x1xf32> to vector<2x1xf32>
    %627 = vector.extract_strided_slice %622 {offsets = [8, 0], sizes = [2, 1], strides = [1, 1]} : vector<16x1xf32> to vector<2x1xf32>
    %628 = vector.extract_strided_slice %622 {offsets = [10, 0], sizes = [2, 1], strides = [1, 1]} : vector<16x1xf32> to vector<2x1xf32>
    %629 = vector.extract_strided_slice %622 {offsets = [12, 0], sizes = [2, 1], strides = [1, 1]} : vector<16x1xf32> to vector<2x1xf32>
    %630 = vector.extract_strided_slice %622 {offsets = [14, 0], sizes = [2, 1], strides = [1, 1]} : vector<16x1xf32> to vector<2x1xf32>
    %631 = tpu.concatenate %623, %624, %625, %626, %627, %628, %629, %630 in 1 : vector<2x1xf32>, vector<2x1xf32>, vector<2x1xf32>, vector<2x1xf32>, vector<2x1xf32>, vector<2x1xf32>, vector<2x1xf32>, vector<2x1xf32> -> vector<2x8xf32>
    %cst_83 = arith.constant dense<0xFF800000> : vector<2xf32>
    %632 = vector.multi_reduction <maximumf>, %631, %cst_83 [1] : vector<2x8xf32> to vector<2xf32>
    %633 = vector.shape_cast %632 : vector<2xf32> to vector<2x1xf32>
    %634 = vector.broadcast %633 : vector<2x1xf32> to vector<2x8xf32>
    %635 = arith.subf %631, %634 : vector<2x8xf32>
    %636 = math.exp %635 : vector<2x8xf32>
    %cst_84 = arith.constant dense<0.000000e+00> : vector<2xf32>
    %637 = vector.multi_reduction <add>, %636, %cst_84 [1] : vector<2x8xf32> to vector<2xf32>
    %638 = vector.shape_cast %637 : vector<2xf32> to vector<2x1xf32>
    %639 = tpu.reciprocal %638 {approx = true} : vector<2x1xf32> -> vector<2x1xf32>
    %640 = vector.broadcast %639 : vector<2x1xf32> to vector<2x8xf32>
    %641 = arith.mulf %636, %640 : vector<2x8xf32>
    %642 = vector.extract_strided_slice %641 {offsets = [0, 0], sizes = [2, 1], strides = [1, 1]} : vector<2x8xf32> to vector<2x1xf32>
    %643 = vector.broadcast %642 : vector<2x1xf32> to vector<2x16xf32>
    %644 = arith.mulf %592, %643 : vector<2x16xf32>
    %645 = vector.extract_strided_slice %641 {offsets = [0, 1], sizes = [2, 1], strides = [1, 1]} : vector<2x8xf32> to vector<2x1xf32>
    %646 = vector.broadcast %645 : vector<2x1xf32> to vector<2x16xf32>
    %647 = arith.mulf %595, %646 : vector<2x16xf32>
    %648 = arith.addf %644, %647 : vector<2x16xf32>
    %649 = arith.maximumf %592, %595 : vector<2x16xf32>
    %650 = vector.extract_strided_slice %641 {offsets = [0, 2], sizes = [2, 1], strides = [1, 1]} : vector<2x8xf32> to vector<2x1xf32>
    %651 = vector.broadcast %650 : vector<2x1xf32> to vector<2x16xf32>
    %652 = arith.mulf %598, %651 : vector<2x16xf32>
    %653 = arith.addf %648, %652 : vector<2x16xf32>
    %654 = arith.maximumf %649, %598 : vector<2x16xf32>
    %655 = vector.extract_strided_slice %641 {offsets = [0, 3], sizes = [2, 1], strides = [1, 1]} : vector<2x8xf32> to vector<2x1xf32>
    %656 = vector.broadcast %655 : vector<2x1xf32> to vector<2x16xf32>
    %657 = arith.mulf %601, %656 : vector<2x16xf32>
    %658 = arith.addf %653, %657 : vector<2x16xf32>
    %659 = arith.maximumf %654, %601 : vector<2x16xf32>
    %660 = vector.extract_strided_slice %641 {offsets = [0, 4], sizes = [2, 1], strides = [1, 1]} : vector<2x8xf32> to vector<2x1xf32>
    %661 = vector.broadcast %660 : vector<2x1xf32> to vector<2x16xf32>
    %662 = arith.mulf %604, %661 : vector<2x16xf32>
    %663 = arith.addf %658, %662 : vector<2x16xf32>
    %664 = arith.maximumf %659, %604 : vector<2x16xf32>
    %665 = vector.extract_strided_slice %641 {offsets = [0, 5], sizes = [2, 1], strides = [1, 1]} : vector<2x8xf32> to vector<2x1xf32>
    %666 = vector.broadcast %665 : vector<2x1xf32> to vector<2x16xf32>
    %667 = arith.mulf %607, %666 : vector<2x16xf32>
    %668 = arith.addf %663, %667 : vector<2x16xf32>
    %669 = arith.maximumf %664, %607 : vector<2x16xf32>
    %670 = vector.extract_strided_slice %641 {offsets = [0, 6], sizes = [2, 1], strides = [1, 1]} : vector<2x8xf32> to vector<2x1xf32>
    %671 = vector.broadcast %670 : vector<2x1xf32> to vector<2x16xf32>
    %672 = arith.mulf %610, %671 : vector<2x16xf32>
    %673 = arith.addf %668, %672 : vector<2x16xf32>
    %674 = arith.maximumf %669, %610 : vector<2x16xf32>
    %675 = vector.extract_strided_slice %641 {offsets = [0, 7], sizes = [2, 1], strides = [1, 1]} : vector<2x8xf32> to vector<2x1xf32>
    %676 = vector.broadcast %675 : vector<2x1xf32> to vector<2x16xf32>
    %677 = arith.mulf %613, %676 : vector<2x16xf32>
    %678 = arith.addf %673, %677 : vector<2x16xf32>
    %679 = arith.maximumf %674, %613 : vector<2x16xf32>
    %680 = tpu.concatenate %679, %678 in 1 : vector<2x16xf32>, vector<2x16xf32> -> vector<2x32xf32>
    %681 = vector.extract_strided_slice %12 {offsets = [32, 0], sizes = [2, 48], strides = [1, 1]} : vector<48x48xf32> to vector<2x48xf32>
    %cst_85 = arith.constant dense<0.000000e+00> : vector<2x48xf32>
    %682 = tpu.matmul %589, %13, %cst_85 {dimension_numbers = #tpu.dot_dimension_numbers<[1], [0], [0], [1], [0, 0, 1, 1], [], []>} : vector<2x16xf32>, vector<16x48xf32>, vector<2x48xf32> -> vector<2x48xf32>
    %683 = vector.broadcast %14 : vector<1x48xf32> to vector<2x48xf32>
    %684 = arith.addf %682, %683 : vector<2x48xf32>
    %685 = vector.extract_strided_slice %681 {offsets = [0, 0], sizes = [2, 16], strides = [1, 1]} : vector<2x48xf32> to vector<2x16xf32>
    %686 = vector.extract_strided_slice %684 {offsets = [0, 0], sizes = [2, 16], strides = [1, 1]} : vector<2x48xf32> to vector<2x16xf32>
    %687 = arith.addf %685, %686 : vector<2x16xf32>
    %688 = arith.negf %687 : vector<2x16xf32>
    %689 = math.exp %688 : vector<2x16xf32>
    %cst_86 = arith.constant 1.000000e+00 : f32
    %690 = vector.broadcast %cst_86 : f32 to vector<2x16xf32>
    %691 = arith.addf %690, %689 : vector<2x16xf32>
    %692 = arith.divf %690, %691 : vector<2x16xf32>
    %693 = vector.extract_strided_slice %681 {offsets = [0, 16], sizes = [2, 16], strides = [1, 1]} : vector<2x48xf32> to vector<2x16xf32>
    %694 = vector.extract_strided_slice %684 {offsets = [0, 16], sizes = [2, 16], strides = [1, 1]} : vector<2x48xf32> to vector<2x16xf32>
    %695 = arith.addf %693, %694 : vector<2x16xf32>
    %696 = arith.negf %695 : vector<2x16xf32>
    %697 = math.exp %696 : vector<2x16xf32>
    %cst_87 = arith.constant 1.000000e+00 : f32
    %698 = vector.broadcast %cst_87 : f32 to vector<2x16xf32>
    %699 = arith.addf %698, %697 : vector<2x16xf32>
    %700 = arith.divf %698, %699 : vector<2x16xf32>
    %701 = vector.extract_strided_slice %681 {offsets = [0, 32], sizes = [2, 16], strides = [1, 1]} : vector<2x48xf32> to vector<2x16xf32>
    %702 = vector.extract_strided_slice %684 {offsets = [0, 32], sizes = [2, 16], strides = [1, 1]} : vector<2x48xf32> to vector<2x16xf32>
    %703 = arith.mulf %692, %702 : vector<2x16xf32>
    %704 = arith.addf %701, %703 : vector<2x16xf32>
    %705 = math.tanh %704 : vector<2x16xf32>
    %cst_88 = arith.constant 1.000000e+00 : f32
    %706 = vector.broadcast %cst_88 : f32 to vector<2x16xf32>
    %707 = arith.subf %706, %700 : vector<2x16xf32>
    %708 = arith.mulf %707, %705 : vector<2x16xf32>
    %709 = arith.mulf %700, %589 : vector<2x16xf32>
    %710 = arith.addf %708, %709 : vector<2x16xf32>
    %711 = vector.extract_strided_slice %12 {offsets = [34, 0], sizes = [2, 48], strides = [1, 1]} : vector<48x48xf32> to vector<2x48xf32>
    %cst_89 = arith.constant dense<0.000000e+00> : vector<2x48xf32>
    %712 = tpu.matmul %710, %13, %cst_89 {dimension_numbers = #tpu.dot_dimension_numbers<[1], [0], [0], [1], [0, 0, 1, 1], [], []>} : vector<2x16xf32>, vector<16x48xf32>, vector<2x48xf32> -> vector<2x48xf32>
    %713 = vector.broadcast %14 : vector<1x48xf32> to vector<2x48xf32>
    %714 = arith.addf %712, %713 : vector<2x48xf32>
    %715 = vector.extract_strided_slice %711 {offsets = [0, 0], sizes = [2, 16], strides = [1, 1]} : vector<2x48xf32> to vector<2x16xf32>
    %716 = vector.extract_strided_slice %714 {offsets = [0, 0], sizes = [2, 16], strides = [1, 1]} : vector<2x48xf32> to vector<2x16xf32>
    %717 = arith.addf %715, %716 : vector<2x16xf32>
    %718 = arith.negf %717 : vector<2x16xf32>
    %719 = math.exp %718 : vector<2x16xf32>
    %cst_90 = arith.constant 1.000000e+00 : f32
    %720 = vector.broadcast %cst_90 : f32 to vector<2x16xf32>
    %721 = arith.addf %720, %719 : vector<2x16xf32>
    %722 = arith.divf %720, %721 : vector<2x16xf32>
    %723 = vector.extract_strided_slice %711 {offsets = [0, 16], sizes = [2, 16], strides = [1, 1]} : vector<2x48xf32> to vector<2x16xf32>
    %724 = vector.extract_strided_slice %714 {offsets = [0, 16], sizes = [2, 16], strides = [1, 1]} : vector<2x48xf32> to vector<2x16xf32>
    %725 = arith.addf %723, %724 : vector<2x16xf32>
    %726 = arith.negf %725 : vector<2x16xf32>
    %727 = math.exp %726 : vector<2x16xf32>
    %cst_91 = arith.constant 1.000000e+00 : f32
    %728 = vector.broadcast %cst_91 : f32 to vector<2x16xf32>
    %729 = arith.addf %728, %727 : vector<2x16xf32>
    %730 = arith.divf %728, %729 : vector<2x16xf32>
    %731 = vector.extract_strided_slice %711 {offsets = [0, 32], sizes = [2, 16], strides = [1, 1]} : vector<2x48xf32> to vector<2x16xf32>
    %732 = vector.extract_strided_slice %714 {offsets = [0, 32], sizes = [2, 16], strides = [1, 1]} : vector<2x48xf32> to vector<2x16xf32>
    %733 = arith.mulf %722, %732 : vector<2x16xf32>
    %734 = arith.addf %731, %733 : vector<2x16xf32>
    %735 = math.tanh %734 : vector<2x16xf32>
    %cst_92 = arith.constant 1.000000e+00 : f32
    %736 = vector.broadcast %cst_92 : f32 to vector<2x16xf32>
    %737 = arith.subf %736, %730 : vector<2x16xf32>
    %738 = arith.mulf %737, %735 : vector<2x16xf32>
    %739 = arith.mulf %730, %710 : vector<2x16xf32>
    %740 = arith.addf %738, %739 : vector<2x16xf32>
    %741 = vector.extract_strided_slice %12 {offsets = [36, 0], sizes = [2, 48], strides = [1, 1]} : vector<48x48xf32> to vector<2x48xf32>
    %cst_93 = arith.constant dense<0.000000e+00> : vector<2x48xf32>
    %742 = tpu.matmul %740, %13, %cst_93 {dimension_numbers = #tpu.dot_dimension_numbers<[1], [0], [0], [1], [0, 0, 1, 1], [], []>} : vector<2x16xf32>, vector<16x48xf32>, vector<2x48xf32> -> vector<2x48xf32>
    %743 = vector.broadcast %14 : vector<1x48xf32> to vector<2x48xf32>
    %744 = arith.addf %742, %743 : vector<2x48xf32>
    %745 = vector.extract_strided_slice %741 {offsets = [0, 0], sizes = [2, 16], strides = [1, 1]} : vector<2x48xf32> to vector<2x16xf32>
    %746 = vector.extract_strided_slice %744 {offsets = [0, 0], sizes = [2, 16], strides = [1, 1]} : vector<2x48xf32> to vector<2x16xf32>
    %747 = arith.addf %745, %746 : vector<2x16xf32>
    %748 = arith.negf %747 : vector<2x16xf32>
    %749 = math.exp %748 : vector<2x16xf32>
    %cst_94 = arith.constant 1.000000e+00 : f32
    %750 = vector.broadcast %cst_94 : f32 to vector<2x16xf32>
    %751 = arith.addf %750, %749 : vector<2x16xf32>
    %752 = arith.divf %750, %751 : vector<2x16xf32>
    %753 = vector.extract_strided_slice %741 {offsets = [0, 16], sizes = [2, 16], strides = [1, 1]} : vector<2x48xf32> to vector<2x16xf32>
    %754 = vector.extract_strided_slice %744 {offsets = [0, 16], sizes = [2, 16], strides = [1, 1]} : vector<2x48xf32> to vector<2x16xf32>
    %755 = arith.addf %753, %754 : vector<2x16xf32>
    %756 = arith.negf %755 : vector<2x16xf32>
    %757 = math.exp %756 : vector<2x16xf32>
    %cst_95 = arith.constant 1.000000e+00 : f32
    %758 = vector.broadcast %cst_95 : f32 to vector<2x16xf32>
    %759 = arith.addf %758, %757 : vector<2x16xf32>
    %760 = arith.divf %758, %759 : vector<2x16xf32>
    %761 = vector.extract_strided_slice %741 {offsets = [0, 32], sizes = [2, 16], strides = [1, 1]} : vector<2x48xf32> to vector<2x16xf32>
    %762 = vector.extract_strided_slice %744 {offsets = [0, 32], sizes = [2, 16], strides = [1, 1]} : vector<2x48xf32> to vector<2x16xf32>
    %763 = arith.mulf %752, %762 : vector<2x16xf32>
    %764 = arith.addf %761, %763 : vector<2x16xf32>
    %765 = math.tanh %764 : vector<2x16xf32>
    %cst_96 = arith.constant 1.000000e+00 : f32
    %766 = vector.broadcast %cst_96 : f32 to vector<2x16xf32>
    %767 = arith.subf %766, %760 : vector<2x16xf32>
    %768 = arith.mulf %767, %765 : vector<2x16xf32>
    %769 = arith.mulf %760, %740 : vector<2x16xf32>
    %770 = arith.addf %768, %769 : vector<2x16xf32>
    %771 = vector.extract_strided_slice %12 {offsets = [38, 0], sizes = [2, 48], strides = [1, 1]} : vector<48x48xf32> to vector<2x48xf32>
    %cst_97 = arith.constant dense<0.000000e+00> : vector<2x48xf32>
    %772 = tpu.matmul %770, %13, %cst_97 {dimension_numbers = #tpu.dot_dimension_numbers<[1], [0], [0], [1], [0, 0, 1, 1], [], []>} : vector<2x16xf32>, vector<16x48xf32>, vector<2x48xf32> -> vector<2x48xf32>
    %773 = vector.broadcast %14 : vector<1x48xf32> to vector<2x48xf32>
    %774 = arith.addf %772, %773 : vector<2x48xf32>
    %775 = vector.extract_strided_slice %771 {offsets = [0, 0], sizes = [2, 16], strides = [1, 1]} : vector<2x48xf32> to vector<2x16xf32>
    %776 = vector.extract_strided_slice %774 {offsets = [0, 0], sizes = [2, 16], strides = [1, 1]} : vector<2x48xf32> to vector<2x16xf32>
    %777 = arith.addf %775, %776 : vector<2x16xf32>
    %778 = arith.negf %777 : vector<2x16xf32>
    %779 = math.exp %778 : vector<2x16xf32>
    %cst_98 = arith.constant 1.000000e+00 : f32
    %780 = vector.broadcast %cst_98 : f32 to vector<2x16xf32>
    %781 = arith.addf %780, %779 : vector<2x16xf32>
    %782 = arith.divf %780, %781 : vector<2x16xf32>
    %783 = vector.extract_strided_slice %771 {offsets = [0, 16], sizes = [2, 16], strides = [1, 1]} : vector<2x48xf32> to vector<2x16xf32>
    %784 = vector.extract_strided_slice %774 {offsets = [0, 16], sizes = [2, 16], strides = [1, 1]} : vector<2x48xf32> to vector<2x16xf32>
    %785 = arith.addf %783, %784 : vector<2x16xf32>
    %786 = arith.negf %785 : vector<2x16xf32>
    %787 = math.exp %786 : vector<2x16xf32>
    %cst_99 = arith.constant 1.000000e+00 : f32
    %788 = vector.broadcast %cst_99 : f32 to vector<2x16xf32>
    %789 = arith.addf %788, %787 : vector<2x16xf32>
    %790 = arith.divf %788, %789 : vector<2x16xf32>
    %791 = vector.extract_strided_slice %771 {offsets = [0, 32], sizes = [2, 16], strides = [1, 1]} : vector<2x48xf32> to vector<2x16xf32>
    %792 = vector.extract_strided_slice %774 {offsets = [0, 32], sizes = [2, 16], strides = [1, 1]} : vector<2x48xf32> to vector<2x16xf32>
    %793 = arith.mulf %782, %792 : vector<2x16xf32>
    %794 = arith.addf %791, %793 : vector<2x16xf32>
    %795 = math.tanh %794 : vector<2x16xf32>
    %cst_100 = arith.constant 1.000000e+00 : f32
    %796 = vector.broadcast %cst_100 : f32 to vector<2x16xf32>
    %797 = arith.subf %796, %790 : vector<2x16xf32>
    %798 = arith.mulf %797, %795 : vector<2x16xf32>
    %799 = arith.mulf %790, %770 : vector<2x16xf32>
    %800 = arith.addf %798, %799 : vector<2x16xf32>
    %801 = vector.extract_strided_slice %12 {offsets = [40, 0], sizes = [2, 48], strides = [1, 1]} : vector<48x48xf32> to vector<2x48xf32>
    %cst_101 = arith.constant dense<0.000000e+00> : vector<2x48xf32>
    %802 = tpu.matmul %800, %13, %cst_101 {dimension_numbers = #tpu.dot_dimension_numbers<[1], [0], [0], [1], [0, 0, 1, 1], [], []>} : vector<2x16xf32>, vector<16x48xf32>, vector<2x48xf32> -> vector<2x48xf32>
    %803 = vector.broadcast %14 : vector<1x48xf32> to vector<2x48xf32>
    %804 = arith.addf %802, %803 : vector<2x48xf32>
    %805 = vector.extract_strided_slice %801 {offsets = [0, 0], sizes = [2, 16], strides = [1, 1]} : vector<2x48xf32> to vector<2x16xf32>
    %806 = vector.extract_strided_slice %804 {offsets = [0, 0], sizes = [2, 16], strides = [1, 1]} : vector<2x48xf32> to vector<2x16xf32>
    %807 = arith.addf %805, %806 : vector<2x16xf32>
    %808 = arith.negf %807 : vector<2x16xf32>
    %809 = math.exp %808 : vector<2x16xf32>
    %cst_102 = arith.constant 1.000000e+00 : f32
    %810 = vector.broadcast %cst_102 : f32 to vector<2x16xf32>
    %811 = arith.addf %810, %809 : vector<2x16xf32>
    %812 = arith.divf %810, %811 : vector<2x16xf32>
    %813 = vector.extract_strided_slice %801 {offsets = [0, 16], sizes = [2, 16], strides = [1, 1]} : vector<2x48xf32> to vector<2x16xf32>
    %814 = vector.extract_strided_slice %804 {offsets = [0, 16], sizes = [2, 16], strides = [1, 1]} : vector<2x48xf32> to vector<2x16xf32>
    %815 = arith.addf %813, %814 : vector<2x16xf32>
    %816 = arith.negf %815 : vector<2x16xf32>
    %817 = math.exp %816 : vector<2x16xf32>
    %cst_103 = arith.constant 1.000000e+00 : f32
    %818 = vector.broadcast %cst_103 : f32 to vector<2x16xf32>
    %819 = arith.addf %818, %817 : vector<2x16xf32>
    %820 = arith.divf %818, %819 : vector<2x16xf32>
    %821 = vector.extract_strided_slice %801 {offsets = [0, 32], sizes = [2, 16], strides = [1, 1]} : vector<2x48xf32> to vector<2x16xf32>
    %822 = vector.extract_strided_slice %804 {offsets = [0, 32], sizes = [2, 16], strides = [1, 1]} : vector<2x48xf32> to vector<2x16xf32>
    %823 = arith.mulf %812, %822 : vector<2x16xf32>
    %824 = arith.addf %821, %823 : vector<2x16xf32>
    %825 = math.tanh %824 : vector<2x16xf32>
    %cst_104 = arith.constant 1.000000e+00 : f32
    %826 = vector.broadcast %cst_104 : f32 to vector<2x16xf32>
    %827 = arith.subf %826, %820 : vector<2x16xf32>
    %828 = arith.mulf %827, %825 : vector<2x16xf32>
    %829 = arith.mulf %820, %800 : vector<2x16xf32>
    %830 = arith.addf %828, %829 : vector<2x16xf32>
    %831 = vector.extract_strided_slice %12 {offsets = [42, 0], sizes = [2, 48], strides = [1, 1]} : vector<48x48xf32> to vector<2x48xf32>
    %cst_105 = arith.constant dense<0.000000e+00> : vector<2x48xf32>
    %832 = tpu.matmul %830, %13, %cst_105 {dimension_numbers = #tpu.dot_dimension_numbers<[1], [0], [0], [1], [0, 0, 1, 1], [], []>} : vector<2x16xf32>, vector<16x48xf32>, vector<2x48xf32> -> vector<2x48xf32>
    %833 = vector.broadcast %14 : vector<1x48xf32> to vector<2x48xf32>
    %834 = arith.addf %832, %833 : vector<2x48xf32>
    %835 = vector.extract_strided_slice %831 {offsets = [0, 0], sizes = [2, 16], strides = [1, 1]} : vector<2x48xf32> to vector<2x16xf32>
    %836 = vector.extract_strided_slice %834 {offsets = [0, 0], sizes = [2, 16], strides = [1, 1]} : vector<2x48xf32> to vector<2x16xf32>
    %837 = arith.addf %835, %836 : vector<2x16xf32>
    %838 = arith.negf %837 : vector<2x16xf32>
    %839 = math.exp %838 : vector<2x16xf32>
    %cst_106 = arith.constant 1.000000e+00 : f32
    %840 = vector.broadcast %cst_106 : f32 to vector<2x16xf32>
    %841 = arith.addf %840, %839 : vector<2x16xf32>
    %842 = arith.divf %840, %841 : vector<2x16xf32>
    %843 = vector.extract_strided_slice %831 {offsets = [0, 16], sizes = [2, 16], strides = [1, 1]} : vector<2x48xf32> to vector<2x16xf32>
    %844 = vector.extract_strided_slice %834 {offsets = [0, 16], sizes = [2, 16], strides = [1, 1]} : vector<2x48xf32> to vector<2x16xf32>
    %845 = arith.addf %843, %844 : vector<2x16xf32>
    %846 = arith.negf %845 : vector<2x16xf32>
    %847 = math.exp %846 : vector<2x16xf32>
    %cst_107 = arith.constant 1.000000e+00 : f32
    %848 = vector.broadcast %cst_107 : f32 to vector<2x16xf32>
    %849 = arith.addf %848, %847 : vector<2x16xf32>
    %850 = arith.divf %848, %849 : vector<2x16xf32>
    %851 = vector.extract_strided_slice %831 {offsets = [0, 32], sizes = [2, 16], strides = [1, 1]} : vector<2x48xf32> to vector<2x16xf32>
    %852 = vector.extract_strided_slice %834 {offsets = [0, 32], sizes = [2, 16], strides = [1, 1]} : vector<2x48xf32> to vector<2x16xf32>
    %853 = arith.mulf %842, %852 : vector<2x16xf32>
    %854 = arith.addf %851, %853 : vector<2x16xf32>
    %855 = math.tanh %854 : vector<2x16xf32>
    %cst_108 = arith.constant 1.000000e+00 : f32
    %856 = vector.broadcast %cst_108 : f32 to vector<2x16xf32>
    %857 = arith.subf %856, %850 : vector<2x16xf32>
    %858 = arith.mulf %857, %855 : vector<2x16xf32>
    %859 = arith.mulf %850, %830 : vector<2x16xf32>
    %860 = arith.addf %858, %859 : vector<2x16xf32>
    %861 = vector.extract_strided_slice %12 {offsets = [44, 0], sizes = [2, 48], strides = [1, 1]} : vector<48x48xf32> to vector<2x48xf32>
    %cst_109 = arith.constant dense<0.000000e+00> : vector<2x48xf32>
    %862 = tpu.matmul %860, %13, %cst_109 {dimension_numbers = #tpu.dot_dimension_numbers<[1], [0], [0], [1], [0, 0, 1, 1], [], []>} : vector<2x16xf32>, vector<16x48xf32>, vector<2x48xf32> -> vector<2x48xf32>
    %863 = vector.broadcast %14 : vector<1x48xf32> to vector<2x48xf32>
    %864 = arith.addf %862, %863 : vector<2x48xf32>
    %865 = vector.extract_strided_slice %861 {offsets = [0, 0], sizes = [2, 16], strides = [1, 1]} : vector<2x48xf32> to vector<2x16xf32>
    %866 = vector.extract_strided_slice %864 {offsets = [0, 0], sizes = [2, 16], strides = [1, 1]} : vector<2x48xf32> to vector<2x16xf32>
    %867 = arith.addf %865, %866 : vector<2x16xf32>
    %868 = arith.negf %867 : vector<2x16xf32>
    %869 = math.exp %868 : vector<2x16xf32>
    %cst_110 = arith.constant 1.000000e+00 : f32
    %870 = vector.broadcast %cst_110 : f32 to vector<2x16xf32>
    %871 = arith.addf %870, %869 : vector<2x16xf32>
    %872 = arith.divf %870, %871 : vector<2x16xf32>
    %873 = vector.extract_strided_slice %861 {offsets = [0, 16], sizes = [2, 16], strides = [1, 1]} : vector<2x48xf32> to vector<2x16xf32>
    %874 = vector.extract_strided_slice %864 {offsets = [0, 16], sizes = [2, 16], strides = [1, 1]} : vector<2x48xf32> to vector<2x16xf32>
    %875 = arith.addf %873, %874 : vector<2x16xf32>
    %876 = arith.negf %875 : vector<2x16xf32>
    %877 = math.exp %876 : vector<2x16xf32>
    %cst_111 = arith.constant 1.000000e+00 : f32
    %878 = vector.broadcast %cst_111 : f32 to vector<2x16xf32>
    %879 = arith.addf %878, %877 : vector<2x16xf32>
    %880 = arith.divf %878, %879 : vector<2x16xf32>
    %881 = vector.extract_strided_slice %861 {offsets = [0, 32], sizes = [2, 16], strides = [1, 1]} : vector<2x48xf32> to vector<2x16xf32>
    %882 = vector.extract_strided_slice %864 {offsets = [0, 32], sizes = [2, 16], strides = [1, 1]} : vector<2x48xf32> to vector<2x16xf32>
    %883 = arith.mulf %872, %882 : vector<2x16xf32>
    %884 = arith.addf %881, %883 : vector<2x16xf32>
    %885 = math.tanh %884 : vector<2x16xf32>
    %cst_112 = arith.constant 1.000000e+00 : f32
    %886 = vector.broadcast %cst_112 : f32 to vector<2x16xf32>
    %887 = arith.subf %886, %880 : vector<2x16xf32>
    %888 = arith.mulf %887, %885 : vector<2x16xf32>
    %889 = arith.mulf %880, %860 : vector<2x16xf32>
    %890 = arith.addf %888, %889 : vector<2x16xf32>
    %891 = vector.extract_strided_slice %12 {offsets = [46, 0], sizes = [2, 48], strides = [1, 1]} : vector<48x48xf32> to vector<2x48xf32>
    %cst_113 = arith.constant dense<0.000000e+00> : vector<2x48xf32>
    %892 = tpu.matmul %890, %13, %cst_113 {dimension_numbers = #tpu.dot_dimension_numbers<[1], [0], [0], [1], [0, 0, 1, 1], [], []>} : vector<2x16xf32>, vector<16x48xf32>, vector<2x48xf32> -> vector<2x48xf32>
    %893 = vector.broadcast %14 : vector<1x48xf32> to vector<2x48xf32>
    %894 = arith.addf %892, %893 : vector<2x48xf32>
    %895 = vector.extract_strided_slice %891 {offsets = [0, 0], sizes = [2, 16], strides = [1, 1]} : vector<2x48xf32> to vector<2x16xf32>
    %896 = vector.extract_strided_slice %894 {offsets = [0, 0], sizes = [2, 16], strides = [1, 1]} : vector<2x48xf32> to vector<2x16xf32>
    %897 = arith.addf %895, %896 : vector<2x16xf32>
    %898 = arith.negf %897 : vector<2x16xf32>
    %899 = math.exp %898 : vector<2x16xf32>
    %cst_114 = arith.constant 1.000000e+00 : f32
    %900 = vector.broadcast %cst_114 : f32 to vector<2x16xf32>
    %901 = arith.addf %900, %899 : vector<2x16xf32>
    %902 = arith.divf %900, %901 : vector<2x16xf32>
    %903 = vector.extract_strided_slice %891 {offsets = [0, 16], sizes = [2, 16], strides = [1, 1]} : vector<2x48xf32> to vector<2x16xf32>
    %904 = vector.extract_strided_slice %894 {offsets = [0, 16], sizes = [2, 16], strides = [1, 1]} : vector<2x48xf32> to vector<2x16xf32>
    %905 = arith.addf %903, %904 : vector<2x16xf32>
    %906 = arith.negf %905 : vector<2x16xf32>
    %907 = math.exp %906 : vector<2x16xf32>
    %cst_115 = arith.constant 1.000000e+00 : f32
    %908 = vector.broadcast %cst_115 : f32 to vector<2x16xf32>
    %909 = arith.addf %908, %907 : vector<2x16xf32>
    %910 = arith.divf %908, %909 : vector<2x16xf32>
    %911 = vector.extract_strided_slice %891 {offsets = [0, 32], sizes = [2, 16], strides = [1, 1]} : vector<2x48xf32> to vector<2x16xf32>
    %912 = vector.extract_strided_slice %894 {offsets = [0, 32], sizes = [2, 16], strides = [1, 1]} : vector<2x48xf32> to vector<2x16xf32>
    %913 = arith.mulf %902, %912 : vector<2x16xf32>
    %914 = arith.addf %911, %913 : vector<2x16xf32>
    %915 = math.tanh %914 : vector<2x16xf32>
    %cst_116 = arith.constant 1.000000e+00 : f32
    %916 = vector.broadcast %cst_116 : f32 to vector<2x16xf32>
    %917 = arith.subf %916, %910 : vector<2x16xf32>
    %918 = arith.mulf %917, %915 : vector<2x16xf32>
    %919 = arith.mulf %910, %890 : vector<2x16xf32>
    %920 = arith.addf %918, %919 : vector<2x16xf32>
    %921 = vector.extract_strided_slice %710 {offsets = [0, 0], sizes = [2, 8], strides = [1, 1]} : vector<2x16xf32> to vector<2x8xf32>
    %922 = vector.extract_strided_slice %920 {offsets = [0, 8], sizes = [2, 8], strides = [1, 1]} : vector<2x16xf32> to vector<2x8xf32>
    %923 = tpu.concatenate %921, %922 in 1 : vector<2x8xf32>, vector<2x8xf32> -> vector<2x16xf32>
    %924 = vector.extract_strided_slice %740 {offsets = [0, 0], sizes = [2, 8], strides = [1, 1]} : vector<2x16xf32> to vector<2x8xf32>
    %925 = vector.extract_strided_slice %890 {offsets = [0, 8], sizes = [2, 8], strides = [1, 1]} : vector<2x16xf32> to vector<2x8xf32>
    %926 = tpu.concatenate %924, %925 in 1 : vector<2x8xf32>, vector<2x8xf32> -> vector<2x16xf32>
    %927 = vector.extract_strided_slice %770 {offsets = [0, 0], sizes = [2, 8], strides = [1, 1]} : vector<2x16xf32> to vector<2x8xf32>
    %928 = vector.extract_strided_slice %860 {offsets = [0, 8], sizes = [2, 8], strides = [1, 1]} : vector<2x16xf32> to vector<2x8xf32>
    %929 = tpu.concatenate %927, %928 in 1 : vector<2x8xf32>, vector<2x8xf32> -> vector<2x16xf32>
    %930 = vector.extract_strided_slice %800 {offsets = [0, 0], sizes = [2, 8], strides = [1, 1]} : vector<2x16xf32> to vector<2x8xf32>
    %931 = vector.extract_strided_slice %830 {offsets = [0, 8], sizes = [2, 8], strides = [1, 1]} : vector<2x16xf32> to vector<2x8xf32>
    %932 = tpu.concatenate %930, %931 in 1 : vector<2x8xf32>, vector<2x8xf32> -> vector<2x16xf32>
    %933 = vector.extract_strided_slice %830 {offsets = [0, 0], sizes = [2, 8], strides = [1, 1]} : vector<2x16xf32> to vector<2x8xf32>
    %934 = vector.extract_strided_slice %800 {offsets = [0, 8], sizes = [2, 8], strides = [1, 1]} : vector<2x16xf32> to vector<2x8xf32>
    %935 = tpu.concatenate %933, %934 in 1 : vector<2x8xf32>, vector<2x8xf32> -> vector<2x16xf32>
    %936 = vector.extract_strided_slice %860 {offsets = [0, 0], sizes = [2, 8], strides = [1, 1]} : vector<2x16xf32> to vector<2x8xf32>
    %937 = vector.extract_strided_slice %770 {offsets = [0, 8], sizes = [2, 8], strides = [1, 1]} : vector<2x16xf32> to vector<2x8xf32>
    %938 = tpu.concatenate %936, %937 in 1 : vector<2x8xf32>, vector<2x8xf32> -> vector<2x16xf32>
    %939 = vector.extract_strided_slice %890 {offsets = [0, 0], sizes = [2, 8], strides = [1, 1]} : vector<2x16xf32> to vector<2x8xf32>
    %940 = vector.extract_strided_slice %740 {offsets = [0, 8], sizes = [2, 8], strides = [1, 1]} : vector<2x16xf32> to vector<2x8xf32>
    %941 = tpu.concatenate %939, %940 in 1 : vector<2x8xf32>, vector<2x8xf32> -> vector<2x16xf32>
    %942 = vector.extract_strided_slice %920 {offsets = [0, 0], sizes = [2, 8], strides = [1, 1]} : vector<2x16xf32> to vector<2x8xf32>
    %943 = vector.extract_strided_slice %710 {offsets = [0, 8], sizes = [2, 8], strides = [1, 1]} : vector<2x16xf32> to vector<2x8xf32>
    %944 = tpu.concatenate %942, %943 in 1 : vector<2x8xf32>, vector<2x8xf32> -> vector<2x16xf32>
    %945 = tpu.concatenate %923, %926, %929, %932, %935, %938, %941, %944 in 0 : vector<2x16xf32>, vector<2x16xf32>, vector<2x16xf32>, vector<2x16xf32>, vector<2x16xf32>, vector<2x16xf32>, vector<2x16xf32>, vector<2x16xf32> -> vector<16x16xf32>
    %cst_117 = arith.constant dense<0.000000e+00> : vector<16x16xf32>
    %946 = tpu.matmul %945, %15, %cst_117 {dimension_numbers = #tpu.dot_dimension_numbers<[1], [0], [0], [1], [0, 0, 1, 1], [], []>} : vector<16x16xf32>, vector<16x16xf32>, vector<16x16xf32> -> vector<16x16xf32>
    %947 = vector.broadcast %16 : vector<1x16xf32> to vector<16x16xf32>
    %948 = arith.addf %946, %947 : vector<16x16xf32>
    %949 = math.tanh %948 : vector<16x16xf32>
    %950 = vector.broadcast %17 : vector<1x16xf32> to vector<16x16xf32>
    %951 = arith.mulf %949, %950 : vector<16x16xf32>
    %cst_118 = arith.constant dense<0.000000e+00> : vector<16xf32>
    %952 = vector.multi_reduction <add>, %951, %cst_118 [1] : vector<16x16xf32> to vector<16xf32>
    %953 = vector.shape_cast %952 : vector<16xf32> to vector<16x1xf32>
    %954 = vector.extract_strided_slice %953 {offsets = [0, 0], sizes = [2, 1], strides = [1, 1]} : vector<16x1xf32> to vector<2x1xf32>
    %955 = vector.extract_strided_slice %953 {offsets = [2, 0], sizes = [2, 1], strides = [1, 1]} : vector<16x1xf32> to vector<2x1xf32>
    %956 = vector.extract_strided_slice %953 {offsets = [4, 0], sizes = [2, 1], strides = [1, 1]} : vector<16x1xf32> to vector<2x1xf32>
    %957 = vector.extract_strided_slice %953 {offsets = [6, 0], sizes = [2, 1], strides = [1, 1]} : vector<16x1xf32> to vector<2x1xf32>
    %958 = vector.extract_strided_slice %953 {offsets = [8, 0], sizes = [2, 1], strides = [1, 1]} : vector<16x1xf32> to vector<2x1xf32>
    %959 = vector.extract_strided_slice %953 {offsets = [10, 0], sizes = [2, 1], strides = [1, 1]} : vector<16x1xf32> to vector<2x1xf32>
    %960 = vector.extract_strided_slice %953 {offsets = [12, 0], sizes = [2, 1], strides = [1, 1]} : vector<16x1xf32> to vector<2x1xf32>
    %961 = vector.extract_strided_slice %953 {offsets = [14, 0], sizes = [2, 1], strides = [1, 1]} : vector<16x1xf32> to vector<2x1xf32>
    %962 = tpu.concatenate %954, %955, %956, %957, %958, %959, %960, %961 in 1 : vector<2x1xf32>, vector<2x1xf32>, vector<2x1xf32>, vector<2x1xf32>, vector<2x1xf32>, vector<2x1xf32>, vector<2x1xf32>, vector<2x1xf32> -> vector<2x8xf32>
    %cst_119 = arith.constant dense<0xFF800000> : vector<2xf32>
    %963 = vector.multi_reduction <maximumf>, %962, %cst_119 [1] : vector<2x8xf32> to vector<2xf32>
    %964 = vector.shape_cast %963 : vector<2xf32> to vector<2x1xf32>
    %965 = vector.broadcast %964 : vector<2x1xf32> to vector<2x8xf32>
    %966 = arith.subf %962, %965 : vector<2x8xf32>
    %967 = math.exp %966 : vector<2x8xf32>
    %cst_120 = arith.constant dense<0.000000e+00> : vector<2xf32>
    %968 = vector.multi_reduction <add>, %967, %cst_120 [1] : vector<2x8xf32> to vector<2xf32>
    %969 = vector.shape_cast %968 : vector<2xf32> to vector<2x1xf32>
    %970 = tpu.reciprocal %969 {approx = true} : vector<2x1xf32> -> vector<2x1xf32>
    %971 = vector.broadcast %970 : vector<2x1xf32> to vector<2x8xf32>
    %972 = arith.mulf %967, %971 : vector<2x8xf32>
    %973 = vector.extract_strided_slice %972 {offsets = [0, 0], sizes = [2, 1], strides = [1, 1]} : vector<2x8xf32> to vector<2x1xf32>
    %974 = vector.broadcast %973 : vector<2x1xf32> to vector<2x16xf32>
    %975 = arith.mulf %923, %974 : vector<2x16xf32>
    %976 = vector.extract_strided_slice %972 {offsets = [0, 1], sizes = [2, 1], strides = [1, 1]} : vector<2x8xf32> to vector<2x1xf32>
    %977 = vector.broadcast %976 : vector<2x1xf32> to vector<2x16xf32>
    %978 = arith.mulf %926, %977 : vector<2x16xf32>
    %979 = arith.addf %975, %978 : vector<2x16xf32>
    %980 = arith.maximumf %923, %926 : vector<2x16xf32>
    %981 = vector.extract_strided_slice %972 {offsets = [0, 2], sizes = [2, 1], strides = [1, 1]} : vector<2x8xf32> to vector<2x1xf32>
    %982 = vector.broadcast %981 : vector<2x1xf32> to vector<2x16xf32>
    %983 = arith.mulf %929, %982 : vector<2x16xf32>
    %984 = arith.addf %979, %983 : vector<2x16xf32>
    %985 = arith.maximumf %980, %929 : vector<2x16xf32>
    %986 = vector.extract_strided_slice %972 {offsets = [0, 3], sizes = [2, 1], strides = [1, 1]} : vector<2x8xf32> to vector<2x1xf32>
    %987 = vector.broadcast %986 : vector<2x1xf32> to vector<2x16xf32>
    %988 = arith.mulf %932, %987 : vector<2x16xf32>
    %989 = arith.addf %984, %988 : vector<2x16xf32>
    %990 = arith.maximumf %985, %932 : vector<2x16xf32>
    %991 = vector.extract_strided_slice %972 {offsets = [0, 4], sizes = [2, 1], strides = [1, 1]} : vector<2x8xf32> to vector<2x1xf32>
    %992 = vector.broadcast %991 : vector<2x1xf32> to vector<2x16xf32>
    %993 = arith.mulf %935, %992 : vector<2x16xf32>
    %994 = arith.addf %989, %993 : vector<2x16xf32>
    %995 = arith.maximumf %990, %935 : vector<2x16xf32>
    %996 = vector.extract_strided_slice %972 {offsets = [0, 5], sizes = [2, 1], strides = [1, 1]} : vector<2x8xf32> to vector<2x1xf32>
    %997 = vector.broadcast %996 : vector<2x1xf32> to vector<2x16xf32>
    %998 = arith.mulf %938, %997 : vector<2x16xf32>
    %999 = arith.addf %994, %998 : vector<2x16xf32>
    %1000 = arith.maximumf %995, %938 : vector<2x16xf32>
    %1001 = vector.extract_strided_slice %972 {offsets = [0, 6], sizes = [2, 1], strides = [1, 1]} : vector<2x8xf32> to vector<2x1xf32>
    %1002 = vector.broadcast %1001 : vector<2x1xf32> to vector<2x16xf32>
    %1003 = arith.mulf %941, %1002 : vector<2x16xf32>
    %1004 = arith.addf %999, %1003 : vector<2x16xf32>
    %1005 = arith.maximumf %1000, %941 : vector<2x16xf32>
    %1006 = vector.extract_strided_slice %972 {offsets = [0, 7], sizes = [2, 1], strides = [1, 1]} : vector<2x8xf32> to vector<2x1xf32>
    %1007 = vector.broadcast %1006 : vector<2x1xf32> to vector<2x16xf32>
    %1008 = arith.mulf %944, %1007 : vector<2x16xf32>
    %1009 = arith.addf %1004, %1008 : vector<2x16xf32>
    %1010 = arith.maximumf %1005, %944 : vector<2x16xf32>
    %1011 = tpu.concatenate %1010, %1009 in 1 : vector<2x16xf32>, vector<2x16xf32> -> vector<2x32xf32>
    %1012 = tpu.concatenate %349, %680, %1011 in 0 : vector<2x32xf32>, vector<2x32xf32>, vector<2x32xf32> -> vector<6x32xf32>
    %1013 = tpu.concatenate %1011, %680, %349 in 0 : vector<2x32xf32>, vector<2x32xf32>, vector<2x32xf32> -> vector<6x32xf32>
    %c248 = arith.constant 248 : index
    %c0_121 = arith.constant 0 : index
    %1014 = vector.load %arg0[%c248, %c0_121] : memref<456x128xf32, #tpu.memory_space<vmem>>, vector<32x48xf32>
    %cst_122 = arith.constant dense<0.000000e+00> : vector<6x48xf32>
    %1015 = tpu.matmul %1012, %1014, %cst_122 {dimension_numbers = #tpu.dot_dimension_numbers<[1], [0], [0], [1], [0, 0, 1, 1], [], []>} : vector<6x32xf32>, vector<32x48xf32>, vector<6x48xf32> -> vector<6x48xf32>
    %c280 = arith.constant 280 : index
    %c0_123 = arith.constant 0 : index
    %1016 = vector.load %arg0[%c280, %c0_123] : memref<456x128xf32, #tpu.memory_space<vmem>>, vector<32x48xf32>
    %cst_124 = arith.constant dense<0.000000e+00> : vector<6x48xf32>
    %1017 = tpu.matmul %1013, %1016, %cst_124 {dimension_numbers = #tpu.dot_dimension_numbers<[1], [0], [0], [1], [0, 0, 1, 1], [], []>} : vector<6x32xf32>, vector<32x48xf32>, vector<6x48xf32> -> vector<6x48xf32>
    %1018 = arith.addf %1015, %1017 : vector<6x48xf32>
    %c328 = arith.constant 328 : index
    %c0_125 = arith.constant 0 : index
    %1019 = vector.load %arg0[%c328, %c0_125] : memref<456x128xf32, #tpu.memory_space<vmem>>, vector<1x48xf32>
    %1020 = vector.broadcast %1019 : vector<1x48xf32> to vector<6x48xf32>
    %1021 = arith.addf %1018, %1020 : vector<6x48xf32>
    %c312 = arith.constant 312 : index
    %c0_126 = arith.constant 0 : index
    %1022 = vector.load %arg0[%c312, %c0_126] : memref<456x128xf32, #tpu.memory_space<vmem>>, vector<16x48xf32>
    %c336 = arith.constant 336 : index
    %c0_127 = arith.constant 0 : index
    %1023 = vector.load %arg0[%c336, %c0_127] : memref<456x128xf32, #tpu.memory_space<vmem>>, vector<1x48xf32>
    %c448 = arith.constant 448 : index
    %c0_128 = arith.constant 0 : index
    %1024 = vector.load %arg0[%c448, %c0_128] : memref<456x128xf32, #tpu.memory_space<vmem>>, vector<2x16xf32>
    %1025 = vector.extract_strided_slice %1021 {offsets = [0, 0], sizes = [2, 48], strides = [1, 1]} : vector<6x48xf32> to vector<2x48xf32>
    %cst_129 = arith.constant dense<0.000000e+00> : vector<2x48xf32>
    %1026 = tpu.matmul %1024, %1022, %cst_129 {dimension_numbers = #tpu.dot_dimension_numbers<[1], [0], [0], [1], [0, 0, 1, 1], [], []>} : vector<2x16xf32>, vector<16x48xf32>, vector<2x48xf32> -> vector<2x48xf32>
    %1027 = vector.broadcast %1023 : vector<1x48xf32> to vector<2x48xf32>
    %1028 = arith.addf %1026, %1027 : vector<2x48xf32>
    %1029 = vector.extract_strided_slice %1025 {offsets = [0, 0], sizes = [2, 16], strides = [1, 1]} : vector<2x48xf32> to vector<2x16xf32>
    %1030 = vector.extract_strided_slice %1028 {offsets = [0, 0], sizes = [2, 16], strides = [1, 1]} : vector<2x48xf32> to vector<2x16xf32>
    %1031 = arith.addf %1029, %1030 : vector<2x16xf32>
    %1032 = arith.negf %1031 : vector<2x16xf32>
    %1033 = math.exp %1032 : vector<2x16xf32>
    %cst_130 = arith.constant 1.000000e+00 : f32
    %1034 = vector.broadcast %cst_130 : f32 to vector<2x16xf32>
    %1035 = arith.addf %1034, %1033 : vector<2x16xf32>
    %1036 = arith.divf %1034, %1035 : vector<2x16xf32>
    %1037 = vector.extract_strided_slice %1025 {offsets = [0, 16], sizes = [2, 16], strides = [1, 1]} : vector<2x48xf32> to vector<2x16xf32>
    %1038 = vector.extract_strided_slice %1028 {offsets = [0, 16], sizes = [2, 16], strides = [1, 1]} : vector<2x48xf32> to vector<2x16xf32>
    %1039 = arith.addf %1037, %1038 : vector<2x16xf32>
    %1040 = arith.negf %1039 : vector<2x16xf32>
    %1041 = math.exp %1040 : vector<2x16xf32>
    %cst_131 = arith.constant 1.000000e+00 : f32
    %1042 = vector.broadcast %cst_131 : f32 to vector<2x16xf32>
    %1043 = arith.addf %1042, %1041 : vector<2x16xf32>
    %1044 = arith.divf %1042, %1043 : vector<2x16xf32>
    %1045 = vector.extract_strided_slice %1025 {offsets = [0, 32], sizes = [2, 16], strides = [1, 1]} : vector<2x48xf32> to vector<2x16xf32>
    %1046 = vector.extract_strided_slice %1028 {offsets = [0, 32], sizes = [2, 16], strides = [1, 1]} : vector<2x48xf32> to vector<2x16xf32>
    %1047 = arith.mulf %1036, %1046 : vector<2x16xf32>
    %1048 = arith.addf %1045, %1047 : vector<2x16xf32>
    %1049 = math.tanh %1048 : vector<2x16xf32>
    %cst_132 = arith.constant 1.000000e+00 : f32
    %1050 = vector.broadcast %cst_132 : f32 to vector<2x16xf32>
    %1051 = arith.subf %1050, %1044 : vector<2x16xf32>
    %1052 = arith.mulf %1051, %1049 : vector<2x16xf32>
    %1053 = arith.mulf %1044, %1024 : vector<2x16xf32>
    %1054 = arith.addf %1052, %1053 : vector<2x16xf32>
    %1055 = vector.extract_strided_slice %1021 {offsets = [2, 0], sizes = [2, 48], strides = [1, 1]} : vector<6x48xf32> to vector<2x48xf32>
    %cst_133 = arith.constant dense<0.000000e+00> : vector<2x48xf32>
    %1056 = tpu.matmul %1054, %1022, %cst_133 {dimension_numbers = #tpu.dot_dimension_numbers<[1], [0], [0], [1], [0, 0, 1, 1], [], []>} : vector<2x16xf32>, vector<16x48xf32>, vector<2x48xf32> -> vector<2x48xf32>
    %1057 = vector.broadcast %1023 : vector<1x48xf32> to vector<2x48xf32>
    %1058 = arith.addf %1056, %1057 : vector<2x48xf32>
    %1059 = vector.extract_strided_slice %1055 {offsets = [0, 0], sizes = [2, 16], strides = [1, 1]} : vector<2x48xf32> to vector<2x16xf32>
    %1060 = vector.extract_strided_slice %1058 {offsets = [0, 0], sizes = [2, 16], strides = [1, 1]} : vector<2x48xf32> to vector<2x16xf32>
    %1061 = arith.addf %1059, %1060 : vector<2x16xf32>
    %1062 = arith.negf %1061 : vector<2x16xf32>
    %1063 = math.exp %1062 : vector<2x16xf32>
    %cst_134 = arith.constant 1.000000e+00 : f32
    %1064 = vector.broadcast %cst_134 : f32 to vector<2x16xf32>
    %1065 = arith.addf %1064, %1063 : vector<2x16xf32>
    %1066 = arith.divf %1064, %1065 : vector<2x16xf32>
    %1067 = vector.extract_strided_slice %1055 {offsets = [0, 16], sizes = [2, 16], strides = [1, 1]} : vector<2x48xf32> to vector<2x16xf32>
    %1068 = vector.extract_strided_slice %1058 {offsets = [0, 16], sizes = [2, 16], strides = [1, 1]} : vector<2x48xf32> to vector<2x16xf32>
    %1069 = arith.addf %1067, %1068 : vector<2x16xf32>
    %1070 = arith.negf %1069 : vector<2x16xf32>
    %1071 = math.exp %1070 : vector<2x16xf32>
    %cst_135 = arith.constant 1.000000e+00 : f32
    %1072 = vector.broadcast %cst_135 : f32 to vector<2x16xf32>
    %1073 = arith.addf %1072, %1071 : vector<2x16xf32>
    %1074 = arith.divf %1072, %1073 : vector<2x16xf32>
    %1075 = vector.extract_strided_slice %1055 {offsets = [0, 32], sizes = [2, 16], strides = [1, 1]} : vector<2x48xf32> to vector<2x16xf32>
    %1076 = vector.extract_strided_slice %1058 {offsets = [0, 32], sizes = [2, 16], strides = [1, 1]} : vector<2x48xf32> to vector<2x16xf32>
    %1077 = arith.mulf %1066, %1076 : vector<2x16xf32>
    %1078 = arith.addf %1075, %1077 : vector<2x16xf32>
    %1079 = math.tanh %1078 : vector<2x16xf32>
    %cst_136 = arith.constant 1.000000e+00 : f32
    %1080 = vector.broadcast %cst_136 : f32 to vector<2x16xf32>
    %1081 = arith.subf %1080, %1074 : vector<2x16xf32>
    %1082 = arith.mulf %1081, %1079 : vector<2x16xf32>
    %1083 = arith.mulf %1074, %1054 : vector<2x16xf32>
    %1084 = arith.addf %1082, %1083 : vector<2x16xf32>
    %1085 = vector.extract_strided_slice %1021 {offsets = [4, 0], sizes = [2, 48], strides = [1, 1]} : vector<6x48xf32> to vector<2x48xf32>
    %cst_137 = arith.constant dense<0.000000e+00> : vector<2x48xf32>
    %1086 = tpu.matmul %1084, %1022, %cst_137 {dimension_numbers = #tpu.dot_dimension_numbers<[1], [0], [0], [1], [0, 0, 1, 1], [], []>} : vector<2x16xf32>, vector<16x48xf32>, vector<2x48xf32> -> vector<2x48xf32>
    %1087 = vector.broadcast %1023 : vector<1x48xf32> to vector<2x48xf32>
    %1088 = arith.addf %1086, %1087 : vector<2x48xf32>
    %1089 = vector.extract_strided_slice %1085 {offsets = [0, 0], sizes = [2, 16], strides = [1, 1]} : vector<2x48xf32> to vector<2x16xf32>
    %1090 = vector.extract_strided_slice %1088 {offsets = [0, 0], sizes = [2, 16], strides = [1, 1]} : vector<2x48xf32> to vector<2x16xf32>
    %1091 = arith.addf %1089, %1090 : vector<2x16xf32>
    %1092 = arith.negf %1091 : vector<2x16xf32>
    %1093 = math.exp %1092 : vector<2x16xf32>
    %cst_138 = arith.constant 1.000000e+00 : f32
    %1094 = vector.broadcast %cst_138 : f32 to vector<2x16xf32>
    %1095 = arith.addf %1094, %1093 : vector<2x16xf32>
    %1096 = arith.divf %1094, %1095 : vector<2x16xf32>
    %1097 = vector.extract_strided_slice %1085 {offsets = [0, 16], sizes = [2, 16], strides = [1, 1]} : vector<2x48xf32> to vector<2x16xf32>
    %1098 = vector.extract_strided_slice %1088 {offsets = [0, 16], sizes = [2, 16], strides = [1, 1]} : vector<2x48xf32> to vector<2x16xf32>
    %1099 = arith.addf %1097, %1098 : vector<2x16xf32>
    %1100 = arith.negf %1099 : vector<2x16xf32>
    %1101 = math.exp %1100 : vector<2x16xf32>
    %cst_139 = arith.constant 1.000000e+00 : f32
    %1102 = vector.broadcast %cst_139 : f32 to vector<2x16xf32>
    %1103 = arith.addf %1102, %1101 : vector<2x16xf32>
    %1104 = arith.divf %1102, %1103 : vector<2x16xf32>
    %1105 = vector.extract_strided_slice %1085 {offsets = [0, 32], sizes = [2, 16], strides = [1, 1]} : vector<2x48xf32> to vector<2x16xf32>
    %1106 = vector.extract_strided_slice %1088 {offsets = [0, 32], sizes = [2, 16], strides = [1, 1]} : vector<2x48xf32> to vector<2x16xf32>
    %1107 = arith.mulf %1096, %1106 : vector<2x16xf32>
    %1108 = arith.addf %1105, %1107 : vector<2x16xf32>
    %1109 = math.tanh %1108 : vector<2x16xf32>
    %cst_140 = arith.constant 1.000000e+00 : f32
    %1110 = vector.broadcast %cst_140 : f32 to vector<2x16xf32>
    %1111 = arith.subf %1110, %1104 : vector<2x16xf32>
    %1112 = arith.mulf %1111, %1109 : vector<2x16xf32>
    %1113 = arith.mulf %1104, %1084 : vector<2x16xf32>
    %1114 = arith.addf %1112, %1113 : vector<2x16xf32>
    %1115 = vector.extract_strided_slice %1054 {offsets = [0, 0], sizes = [2, 8], strides = [1, 1]} : vector<2x16xf32> to vector<2x8xf32>
    %1116 = vector.extract_strided_slice %1114 {offsets = [0, 8], sizes = [2, 8], strides = [1, 1]} : vector<2x16xf32> to vector<2x8xf32>
    %1117 = tpu.concatenate %1115, %1116 in 1 : vector<2x8xf32>, vector<2x8xf32> -> vector<2x16xf32>
    %1118 = vector.extract_strided_slice %1084 {offsets = [0, 0], sizes = [2, 8], strides = [1, 1]} : vector<2x16xf32> to vector<2x8xf32>
    %1119 = vector.extract_strided_slice %1084 {offsets = [0, 8], sizes = [2, 8], strides = [1, 1]} : vector<2x16xf32> to vector<2x8xf32>
    %1120 = tpu.concatenate %1118, %1119 in 1 : vector<2x8xf32>, vector<2x8xf32> -> vector<2x16xf32>
    %1121 = vector.extract_strided_slice %1114 {offsets = [0, 0], sizes = [2, 8], strides = [1, 1]} : vector<2x16xf32> to vector<2x8xf32>
    %1122 = vector.extract_strided_slice %1054 {offsets = [0, 8], sizes = [2, 8], strides = [1, 1]} : vector<2x16xf32> to vector<2x8xf32>
    %1123 = tpu.concatenate %1121, %1122 in 1 : vector<2x8xf32>, vector<2x8xf32> -> vector<2x16xf32>
    %1124 = tpu.concatenate %1117, %1120, %1123 in 0 : vector<2x16xf32>, vector<2x16xf32>, vector<2x16xf32> -> vector<6x16xf32>
    %c344 = arith.constant 344 : index
    %c0_141 = arith.constant 0 : index
    %1125 = vector.load %arg0[%c344, %c0_141] : memref<456x128xf32, #tpu.memory_space<vmem>>, vector<16x16xf32>
    %cst_142 = arith.constant dense<0.000000e+00> : vector<6x16xf32>
    %1126 = tpu.matmul %1124, %1125, %cst_142 {dimension_numbers = #tpu.dot_dimension_numbers<[1], [0], [0], [1], [0, 0, 1, 1], [], []>} : vector<6x16xf32>, vector<16x16xf32>, vector<6x16xf32> -> vector<6x16xf32>
    %c360 = arith.constant 360 : index
    %c0_143 = arith.constant 0 : index
    %1127 = vector.load %arg0[%c360, %c0_143] : memref<456x128xf32, #tpu.memory_space<vmem>>, vector<1x16xf32>
    %1128 = vector.broadcast %1127 : vector<1x16xf32> to vector<6x16xf32>
    %1129 = arith.addf %1126, %1128 : vector<6x16xf32>
    %1130 = math.tanh %1129 : vector<6x16xf32>
    %c368 = arith.constant 368 : index
    %c0_144 = arith.constant 0 : index
    %1131 = vector.load %arg0[%c368, %c0_144] : memref<456x128xf32, #tpu.memory_space<vmem>>, vector<1x16xf32>
    %1132 = vector.broadcast %1131 : vector<1x16xf32> to vector<6x16xf32>
    %1133 = arith.mulf %1130, %1132 : vector<6x16xf32>
    %cst_145 = arith.constant dense<0.000000e+00> : vector<6xf32>
    %1134 = vector.multi_reduction <add>, %1133, %cst_145 [1] : vector<6x16xf32> to vector<6xf32>
    %1135 = vector.shape_cast %1134 : vector<6xf32> to vector<6x1xf32>
    %1136 = vector.extract_strided_slice %1135 {offsets = [0, 0], sizes = [2, 1], strides = [1, 1]} : vector<6x1xf32> to vector<2x1xf32>
    %1137 = vector.extract_strided_slice %1135 {offsets = [2, 0], sizes = [2, 1], strides = [1, 1]} : vector<6x1xf32> to vector<2x1xf32>
    %1138 = vector.extract_strided_slice %1135 {offsets = [4, 0], sizes = [2, 1], strides = [1, 1]} : vector<6x1xf32> to vector<2x1xf32>
    %1139 = tpu.concatenate %1136, %1137, %1138 in 1 : vector<2x1xf32>, vector<2x1xf32>, vector<2x1xf32> -> vector<2x3xf32>
    %cst_146 = arith.constant dense<0xFF800000> : vector<2xf32>
    %1140 = vector.multi_reduction <maximumf>, %1139, %cst_146 [1] : vector<2x3xf32> to vector<2xf32>
    %1141 = vector.shape_cast %1140 : vector<2xf32> to vector<2x1xf32>
    %1142 = vector.broadcast %1141 : vector<2x1xf32> to vector<2x3xf32>
    %1143 = arith.subf %1139, %1142 : vector<2x3xf32>
    %1144 = math.exp %1143 : vector<2x3xf32>
    %cst_147 = arith.constant dense<0.000000e+00> : vector<2xf32>
    %1145 = vector.multi_reduction <add>, %1144, %cst_147 [1] : vector<2x3xf32> to vector<2xf32>
    %1146 = vector.shape_cast %1145 : vector<2xf32> to vector<2x1xf32>
    %1147 = tpu.reciprocal %1146 {approx = true} : vector<2x1xf32> -> vector<2x1xf32>
    %1148 = vector.broadcast %1147 : vector<2x1xf32> to vector<2x3xf32>
    %1149 = arith.mulf %1144, %1148 : vector<2x3xf32>
    %1150 = vector.extract_strided_slice %1149 {offsets = [0, 0], sizes = [2, 1], strides = [1, 1]} : vector<2x3xf32> to vector<2x1xf32>
    %1151 = vector.broadcast %1150 : vector<2x1xf32> to vector<2x16xf32>
    %1152 = arith.mulf %1117, %1151 : vector<2x16xf32>
    %1153 = vector.extract_strided_slice %1149 {offsets = [0, 1], sizes = [2, 1], strides = [1, 1]} : vector<2x3xf32> to vector<2x1xf32>
    %1154 = vector.broadcast %1153 : vector<2x1xf32> to vector<2x16xf32>
    %1155 = arith.mulf %1120, %1154 : vector<2x16xf32>
    %1156 = arith.addf %1152, %1155 : vector<2x16xf32>
    %1157 = arith.maximumf %1117, %1120 : vector<2x16xf32>
    %1158 = vector.extract_strided_slice %1149 {offsets = [0, 2], sizes = [2, 1], strides = [1, 1]} : vector<2x3xf32> to vector<2x1xf32>
    %1159 = vector.broadcast %1158 : vector<2x1xf32> to vector<2x16xf32>
    %1160 = arith.mulf %1123, %1159 : vector<2x16xf32>
    %1161 = arith.addf %1156, %1160 : vector<2x16xf32>
    %1162 = arith.maximumf %1157, %1123 : vector<2x16xf32>
    %1163 = tpu.concatenate %1162, %1161 in 1 : vector<2x16xf32>, vector<2x16xf32> -> vector<2x32xf32>
    %c400 = arith.constant 400 : index
    %c0_148 = arith.constant 0 : index
    %1164 = vector.load %arg0[%c400, %c0_148] : memref<456x128xf32, #tpu.memory_space<vmem>>, vector<32x5xf32>
    %cst_149 = arith.constant dense<0.000000e+00> : vector<2x5xf32>
    %1165 = tpu.matmul %1163, %1164, %cst_149 {dimension_numbers = #tpu.dot_dimension_numbers<[1], [0], [0], [1], [0, 0, 1, 1], [], []>} : vector<2x32xf32>, vector<32x5xf32>, vector<2x5xf32> -> vector<2x5xf32>
    %c432 = arith.constant 432 : index
    %c0_150 = arith.constant 0 : index
    %1166 = vector.load %arg0[%c432, %c0_150] : memref<456x128xf32, #tpu.memory_space<vmem>>, vector<1x5xf32>
    %1167 = vector.broadcast %1166 : vector<1x5xf32> to vector<2x5xf32>
    %1168 = arith.addf %1165, %1167 : vector<2x5xf32>
    %c376 = arith.constant 376 : index
    %c0_151 = arith.constant 0 : index
    %1169 = vector.load %arg0[%c376, %c0_151] : memref<456x128xf32, #tpu.memory_space<vmem>>, vector<16x8xf32>
    %cst_152 = arith.constant dense<0.000000e+00> : vector<6x8xf32>
    %1170 = tpu.matmul %1124, %1169, %cst_152 {dimension_numbers = #tpu.dot_dimension_numbers<[1], [0], [0], [1], [0, 0, 1, 1], [], []>} : vector<6x16xf32>, vector<16x8xf32>, vector<6x8xf32> -> vector<6x8xf32>
    %c392 = arith.constant 392 : index
    %c0_153 = arith.constant 0 : index
    %1171 = vector.load %arg0[%c392, %c0_153] : memref<456x128xf32, #tpu.memory_space<vmem>>, vector<1x8xf32>
    %1172 = vector.broadcast %1171 : vector<1x8xf32> to vector<6x8xf32>
    %1173 = arith.addf %1170, %1172 : vector<6x8xf32>
    %1174 = vector.extract_strided_slice %1173 {offsets = [0, 0], sizes = [2, 8], strides = [1, 1]} : vector<6x8xf32> to vector<2x8xf32>
    %1175 = vector.extract_strided_slice %1173 {offsets = [2, 0], sizes = [2, 8], strides = [1, 1]} : vector<6x8xf32> to vector<2x8xf32>
    %1176 = vector.extract_strided_slice %1173 {offsets = [4, 0], sizes = [2, 8], strides = [1, 1]} : vector<6x8xf32> to vector<2x8xf32>
    %1177 = tpu.concatenate %1168, %1174, %1175, %1176 in 1 : vector<2x5xf32>, vector<2x8xf32>, vector<2x8xf32>, vector<2x8xf32> -> vector<2x29xf32>
    %cst_154 = arith.constant 0.000000e+00 : f32
    %1178 = vector.broadcast %cst_154 : f32 to vector<2x99xf32>
    %1179 = tpu.concatenate %1177, %1178 in 1 : vector<2x29xf32>, vector<2x99xf32> -> vector<2x128xf32>
    %c0_155 = arith.constant 0 : index
    %c0_156 = arith.constant 0 : index
    %1180 = vector.load %arg1[%c0_155, %c0_156] : memref<2x128xf32, #tpu.memory_space<vmem>>, vector<2x128xf32>
    tpu.vector_store %arg1[%c0_155, %c0_156], %1179 {strides = array<i32>} : memref<2x128xf32, #tpu.memory_space<vmem>>, vector<2x128xf32>,
    return
  }
}

</mosaic_0001>

<llo_original>
// kernel: eq.8
$region0: #{eq.8}
  %s0 = inlined_call_operand.vmem [shape: s32[6,8,2], index: 0, kind: input, shape index: {}]
  %s1 = inlined_call_operand.vmem [shape: s32[96], index: 1, kind: output, shape index: {}]
  $region1: #{eq.8} parent=0
    #allocation0 [shape = 'u8[4096]{0}', space=vmem, size = 0x1000, scoped, tag = 'scoped mem for output reshape']
    %v2 = vld [vmem:[%s0] sm:$0x1]
    %vm3 = vcmask 15360
    %4 = vst.msk [vmem:[#allocation0] sm:$0x1] %vm3, %v2
    %s5 = scalar_lea.vmem %s0, 47
    %v6 = vld [vmem:[%s5] sm:$0x1]
    %7 = vrot.lane.b32.xlu0 %v6, 94
    %v8 = vpop.permute.xlu0 %7
    %vm9 = vcmask 786160
    %10 = vst.msk [vmem:[#allocation0] sm:$0x1] %vm9, %v8
    %s11 = scalar_lea.vmem %s0, 46
    %v12 = vld [vmem:[%s11] sm:$0x1]
    %13 = vrot.lane.b32.xlu0 %v12, 92
    %v14 = vpop.permute.xlu0 %13
    %vm15 = vcmask 769760
    %16 = vst.msk [vmem:[#allocation0] sm:$0x1] %vm15, %v14
    %s17 = scalar_lea.vmem %s0, 45
    %v18 = vld [vmem:[%s17] sm:$0x1]
    %19 = vrot.lane.b32.xlu0 %v18, 90
    %v20 = vpop.permute.xlu0 %19
    %vm21 = vcmask 753360
    %22 = vst.msk [vmem:[#allocation0] sm:$0x1] %vm21, %v20
    %s23 = scalar_lea.vmem %s0, 44
    %v24 = vld [vmem:[%s23] sm:$0x1]
    %25 = vrot.lane.b32.xlu0 %v24, 88
    %v26 = vpop.permute.xlu0 %25
    %vm27 = vcmask 736960
    %28 = vst.msk [vmem:[#allocation0] sm:$0x1] %vm27, %v26
    %s29 = scalar_lea.vmem %s0, 43
    %v30 = vld [vmem:[%s29] sm:$0x1]
    %31 = vrot.lane.b32.xlu0 %v30, 86
    %v32 = vpop.permute.xlu0 %31
    %vm33 = vcmask 720560
    %34 = vst.msk [vmem:[#allocation0] sm:$0x1] %vm33, %v32
    %s35 = scalar_lea.vmem %s0, 42
    %v36 = vld [vmem:[%s35] sm:$0x1]
    %37 = vrot.lane.b32.xlu0 %v36, 84
    %v38 = vpop.permute.xlu0 %37
    %vm39 = vcmask 704160
    %40 = vst.msk [vmem:[#allocation0] sm:$0x1] %vm39, %v38
    %s41 = scalar_lea.vmem %s0, 41
    %v42 = vld [vmem:[%s41] sm:$0x1]
    %43 = vrot.lane.b32.xlu0 %v42, 82
    %v44 = vpop.permute.xlu0 %43
    %vm45 = vcmask 687760
    %46 = vst.msk [vmem:[#allocation0] sm:$0x1] %vm45, %v44
    %s47 = scalar_lea.vmem %s0, 40
    %v48 = vld [vmem:[%s47] sm:$0x1]
    %49 = vrot.lane.b32.xlu0 %v48, 80
    %v50 = vpop.permute.xlu0 %49
    %vm51 = vcmask 671360
    %52 = vst.msk [vmem:[#allocation0] sm:$0x1] %vm51, %v50
    %s53 = scalar_lea.vmem %s0, 39
    %v54 = vld [vmem:[%s53] sm:$0x1]
    %55 = vrot.lane.b32.xlu0 %v54, 78
    %v56 = vpop.permute.xlu0 %55
    %vm57 = vcmask 654960
    %58 = vst.msk [vmem:[#allocation0] sm:$0x1] %vm57, %v56
    %s59 = scalar_lea.vmem %s0, 38
    %v60 = vld [vmem:[%s59] sm:$0x1]
    %61 = vrot.lane.b32.xlu0 %v60, 76
    %v62 = vpop.permute.xlu0 %61
    %vm63 = vcmask 638560
    %64 = vst.msk [vmem:[#allocation0] sm:$0x1] %vm63, %v62
    %s65 = scalar_lea.vmem %s0, 37
    %v66 = vld [vmem:[%s65] sm:$0x1]
    %67 = vrot.lane.b32.xlu0 %v66, 74
    %v68 = vpop.permute.xlu0 %67
    %vm69 = vcmask 622160
    %70 = vst.msk [vmem:[#allocation0] sm:$0x1] %vm69, %v68
    %s71 = scalar_lea.vmem %s0, 36
    %v72 = vld [vmem:[%s71] sm:$0x1]
    %73 = vrot.lane.b32.xlu0 %v72, 72
    %v74 = vpop.permute.xlu0 %73
    %vm75 = vcmask 605760
    %76 = vst.msk [vmem:[#allocation0] sm:$0x1] %vm75, %v74
    %s77 = scalar_lea.vmem %s0, 35
    %v78 = vld [vmem:[%s77] sm:$0x1]
    %79 = vrot.lane.b32.xlu0 %v78, 70
    %v80 = vpop.permute.xlu0 %79
    %vm81 = vcmask 589360
    %82 = vst.msk [vmem:[#allocation0] sm:$0x1] %vm81, %v80
    %s83 = scalar_lea.vmem %s0, 34
    %v84 = vld [vmem:[%s83] sm:$0x1]
    %85 = vrot.lane.b32.xlu0 %v84, 68
    %v86 = vpop.permute.xlu0 %85
    %vm87 = vcmask 572960
    %88 = vst.msk [vmem:[#allocation0] sm:$0x1] %vm87, %v86
    %s89 = scalar_lea.vmem %s0, 33
    %v90 = vld [vmem:[%s89] sm:$0x1]
    %91 = vrot.lane.b32.xlu0 %v90, 66
    %v92 = vpop.permute.xlu0 %91
    %vm93 = vcmask 556560
    %94 = vst.msk [vmem:[#allocation0] sm:$0x1] %vm93, %v92
    %s95 = scalar_lea.vmem %s0, 32
    %v96 = vld [vmem:[%s95] sm:$0x1]
    %97 = vrot.lane.b32.xlu0 %v96, 64
    %v98 = vpop.permute.xlu0 %97
    %vm99 = vcmask 540160
    %100 = vst.msk [vmem:[#allocation0] sm:$0x1] %vm99, %v98
    %s101 = scalar_lea.vmem %s0, 31
    %v102 = vld [vmem:[%s101] sm:$0x1]
    %103 = vrot.lane.b32.xlu0 %v102, 62
    %v104 = vpop.permute.xlu0 %103
    %vm105 = vcmask 523760
    %106 = vst.msk [vmem:[#allocation0] sm:$0x1] %vm105, %v104
    %s107 = scalar_lea.vmem %s0, 30
    %v108 = vld [vmem:[%s107] sm:$0x1]
    %109 = vrot.lane.b32.xlu0 %v108, 60
    %v110 = vpop.permute.xlu0 %109
    %vm111 = vcmask 507360
    %112 = vst.msk [vmem:[#allocation0] sm:$0x1] %vm111, %v110
    %s113 = scalar_lea.vmem %s0, 29
    %v114 = vld [vmem:[%s113] sm:$0x1]
    %115 = vrot.lane.b32.xlu0 %v114, 58
    %v116 = vpop.permute.xlu0 %115
    %vm117 = vcmask 490960
    %118 = vst.msk [vmem:[#allocation0] sm:$0x1] %vm117, %v116
    %s119 = scalar_lea.vmem %s0, 28
    %v120 = vld [vmem:[%s119] sm:$0x1]
    %121 = vrot.lane.b32.xlu0 %v120, 56
    %v122 = vpop.permute.xlu0 %121
    %vm123 = vcmask 474560
    %124 = vst.msk [vmem:[#allocation0] sm:$0x1] %vm123, %v122
    %s125 = scalar_lea.vmem %s0, 27
    %v126 = vld [vmem:[%s125] sm:$0x1]
    %127 = vrot.lane.b32.xlu0 %v126, 54
    %v128 = vpop.permute.xlu0 %127
    %vm129 = vcmask 458160
    %130 = vst.msk [vmem:[#allocation0] sm:$0x1] %vm129, %v128
    %s131 = scalar_lea.vmem %s0, 26
    %v132 = vld [vmem:[%s131] sm:$0x1]
    %133 = vrot.lane.b32.xlu0 %v132, 52
    %v134 = vpop.permute.xlu0 %133
    %vm135 = vcmask 441760
    %136 = vst.msk [vmem:[#allocation0] sm:$0x1] %vm135, %v134
    %s137 = scalar_lea.vmem %s0, 25
    %v138 = vld [vmem:[%s137] sm:$0x1]
    %139 = vrot.lane.b32.xlu0 %v138, 50
    %v140 = vpop.permute.xlu0 %139
    %vm141 = vcmask 425360
    %142 = vst.msk [vmem:[#allocation0] sm:$0x1] %vm141, %v140
    %s143 = scalar_lea.vmem %s0, 24
    %v144 = vld [vmem:[%s143] sm:$0x1]
    %145 = vrot.lane.b32.xlu0 %v144, 48
    %v146 = vpop.permute.xlu0 %145
    %vm147 = vcmask 408960
    %148 = vst.msk [vmem:[#allocation0] sm:$0x1] %vm147, %v146
    %s149 = scalar_lea.vmem %s0, 23
    %v150 = vld [vmem:[%s149] sm:$0x1]
    %151 = vrot.lane.b32.xlu0 %v150, 46
    %v152 = vpop.permute.xlu0 %151
    %vm153 = vcmask 392560
    %154 = vst.msk [vmem:[#allocation0] sm:$0x1] %vm153, %v152
    %s155 = scalar_lea.vmem %s0, 22
    %v156 = vld [vmem:[%s155] sm:$0x1]
    %157 = vrot.lane.b32.xlu0 %v156, 44
    %v158 = vpop.permute.xlu0 %157
    %vm159 = vcmask 376160
    %160 = vst.msk [vmem:[#allocation0] sm:$0x1] %vm159, %v158
    %s161 = scalar_lea.vmem %s0, 21
    %v162 = vld [vmem:[%s161] sm:$0x1]
    %163 = vrot.lane.b32.xlu0 %v162, 42
    %v164 = vpop.permute.xlu0 %163
    %vm165 = vcmask 359760
    %166 = vst.msk [vmem:[#allocation0] sm:$0x1] %vm165, %v164
    %s167 = scalar_lea.vmem %s0, 20
    %v168 = vld [vmem:[%s167] sm:$0x1]
    %169 = vrot.lane.b32.xlu0 %v168, 40
    %v170 = vpop.permute.xlu0 %169
    %vm171 = vcmask 343360
    %172 = vst.msk [vmem:[#allocation0] sm:$0x1] %vm171, %v170
    %s173 = scalar_lea.vmem %s0, 19
    %v174 = vld [vmem:[%s173] sm:$0x1]
    %175 = vrot.lane.b32.xlu0 %v174, 38
    %v176 = vpop.permute.xlu0 %175
    %vm177 = vcmask 326960
    %178 = vst.msk [vmem:[#allocation0] sm:$0x1] %vm177, %v176
    %s179 = scalar_lea.vmem %s0, 18
    %v180 = vld [vmem:[%s179] sm:$0x1]
    %181 = vrot.lane.b32.xlu0 %v180, 36
    %v182 = vpop.permute.xlu0 %181
    %vm183 = vcmask 310560
    %184 = vst.msk [vmem:[#allocation0] sm:$0x1] %vm183, %v182
    %s185 = scalar_lea.vmem %s0, 17
    %v186 = vld [vmem:[%s185] sm:$0x1]
    %187 = vrot.lane.b32.xlu0 %v186, 34
    %v188 = vpop.permute.xlu0 %187
    %vm189 = vcmask 294160
    %190 = vst.msk [vmem:[#allocation0] sm:$0x1] %vm189, %v188
    %s191 = scalar_lea.vmem %s0, 16
    %v192 = vld [vmem:[%s191] sm:$0x1]
    %193 = vrot.lane.b32.xlu0 %v192, 32
    %v194 = vpop.permute.xlu0 %193
    %vm195 = vcmask 277760
    %196 = vst.msk [vmem:[#allocation0] sm:$0x1] %vm195, %v194
    %s197 = scalar_lea.vmem %s0, 15
    %v198 = vld [vmem:[%s197] sm:$0x1]
    %199 = vrot.lane.b32.xlu0 %v198, 30
    %v200 = vpop.permute.xlu0 %199
    %vm201 = vcmask 261360
    %202 = vst.msk [vmem:[#allocation0] sm:$0x1] %vm201, %v200
    %s203 = scalar_lea.vmem %s0, 14
    %v204 = vld [vmem:[%s203] sm:$0x1]
    %205 = vrot.lane.b32.xlu0 %v204, 28
    %v206 = vpop.permute.xlu0 %205
    %vm207 = vcmask 244960
    %208 = vst.msk [vmem:[#allocation0] sm:$0x1] %vm207, %v206
    %s209 = scalar_lea.vmem %s0, 13
    %v210 = vld [vmem:[%s209] sm:$0x1]
    %211 = vrot.lane.b32.xlu0 %v210, 26
    %v212 = vpop.permute.xlu0 %211
    %vm213 = vcmask 228560
    %214 = vst.msk [vmem:[#allocation0] sm:$0x1] %vm213, %v212
    %s215 = scalar_lea.vmem %s0, 12
    %v216 = vld [vmem:[%s215] sm:$0x1]
    %217 = vrot.lane.b32.xlu0 %v216, 24
    %v218 = vpop.permute.xlu0 %217
    %vm219 = vcmask 212160
    %220 = vst.msk [vmem:[#allocation0] sm:$0x1] %vm219, %v218
    %s221 = scalar_lea.vmem %s0, 11
    %v222 = vld [vmem:[%s221] sm:$0x1]
    %223 = vrot.lane.b32.xlu0 %v222, 22
    %v224 = vpop.permute.xlu0 %223
    %vm225 = vcmask 195760
    %226 = vst.msk [vmem:[#allocation0] sm:$0x1] %vm225, %v224
    %s227 = scalar_lea.vmem %s0, 10
    %v228 = vld [vmem:[%s227] sm:$0x1]
    %229 = vrot.lane.b32.xlu0 %v228, 20
    %v230 = vpop.permute.xlu0 %229
    %vm231 = vcmask 179360
    %232 = vst.msk [vmem:[#allocation0] sm:$0x1] %vm231, %v230
    %s233 = scalar_lea.vmem %s0, 9
    %v234 = vld [vmem:[%s233] sm:$0x1]
    %235 = vrot.lane.b32.xlu0 %v234, 18
    %v236 = vpop.permute.xlu0 %235
    %vm237 = vcmask 162960
    %238 = vst.msk [vmem:[#allocation0] sm:$0x1] %vm237, %v236
    %s239 = scalar_lea.vmem %s0, 8
    %v240 = vld [vmem:[%s239] sm:$0x1]
    %241 = vrot.lane.b32.xlu0 %v240, 16
    %v242 = vpop.permute.xlu0 %241
    %vm243 = vcmask 146560
    %244 = vst.msk [vmem:[#allocation0] sm:$0x1] %vm243, %v242
    %s245 = scalar_lea.vmem %s0, 7
    %v246 = vld [vmem:[%s245] sm:$0x1]
    %247 = vrot.lane.b32.xlu0 %v246, 14
    %v248 = vpop.permute.xlu0 %247
    %vm249 = vcmask 130160
    %250 = vst.msk [vmem:[#allocation0] sm:$0x1] %vm249, %v248
    %s251 = scalar_lea.vmem %s0, 6
    %v252 = vld [vmem:[%s251] sm:$0x1]
    %253 = vrot.lane.b32.xlu0 %v252, 12
    %v254 = vpop.permute.xlu0 %253
    %vm255 = vcmask 113760
    %256 = vst.msk [vmem:[#allocation0] sm:$0x1] %vm255, %v254
    %s257 = scalar_lea.vmem %s0, 5
    %v258 = vld [vmem:[%s257] sm:$0x1]
    %259 = vrot.lane.b32.xlu0 %v258, 10
    %v260 = vpop.permute.xlu0 %259
    %vm261 = vcmask 97360
    %262 = vst.msk [vmem:[#allocation0] sm:$0x1] %vm261, %v260
    %s263 = scalar_lea.vmem %s0, 4
    %v264 = vld [vmem:[%s263] sm:$0x1]
    %265 = vrot.lane.b32.xlu0 %v264, 8
    %v266 = vpop.permute.xlu0 %265
    %vm267 = vcmask 80960
    %268 = vst.msk [vmem:[#allocation0] sm:$0x1] %vm267, %v266
    %s269 = scalar_lea.vmem %s0, 3
    %v270 = vld [vmem:[%s269] sm:$0x1]
    %271 = vrot.lane.b32.xlu0 %v270, 6
    %v272 = vpop.permute.xlu0 %271
    %vm273 = vcmask 64560
    %274 = vst.msk [vmem:[#allocation0] sm:$0x1] %vm273, %v272
    %s275 = scalar_lea.vmem %s0, 2
    %v276 = vld [vmem:[%s275] sm:$0x1]
    %277 = vrot.lane.b32.xlu0 %v276, 4
    %v278 = vpop.permute.xlu0 %277
    %vm279 = vcmask 48160
    %280 = vst.msk [vmem:[#allocation0] sm:$0x1] %vm279, %v278
    %s281 = scalar_lea.vmem %s0, 1
    %v282 = vld [vmem:[%s281] sm:$0x1]
    %283 = vrot.lane.b32.xlu0 %v282, 2
    %v284 = vpop.permute.xlu0 %283
    %vm285 = vcmask 31760
    %286 = vst.msk [vmem:[#allocation0] sm:$0x1] %vm285, %v284
    %s288 = ssub.s32 2, 1
    %v289 = vld [vmem:[#allocation0] sm:%s288]
    %s291 = ssub.s32 2, 1
    %292 = vst [vmem:[%s1] sm:%s291] %v289

// kernel: hierarchical_bigru_max_forward.1
$region0: #{hierarchical_bigru_max_forward.1}
  #allocation0 [shape = 'u32[]', space=smem, size = 0x4, offset = 0x4, fixed_abs, tag = 'smem constant byte address 0x4 - core index']
  #allocation1 [shape = 'u32[72,128]{1,0:T(1,128)}', space=vmem, size = 0x9000, scoped, tag = 'internal scratch']
  %s0 = inlined_call_operand.vmem [shape: f32[456,128], index: 0, kind: input, shape index: {}]
  %s1 = inlined_call_operand.vmem [shape: f32[2,128], index: 1, kind: output, shape index: {}]
  %s2 = sld [smem:[#allocation0]]
  $region14: #{hierarchical_bigru_max_forward.1} parent=0
    _
  %s4 = ssub.s32 1, %s2
  %s5 = scalar_select 0, %s4, %s2
  // Predicated region
  $region2: #{hierarchical_bigru_max_forward.1} parent=0 // pred_check
    _
  $region3: #{hierarchical_bigru_max_forward.1} parent=0 // pred_check_branch
    %7 = sbr.rel (0) target = $region5
  $region4: #{hierarchical_bigru_max_forward.1} parent=0 // pred_region
    _
  $region5: #{hierarchical_bigru_max_forward.1} parent=0 // pred_fallthru
    _
  %v8 = vld [vmem:[%s0] sm:$0xff]
  %v9 = vld [vmem:[%s0 + $0x8] sm:$0xff]
  %v10 = vld [vmem:[%s0 + $0x10] sm:$0xff]
  %v11 = vld [vmem:[%s0 + $0x18] sm:$0xff]
  %v12 = vld [vmem:[%s0 + $0x20] sm:$0xff]
  %v13 = vld [vmem:[%s0 + $0x28] sm:$0xff]
  %v14 = vld [vmem:[%s0 + $0x30] sm:$0xff]
  %v15 = vld [vmem:[%s0 + $0x38] sm:$0xff]
  %v16 = vld [vmem:[%s0 + $0x40] sm:$0xff]
  %v17 = vld [vmem:[%s0 + $0x48] sm:$0xff]
  %v18 = vld [vmem:[%s0 + $0x50] sm:$0xff]
  %v19 = vld [vmem:[%s0 + $0x58] sm:$0xff]
  %v20 = vld [vmem:[%s0 + $0x60] sm:$0xff]
  %v21 = vld [vmem:[%s0 + $0x68] sm:$0xff]
  %v22 = vld [vmem:[%s0 + $0x70] sm:$0xff]
  %v23 = vld [vmem:[%s0 + $0x78] sm:$0xff]
  %v24 = vld [vmem:[%s0 + $0x80] sm:$0xff]
  %v25 = vld [vmem:[%s0 + $0x88] sm:$0xff]
  %v26 = vld [vmem:[%s0 + $0x90] sm:$0x3]
  %vm27 = vcmask 408576
  %v29 = vsel %vm27, %v8, 0
  %v32 = vsel %vm27, %v9, 0
  %v35 = vsel %vm27, %v10, 0
  %v38 = vsel %vm27, %v11, 0
  %v41 = vsel %vm27, %v12, 0
  %v44 = vsel %vm27, %v13, 0
  %v47 = vsel %vm27, %v14, 0
  %v50 = vsel %vm27, %v15, 0
  %v53 = vsel %vm27, %v16, 0
  %v56 = vsel %vm27, %v17, 0
  %v59 = vsel %vm27, %v18, 0
  %v62 = vsel %vm27, %v19, 0
  %vm64 = vcmask 1041408
  %v66 = vsel %vm64, %v26, 0
  %68 = vmatpush.msra.mxu0 0.0
  %69 = vmatpush.msra.mxu0 0.0
  %70 = vmatpush.msra.mxu0 0.0
  %71 = vmatpush.msra.mxu0 0.0
  %72 = vmatpush.msra.mxu0 0.0
  %73 = vmatpush.msra.mxu0 0.0
  %74 = vmatpush.msra.mxu0 0.0
  %75 = vmatpush.msra.mxu0 0.0
  %76 = vmatpush.msra.mxu0 0.0
  %77 = vmatpush.msra.mxu0 %v66
  %78 = vmatpush.msra.mxu0 %v25
  %79 = vmatpush.msra.mxu0 %v24
  %80 = vmatpush.msra.mxu0 %v23
  %81 = vmatpush.msra.mxu0 %v22
  %82 = vmatpush.msra.mxu0 %v21
  %83 = vmatpush.msra.mxu0 %v20
  %84 = vmatmul.f32.gmra.mxu0 %v29
  %v85 = vpop.f32.mrf.mxu0
  %v86 = vadd.f32 0.0, %v85
  %87 = vmatmul.f32.gmra.mxu0 %v32
  %v88 = vpop.f32.mrf.mxu0
  %v89 = vadd.f32 0.0, %v88
  %90 = vmatmul.f32.gmra.mxu0 %v35
  %v91 = vpop.f32.mrf.mxu0
  %v92 = vadd.f32 0.0, %v91
  %93 = vmatmul.f32.gmra.mxu0 %v38
  %v94 = vpop.f32.mrf.mxu0
  %v95 = vadd.f32 0.0, %v94
  %96 = vmatmul.f32.gmra.mxu0 %v41
  %v97 = vpop.f32.mrf.mxu0
  %v98 = vadd.f32 0.0, %v97
  %99 = vmatmul.f32.gmra.mxu0 %v44
  %v100 = vpop.f32.mrf.mxu0
  %v101 = vadd.f32 0.0, %v100
  %102 = vmatmul.f32.gmra.mxu0 %v47
  %v103 = vpop.f32.mrf.mxu0
  %v104 = vadd.f32 0.0, %v103
  %105 = vmatmul.f32.gmra.mxu0 %v50
  %v106 = vpop.f32.mrf.mxu0
  %v107 = vadd.f32 0.0, %v106
  %108 = vmatmul.f32.gmra.mxu0 %v53
  %v109 = vpop.f32.mrf.mxu0
  %v110 = vadd.f32 0.0, %v109
  %111 = vmatmul.f32.gmra.mxu0 %v56
  %v112 = vpop.f32.mrf.mxu0
  %v113 = vadd.f32 0.0, %v112
  %114 = vmatmul.f32.gmra.mxu0 %v59
  %v115 = vpop.f32.mrf.mxu0
  %v116 = vadd.f32 0.0, %v115
  %117 = vmatmul.f32.gmra.mxu0 %v62
  %v118 = vpop.f32.mrf.mxu0
  %v119 = vadd.f32 0.0, %v118
  %120 = vdwg.mxu0
  %v121 = vld [vmem:[%s0 + $0x98] sm:$0xff]
  %v122 = vld [vmem:[%s0 + $0xa0] sm:$0xff]
  %v123 = vld [vmem:[%s0 + $0xa8] sm:$0xff]
  %v124 = vld [vmem:[%s0 + $0xb0] sm:$0xff]
  %vm125 = vcmask 130048
  %v127 = vsel %vm125, %v104, 0
  %v130 = vsel %vm125, %v107, 0
  %v133 = vsel %vm125, %v110, 0
  %v136 = vsel %vm125, %v113, 0
  %v139 = vsel %vm125, %v116, 0
  %v142 = vsel %vm125, %v119, 0
  %144 = vmatpush.msra.mxu0 0.0
  %145 = vmatpush.msra.mxu0 0.0
  %146 = vmatpush.msra.mxu0 0.0
  %147 = vmatpush.msra.mxu0 0.0
  %148 = vmatpush.msra.mxu0 0.0
  %149 = vmatpush.msra.mxu0 0.0
  %150 = vmatpush.msra.mxu0 0.0
  %151 = vmatpush.msra.mxu0 0.0
  %152 = vmatpush.msra.mxu0 0.0
  %153 = vmatpush.msra.mxu0 0.0
  %154 = vmatpush.msra.mxu0 0.0
  %155 = vmatpush.msra.mxu0 0.0
  %156 = vmatpush.msra.mxu0 0.0
  %157 = vmatpush.msra.mxu0 0.0
  %158 = vmatpush.msra.mxu0 %v124
  %159 = vmatpush.msra.mxu0 %v123
  %160 = vmatmul.f32.gmra.mxu0 %v127
  %v161 = vpop.f32.mrf.mxu0
  %v162 = vadd.f32 0.0, %v161
  %163 = vmatmul.f32.gmra.mxu0 %v130
  %v164 = vpop.f32.mrf.mxu0
  %v165 = vadd.f32 0.0, %v164
  %166 = vmatmul.f32.gmra.mxu0 %v133
  %v167 = vpop.f32.mrf.mxu0
  %v168 = vadd.f32 0.0, %v167
  %169 = vmatmul.f32.gmra.mxu0 %v136
  %v170 = vpop.f32.mrf.mxu0
  %v171 = vadd.f32 0.0, %v170
  %172 = vmatmul.f32.gmra.mxu0 %v139
  %v173 = vpop.f32.mrf.mxu0
  %v174 = vadd.f32 0.0, %v173
  %175 = vmatmul.f32.gmra.mxu0 %v142
  %v176 = vpop.f32.mrf.mxu0
  %v177 = vadd.f32 0.0, %v176
  %178 = vdwg.mxu0
  %v180 = vsel %vm125, %v86, 0
  %v183 = vsel %vm125, %v89, 0
  %v186 = vsel %vm125, %v92, 0
  %v189 = vsel %vm125, %v95, 0
  %v192 = vsel %vm125, %v98, 0
  %v195 = vsel %vm125, %v101, 0
  %197 = vmatpush.msra.mxu0 0.0
  %198 = vmatpush.msra.mxu0 0.0
  %199 = vmatpush.msra.mxu0 0.0
  %200 = vmatpush.msra.mxu0 0.0
  %201 = vmatpush.msra.mxu0 0.0
  %202 = vmatpush.msra.mxu0 0.0
  %203 = vmatpush.msra.mxu0 0.0
  %204 = vmatpush.msra.mxu0 0.0
  %205 = vmatpush.msra.mxu0 0.0
  %206 = vmatpush.msra.mxu0 0.0
  %207 = vmatpush.msra.mxu0 0.0
  %208 = vmatpush.msra.mxu0 0.0
  %209 = vmatpush.msra.mxu0 0.0
  %210 = vmatpush.msra.mxu0 0.0
  %211 = vmatpush.msra.mxu0 %v122
  %212 = vmatpush.msra.mxu0 %v121
  %213 = vmatmul.f32.gmra.mxu0 %v180
  %v214 = vpop.f32.mrf.mxu0
  %v215 = vadd.f32 %v162, %v214
  %216 = vmatmul.f32.gmra.mxu0 %v183
  %v217 = vpop.f32.mrf.mxu0
  %v218 = vadd.f32 %v165, %v217
  %219 = vmatmul.f32.gmra.mxu0 %v186
  %v220 = vpop.f32.mrf.mxu0
  %v221 = vadd.f32 %v168, %v220
  %222 = vmatmul.f32.gmra.mxu0 %v189
  %v223 = vpop.f32.mrf.mxu0
  %v224 = vadd.f32 %v171, %v223
  %225 = vmatmul.f32.gmra.mxu0 %v192
  %v226 = vpop.f32.mrf.mxu0
  %v227 = vadd.f32 %v174, %v226
  %228 = vmatmul.f32.gmra.mxu0 %v195
  %v229 = vpop.f32.mrf.mxu0
  %v230 = vadd.f32 %v177, %v229
  %231 = vdwg.mxu0
  %v232 = vld [vmem:[%s0 + $0xc8] sm:$0x1]
  %v233 = vperm.slane %v232, 0
  %v234 = vadd.f32 %v215, %v233
  %v235 = vadd.f32 %v218, %v233
  %v236 = vadd.f32 %v221, %v233
  %v237 = vadd.f32 %v224, %v233
  %v238 = vadd.f32 %v227, %v233
  %v239 = vadd.f32 %v230, %v233
  %v240 = vld [vmem:[%s0 + $0xb8] sm:$0xff]
  %v241 = vld [vmem:[%s0 + $0xc0] sm:$0xff]
  %v242 = vld [vmem:[%s0 + $0xd0] sm:$0x1]
  %v243 = vld [vmem:[%s0 + $0xd8] sm:$0xff]
  %v244 = vld [vmem:[%s0 + $0xe0] sm:$0xff]
  %v245 = vld [vmem:[%s0 + $0xe8] sm:$0x1]
  %v246 = vld [vmem:[%s0 + $0xf0] sm:$0x1]
  %v247 = vld [vmem:[%s0 + $0x1b8] sm:$0x3]
  %v248 = vperm.slane %v242, 0
  %v250 = vsel %vm125, %v247, 0
  %252 = vmatpush.msra.mxu0 0.0
  %253 = vmatpush.msra.mxu0 0.0
  %254 = vmatpush.msra.mxu0 0.0
  %255 = vmatpush.msra.mxu0 0.0
  %256 = vmatpush.msra.mxu0 0.0
  %257 = vmatpush.msra.mxu0 0.0
  %258 = vmatpush.msra.mxu0 0.0
  %259 = vmatpush.msra.mxu0 0.0
  %260 = vmatpush.msra.mxu0 0.0
  %261 = vmatpush.msra.mxu0 0.0
  %262 = vmatpush.msra.mxu0 0.0
  %263 = vmatpush.msra.mxu0 0.0
  %264 = vmatpush.msra.mxu0 0.0
  %265 = vmatpush.msra.mxu0 0.0
  %266 = vmatpush.msra.mxu0 %v241
  %267 = vmatpush.msra.mxu0 %v240
  %268 = vmatmul.f32.gmra.mxu0 %v250
  %v269 = vpop.f32.mrf.mxu0
  %v270 = vadd.f32 %v248, %v269
  %271 = vdwg.mxu0
  %v272 = vadd.f32 %v234, %v270
  %v273 = vxor.u32 %v272, 2147483648
  %v274 = vmul.f32 %v273, 1.442695
  %v275 = vpow.pop %v274
  %v276 = vadd.f32 %v275, 1.0
  %v277 = vrcp.pop %v276
  %v278 = vmul.f32 %v276, %v277
  %v279 = vsub.f32 1.0, %v278
  %v280 = vmul.f32 %v277, %v279
  %v281 = vadd.f32 %v277, %v280
  %vm282 = vweird.f32 %v276
  %vm283 = vweird.f32 %v277
  %vm284 = vmor %vm282, %vm283
  %v285 = vsel %vm284, %v277, %v281
  %v286 = vand.u32 2147483647, %v276
  %vm287 = vcmp.eq.f32.partialorder %v286, 8.507059e+37
  %v288 = vand.u32 %v276, 2147483648
  %v289 = vor.u32 1.1754944e-38, %v288
  %v290 = vsel %vm287, %v289, %v285
  %v291 = vmul.f32 1.0, %v290
  %293 = vrot.lane.b32.xlu0 %v270, 96
  %v294 = vpop.permute.xlu0 %293
  %v296 = vmul.f32 %v291, %v294
  %298 = vrot.lane.b32.xlu0 %v296, 32
  %v299 = vpop.permute.xlu0 %298
  %v301 = vadd.f32 %v234, %v299
  %v302 = vtanh.pop %v301
  %v303 = vsub.f32 1.0, %v291
  %305 = vrot.lane.b32.xlu0 %v302, 112
  %v306 = vpop.permute.xlu0 %305
  %v308 = vmul.f32 %v303, %v306
  %309 = vrot.lane.b32.xlu0 %v247, 16
  %v310 = vpop.permute.xlu0 %309
  %v312 = vmul.f32 %v291, %v310
  %v313 = vadd.f32 %v308, %v312
  %315 = vrot.lane.b32.xlu0 %v313, 112
  %v316 = vpop.permute.xlu0 %315
  %v317 = vsel %vm125, %v316, 0
  %319 = vmatpush.msra.mxu0 0.0
  %320 = vmatpush.msra.mxu0 0.0
  %321 = vmatpush.msra.mxu0 0.0
  %322 = vmatpush.msra.mxu0 0.0
  %323 = vmatpush.msra.mxu0 0.0
  %324 = vmatpush.msra.mxu0 0.0
  %325 = vmatpush.msra.mxu0 0.0
  %326 = vmatpush.msra.mxu0 0.0
  %327 = vmatpush.msra.mxu0 0.0
  %328 = vmatpush.msra.mxu0 0.0
  %329 = vmatpush.msra.mxu0 0.0
  %330 = vmatpush.msra.mxu0 0.0
  %331 = vmatpush.msra.mxu0 0.0
  %332 = vmatpush.msra.mxu0 0.0
  %333 = vmatpush.msra.mxu0 %v241
  %334 = vmatpush.msra.mxu0 %v240
  %335 = vmatmul.f32.gmra.mxu0 %v317
  %v336 = vpop.f32.mrf.mxu0
  %v337 = vadd.f32 %v248, %v336
  %338 = vdwg.mxu0
  %v340 = vrot.slane %v337, 6
  %v342 = vadd.f32 %v234, %v340
  %v343 = vxor.u32 %v342, 2147483648
  %v344 = vmul.f32 %v343, 1.442695
  %v345 = vpow.pop %v344
  %v346 = vadd.f32 %v345, 1.0
  %v347 = vrcp.pop %v346
  %v348 = vmul.f32 %v346, %v347
  %v349 = vsub.f32 1.0, %v348
  %v350 = vmul.f32 %v347, %v349
  %v351 = vadd.f32 %v347, %v350
  %vm352 = vweird.f32 %v346
  %vm353 = vweird.f32 %v347
  %vm354 = vmor %vm352, %vm353
  %v355 = vsel %vm354, %v347, %v351
  %v356 = vand.u32 2147483647, %v346
  %vm357 = vcmp.eq.f32.partialorder %v356, 8.507059e+37
  %v358 = vand.u32 %v346, 2147483648
  %v359 = vor.u32 1.1754944e-38, %v358
  %v360 = vsel %vm357, %v359, %v355
  %v361 = vmul.f32 1.0, %v360
  %362 = vrot.lane.b32.xlu0 %v340, 96
  %v363 = vpop.permute.xlu0 %362
  %v365 = vmul.f32 %v361, %v363
  %367 = vrot.lane.b32.xlu0 %v365, 32
  %v368 = vpop.permute.xlu0 %367
  %v370 = vadd.f32 %v234, %v368
  %v371 = vtanh.pop %v370
  %v372 = vsub.f32 1.0, %v361
  %374 = vrot.lane.b32.xlu0 %v371, 112
  %v375 = vpop.permute.xlu0 %374
  %v377 = vmul.f32 %v372, %v375
  %v378 = vrot.slane %v313, 6
  %v380 = vmul.f32 %v361, %v378
  %v381 = vadd.f32 %v377, %v380
  %v383 = vrot.slane %v381, 2
  %384 = vrot.lane.b32.xlu0 %v383, 112
  %v385 = vpop.permute.xlu0 %384
  %v386 = vsel %vm125, %v385, 0
  %388 = vmatpush.msra.mxu0 0.0
  %389 = vmatpush.msra.mxu0 0.0
  %390 = vmatpush.msra.mxu0 0.0
  %391 = vmatpush.msra.mxu0 0.0
  %392 = vmatpush.msra.mxu0 0.0
  %393 = vmatpush.msra.mxu0 0.0
  %394 = vmatpush.msra.mxu0 0.0
  %395 = vmatpush.msra.mxu0 0.0
  %396 = vmatpush.msra.mxu0 0.0
  %397 = vmatpush.msra.mxu0 0.0
  %398 = vmatpush.msra.mxu0 0.0
  %399 = vmatpush.msra.mxu0 0.0
  %400 = vmatpush.msra.mxu0 0.0
  %401 = vmatpush.msra.mxu0 0.0
  %402 = vmatpush.msra.mxu0 %v241
  %403 = vmatpush.msra.mxu0 %v240
  %404 = vmatmul.f32.gmra.mxu0 %v386
  %v405 = vpop.f32.mrf.mxu0
  %v406 = vadd.f32 %v248, %v405
  %407 = vdwg.mxu0
  %v409 = vrot.slane %v406, 4
  %v411 = vadd.f32 %v234, %v409
  %v412 = vxor.u32 %v411, 2147483648
  %v413 = vmul.f32 %v412, 1.442695
  %v414 = vpow.pop %v413
  %v415 = vadd.f32 %v414, 1.0
  %v416 = vrcp.pop %v415
  %v417 = vmul.f32 %v415, %v416
  %v418 = vsub.f32 1.0, %v417
  %v419 = vmul.f32 %v416, %v418
  %v420 = vadd.f32 %v416, %v419
  %vm421 = vweird.f32 %v415
  %vm422 = vweird.f32 %v416
  %vm423 = vmor %vm421, %vm422
  %v424 = vsel %vm423, %v416, %v420
  %v425 = vand.u32 2147483647, %v415
  %vm426 = vcmp.eq.f32.partialorder %v425, 8.507059e+37
  %v427 = vand.u32 %v415, 2147483648
  %v428 = vor.u32 1.1754944e-38, %v427
  %v429 = vsel %vm426, %v428, %v424
  %v430 = vmul.f32 1.0, %v429
  %431 = vrot.lane.b32.xlu0 %v409, 96
  %v432 = vpop.permute.xlu0 %431
  %v434 = vmul.f32 %v430, %v432
  %436 = vrot.lane.b32.xlu0 %v434, 32
  %v437 = vpop.permute.xlu0 %436
  %v439 = vadd.f32 %v234, %v437
  %v440 = vtanh.pop %v439
  %v441 = vsub.f32 1.0, %v430
  %443 = vrot.lane.b32.xlu0 %v440, 112
  %v444 = vpop.permute.xlu0 %443
  %v446 = vmul.f32 %v441, %v444
  %v447 = vrot.slane %v381, 6
  %v449 = vmul.f32 %v430, %v447
  %v450 = vadd.f32 %v446, %v449
  %v452 = vrot.slane %v450, 4
  %453 = vrot.lane.b32.xlu0 %v452, 112
  %v454 = vpop.permute.xlu0 %453
  %v455 = vsel %vm125, %v454, 0
  %457 = vmatpush.msra.mxu0 0.0
  %458 = vmatpush.msra.mxu0 0.0
  %459 = vmatpush.msra.mxu0 0.0
  %460 = vmatpush.msra.mxu0 0.0
  %461 = vmatpush.msra.mxu0 0.0
  %462 = vmatpush.msra.mxu0 0.0
  %463 = vmatpush.msra.mxu0 0.0
  %464 = vmatpush.msra.mxu0 0.0
  %465 = vmatpush.msra.mxu0 0.0
  %466 = vmatpush.msra.mxu0 0.0
  %467 = vmatpush.msra.mxu0 0.0
  %468 = vmatpush.msra.mxu0 0.0
  %469 = vmatpush.msra.mxu0 0.0
  %470 = vmatpush.msra.mxu0 0.0
  %471 = vmatpush.msra.mxu0 %v241
  %472 = vmatpush.msra.mxu0 %v240
  %473 = vmatmul.f32.gmra.mxu0 %v455
  %v474 = vpop.f32.mrf.mxu0
  %v475 = vadd.f32 %v248, %v474
  %476 = vdwg.mxu0
  %v478 = vrot.slane %v475, 2
  %v480 = vadd.f32 %v234, %v478
  %v481 = vxor.u32 %v480, 2147483648
  %v482 = vmul.f32 %v481, 1.442695
  %v483 = vpow.pop %v482
  %v484 = vadd.f32 %v483, 1.0
  %v485 = vrcp.pop %v484
  %v486 = vmul.f32 %v484, %v485
  %v487 = vsub.f32 1.0, %v486
  %v488 = vmul.f32 %v485, %v487
  %v489 = vadd.f32 %v485, %v488
  %vm490 = vweird.f32 %v484
  %vm491 = vweird.f32 %v485
  %vm492 = vmor %vm490, %vm491
  %v493 = vsel %vm492, %v485, %v489
  %v494 = vand.u32 2147483647, %v484
  %vm495 = vcmp.eq.f32.partialorder %v494, 8.507059e+37
  %v496 = vand.u32 %v484, 2147483648
  %v497 = vor.u32 1.1754944e-38, %v496
  %v498 = vsel %vm495, %v497, %v493
  %v499 = vmul.f32 1.0, %v498
  %500 = vrot.lane.b32.xlu0 %v478, 96
  %v501 = vpop.permute.xlu0 %500
  %v503 = vmul.f32 %v499, %v501
  %505 = vrot.lane.b32.xlu0 %v503, 32
  %v506 = vpop.permute.xlu0 %505
  %v508 = vadd.f32 %v234, %v506
  %v509 = vtanh.pop %v508
  %v510 = vsub.f32 1.0, %v499
  %512 = vrot.lane.b32.xlu0 %v509, 112
  %v513 = vpop.permute.xlu0 %512
  %v515 = vmul.f32 %v510, %v513
  %v516 = vrot.slane %v450, 6
  %v518 = vmul.f32 %v499, %v516
  %v519 = vadd.f32 %v515, %v518
  %v521 = vrot.slane %v519, 6
  %522 = vrot.lane.b32.xlu0 %v521, 112
  %v523 = vpop.permute.xlu0 %522
  %v524 = vsel %vm125, %v523, 0
  %526 = vmatpush.msra.mxu0 0.0
  %527 = vmatpush.msra.mxu0 0.0
  %528 = vmatpush.msra.mxu0 0.0
  %529 = vmatpush.msra.mxu0 0.0
  %530 = vmatpush.msra.mxu0 0.0
  %531 = vmatpush.msra.mxu0 0.0
  %532 = vmatpush.msra.mxu0 0.0
  %533 = vmatpush.msra.mxu0 0.0
  %534 = vmatpush.msra.mxu0 0.0
  %535 = vmatpush.msra.mxu0 0.0
  %536 = vmatpush.msra.mxu0 0.0
  %537 = vmatpush.msra.mxu0 0.0
  %538 = vmatpush.msra.mxu0 0.0
  %539 = vmatpush.msra.mxu0 0.0
  %540 = vmatpush.msra.mxu0 %v241
  %541 = vmatpush.msra.mxu0 %v240
  %542 = vmatmul.f32.gmra.mxu0 %v524
  %v543 = vpop.f32.mrf.mxu0
  %v544 = vadd.f32 %v248, %v543
  %545 = vdwg.mxu0
  %v546 = vadd.f32 %v235, %v544
  %v547 = vxor.u32 %v546, 2147483648
  %v548 = vmul.f32 %v547, 1.442695
  %v549 = vpow.pop %v548
  %v550 = vadd.f32 %v549, 1.0
  %v551 = vrcp.pop %v550
  %v552 = vmul.f32 %v550, %v551
  %v553 = vsub.f32 1.0, %v552
  %v554 = vmul.f32 %v551, %v553
  %v555 = vadd.f32 %v551, %v554
  %vm556 = vweird.f32 %v550
  %vm557 = vweird.f32 %v551
  %vm558 = vmor %vm556, %vm557
  %v559 = vsel %vm558, %v551, %v555
  %v560 = vand.u32 2147483647, %v550
  %vm561 = vcmp.eq.f32.partialorder %v560, 8.507059e+37
  %v562 = vand.u32 %v550, 2147483648
  %v563 = vor.u32 1.1754944e-38, %v562
  %v564 = vsel %vm561, %v563, %v559
  %v565 = vmul.f32 1.0, %v564
  %567 = vrot.lane.b32.xlu0 %v544, 96
  %v568 = vpop.permute.xlu0 %567
  %v570 = vmul.f32 %v565, %v568
  %572 = vrot.lane.b32.xlu0 %v570, 32
  %v573 = vpop.permute.xlu0 %572
  %v575 = vadd.f32 %v235, %v573
  %v576 = vtanh.pop %v575
  %v577 = vsub.f32 1.0, %v565
  %579 = vrot.lane.b32.xlu0 %v576, 112
  %v580 = vpop.permute.xlu0 %579
  %v582 = vmul.f32 %v577, %v580
  %v584 = vmul.f32 %v565, %v521
  %v585 = vadd.f32 %v582, %v584
  %587 = vrot.lane.b32.xlu0 %v585, 112
  %v588 = vpop.permute.xlu0 %587
  %v589 = vsel %vm125, %v588, 0
  %591 = vmatpush.msra.mxu0 0.0
  %592 = vmatpush.msra.mxu0 0.0
  %593 = vmatpush.msra.mxu0 0.0
  %594 = vmatpush.msra.mxu0 0.0
  %595 = vmatpush.msra.mxu0 0.0
  %596 = vmatpush.msra.mxu0 0.0
  %597 = vmatpush.msra.mxu0 0.0
  %598 = vmatpush.msra.mxu0 0.0
  %599 = vmatpush.msra.mxu0 0.0
  %600 = vmatpush.msra.mxu0 0.0
  %601 = vmatpush.msra.mxu0 0.0
  %602 = vmatpush.msra.mxu0 0.0
  %603 = vmatpush.msra.mxu0 0.0
  %604 = vmatpush.msra.mxu0 0.0
  %605 = vmatpush.msra.mxu0 %v241
  %606 = vmatpush.msra.mxu0 %v240
  %607 = vmatmul.f32.gmra.mxu0 %v589
  %v608 = vpop.f32.mrf.mxu0
  %v609 = vadd.f32 %v248, %v608
  %610 = vdwg.mxu0
  %v612 = vrot.slane %v609, 6
  %v614 = vadd.f32 %v235, %v612
  %v615 = vxor.u32 %v614, 2147483648
  %v616 = vmul.f32 %v615, 1.442695
  %v617 = vpow.pop %v616
  %v618 = vadd.f32 %v617, 1.0
  %v619 = vrcp.pop %v618
  %v620 = vmul.f32 %v618, %v619
  %v621 = vsub.f32 1.0, %v620
  %v622 = vmul.f32 %v619, %v621
  %v623 = vadd.f32 %v619, %v622
  %vm624 = vweird.f32 %v618
  %vm625 = vweird.f32 %v619
  %vm626 = vmor %vm624, %vm625
  %v627 = vsel %vm626, %v619, %v623
  %v628 = vand.u32 2147483647, %v618
  %vm629 = vcmp.eq.f32.partialorder %v628, 8.507059e+37
  %v630 = vand.u32 %v618, 2147483648
  %v631 = vor.u32 1.1754944e-38, %v630
  %v632 = vsel %vm629, %v631, %v627
  %v633 = vmul.f32 1.0, %v632
  %634 = vrot.lane.b32.xlu0 %v612, 96
  %v635 = vpop.permute.xlu0 %634
  %v637 = vmul.f32 %v633, %v635
  %639 = vrot.lane.b32.xlu0 %v637, 32
  %v640 = vpop.permute.xlu0 %639
  %v642 = vadd.f32 %v235, %v640
  %v643 = vtanh.pop %v642
  %v644 = vsub.f32 1.0, %v633
  %646 = vrot.lane.b32.xlu0 %v643, 112
  %v647 = vpop.permute.xlu0 %646
  %v649 = vmul.f32 %v644, %v647
  %v650 = vrot.slane %v585, 6
  %v652 = vmul.f32 %v633, %v650
  %v653 = vadd.f32 %v649, %v652
  %v655 = vrot.slane %v653, 2
  %656 = vrot.lane.b32.xlu0 %v655, 112
  %v657 = vpop.permute.xlu0 %656
  %v658 = vsel %vm125, %v657, 0
  %660 = vmatpush.msra.mxu0 0.0
  %661 = vmatpush.msra.mxu0 0.0
  %662 = vmatpush.msra.mxu0 0.0
  %663 = vmatpush.msra.mxu0 0.0
  %664 = vmatpush.msra.mxu0 0.0
  %665 = vmatpush.msra.mxu0 0.0
  %666 = vmatpush.msra.mxu0 0.0
  %667 = vmatpush.msra.mxu0 0.0
  %668 = vmatpush.msra.mxu0 0.0
  %669 = vmatpush.msra.mxu0 0.0
  %670 = vmatpush.msra.mxu0 0.0
  %671 = vmatpush.msra.mxu0 0.0
  %672 = vmatpush.msra.mxu0 0.0
  %673 = vmatpush.msra.mxu0 0.0
  %674 = vmatpush.msra.mxu0 %v241
  %675 = vmatpush.msra.mxu0 %v240
  %676 = vmatmul.f32.gmra.mxu0 %v658
  %v677 = vpop.f32.mrf.mxu0
  %v678 = vadd.f32 %v248, %v677
  %679 = vdwg.mxu0
  %v681 = vrot.slane %v678, 4
  %v683 = vadd.f32 %v235, %v681
  %v684 = vxor.u32 %v683, 2147483648
  %v685 = vmul.f32 %v684, 1.442695
  %v686 = vpow.pop %v685
  %v687 = vadd.f32 %v686, 1.0
  %v688 = vrcp.pop %v687
  %v689 = vmul.f32 %v687, %v688
  %v690 = vsub.f32 1.0, %v689
  %v691 = vmul.f32 %v688, %v690
  %v692 = vadd.f32 %v688, %v691
  %vm693 = vweird.f32 %v687
  %vm694 = vweird.f32 %v688
  %vm695 = vmor %vm693, %vm694
  %v696 = vsel %vm695, %v688, %v692
  %v697 = vand.u32 2147483647, %v687
  %vm698 = vcmp.eq.f32.partialorder %v697, 8.507059e+37
  %v699 = vand.u32 %v687, 2147483648
  %v700 = vor.u32 1.1754944e-38, %v699
  %v701 = vsel %vm698, %v700, %v696
  %v702 = vmul.f32 1.0, %v701
  %703 = vrot.lane.b32.xlu0 %v681, 96
  %v704 = vpop.permute.xlu0 %703
  %v706 = vmul.f32 %v702, %v704
  %708 = vrot.lane.b32.xlu0 %v706, 32
  %v709 = vpop.permute.xlu0 %708
  %v711 = vadd.f32 %v235, %v709
  %v712 = vtanh.pop %v711
  %v713 = vsub.f32 1.0, %v702
  %715 = vrot.lane.b32.xlu0 %v712, 112
  %v716 = vpop.permute.xlu0 %715
  %v718 = vmul.f32 %v713, %v716
  %v719 = vrot.slane %v653, 6
  %v721 = vmul.f32 %v702, %v719
  %v722 = vadd.f32 %v718, %v721
  %v724 = vrot.slane %v722, 4
  %725 = vrot.lane.b32.xlu0 %v724, 112
  %v726 = vpop.permute.xlu0 %725
  %v727 = vsel %vm125, %v726, 0
  %729 = vmatpush.msra.mxu0 0.0
  %730 = vmatpush.msra.mxu0 0.0
  %731 = vmatpush.msra.mxu0 0.0
  %732 = vmatpush.msra.mxu0 0.0
  %733 = vmatpush.msra.mxu0 0.0
  %734 = vmatpush.msra.mxu0 0.0
  %735 = vmatpush.msra.mxu0 0.0
  %736 = vmatpush.msra.mxu0 0.0
  %737 = vmatpush.msra.mxu0 0.0
  %738 = vmatpush.msra.mxu0 0.0
  %739 = vmatpush.msra.mxu0 0.0
  %740 = vmatpush.msra.mxu0 0.0
  %741 = vmatpush.msra.mxu0 0.0
  %742 = vmatpush.msra.mxu0 0.0
  %743 = vmatpush.msra.mxu0 %v241
  %744 = vmatpush.msra.mxu0 %v240
  %745 = vmatmul.f32.gmra.mxu0 %v727
  %v746 = vpop.f32.mrf.mxu0
  %v747 = vadd.f32 %v248, %v746
  %748 = vdwg.mxu0
  %v750 = vrot.slane %v747, 2
  %v752 = vadd.f32 %v235, %v750
  %v753 = vxor.u32 %v752, 2147483648
  %v754 = vmul.f32 %v753, 1.442695
  %v755 = vpow.pop %v754
  %v756 = vadd.f32 %v755, 1.0
  %v757 = vrcp.pop %v756
  %v758 = vmul.f32 %v756, %v757
  %v759 = vsub.f32 1.0, %v758
  %v760 = vmul.f32 %v757, %v759
  %v761 = vadd.f32 %v757, %v760
  %vm762 = vweird.f32 %v756
  %vm763 = vweird.f32 %v757
  %vm764 = vmor %vm762, %vm763
  %v765 = vsel %vm764, %v757, %v761
  %v766 = vand.u32 2147483647, %v756
  %vm767 = vcmp.eq.f32.partialorder %v766, 8.507059e+37
  %v768 = vand.u32 %v756, 2147483648
  %v769 = vor.u32 1.1754944e-38, %v768
  %v770 = vsel %vm767, %v769, %v765
  %v771 = vmul.f32 1.0, %v770
  %772 = vrot.lane.b32.xlu0 %v750, 96
  %v773 = vpop.permute.xlu0 %772
  %v775 = vmul.f32 %v771, %v773
  %777 = vrot.lane.b32.xlu0 %v775, 32
  %v778 = vpop.permute.xlu0 %777
  %v780 = vadd.f32 %v235, %v778
  %v781 = vtanh.pop %v780
  %v782 = vsub.f32 1.0, %v771
  %784 = vrot.lane.b32.xlu0 %v781, 112
  %v785 = vpop.permute.xlu0 %784
  %v787 = vmul.f32 %v782, %v785
  %v788 = vrot.slane %v722, 6
  %v790 = vmul.f32 %v771, %v788
  %v791 = vadd.f32 %v787, %v790
  %v794 = vrot.slane %v791, 6
  %795 = vrot.lane.b32.xlu0 %v794, 112
  %v796 = vpop.permute.xlu0 %795
  %vm798 = vcmask 64512
  %v799 = vsel %vm798, %v316, %v796
  %800 = vrot.lane.b32.xlu0 %v381, 112
  %v801 = vpop.permute.xlu0 %800
  %v803 = vrot.slane %v722, 2
  %804 = vrot.lane.b32.xlu0 %v803, 112
  %v805 = vpop.permute.xlu0 %804
  %v807 = vsel %vm798, %v801, %v805
  %808 = vrot.lane.b32.xlu0 %v450, 112
  %v809 = vpop.permute.xlu0 %808
  %811 = vrot.lane.b32.xlu0 %v719, 112
  %v812 = vpop.permute.xlu0 %811
  %v814 = vsel %vm798, %v809, %v812
  %815 = vrot.lane.b32.xlu0 %v519, 112
  %v816 = vpop.permute.xlu0 %815
  %v818 = vrot.slane %v585, 2
  %819 = vrot.lane.b32.xlu0 %v818, 112
  %v820 = vpop.permute.xlu0 %819
  %v822 = vsel %vm798, %v816, %v820
  %v825 = vsel %vm798, %v588, %v523
  %826 = vrot.lane.b32.xlu0 %v653, 112
  %v827 = vpop.permute.xlu0 %826
  %v829 = vrot.slane %v450, 2
  %830 = vrot.lane.b32.xlu0 %v829, 112
  %v831 = vpop.permute.xlu0 %830
  %v833 = vsel %vm798, %v827, %v831
  %834 = vrot.lane.b32.xlu0 %v722, 112
  %v835 = vpop.permute.xlu0 %834
  %837 = vrot.lane.b32.xlu0 %v447, 112
  %v838 = vpop.permute.xlu0 %837
  %v840 = vsel %vm798, %v835, %v838
  %841 = vrot.lane.b32.xlu0 %v791, 112
  %v842 = vpop.permute.xlu0 %841
  %v844 = vrot.slane %v313, 2
  %845 = vrot.lane.b32.xlu0 %v844, 112
  %v846 = vpop.permute.xlu0 %845
  %v848 = vsel %vm798, %v842, %v846
  %v849 = vsel %vm64, %v799, %v807
  %vm850 = vcmask 1043456
  %v851 = vsel %vm850, %v849, %v814
  %vm852 = vcmask 1045504
  %v853 = vsel %vm852, %v851, %v822
  %v854 = vsel %vm64, %v825, %v833
  %v855 = vsel %vm850, %v854, %v840
  %v856 = vsel %vm852, %v855, %v848
  %v857 = vperm.slane %v245, 0
  %v859 = vsel %vm125, %v853, 0
  %v862 = vsel %vm125, %v856, 0
  %864 = vmatpush.msra.mxu0 0.0
  %865 = vmatpush.msra.mxu0 0.0
  %866 = vmatpush.msra.mxu0 0.0
  %867 = vmatpush.msra.mxu0 0.0
  %868 = vmatpush.msra.mxu0 0.0
  %869 = vmatpush.msra.mxu0 0.0
  %870 = vmatpush.msra.mxu0 0.0
  %871 = vmatpush.msra.mxu0 0.0
  %872 = vmatpush.msra.mxu0 0.0
  %873 = vmatpush.msra.mxu0 0.0
  %874 = vmatpush.msra.mxu0 0.0
  %875 = vmatpush.msra.mxu0 0.0
  %876 = vmatpush.msra.mxu0 0.0
  %877 = vmatpush.msra.mxu0 0.0
  %878 = vmatpush.msra.mxu0 %v244
  %879 = vmatpush.msra.mxu0 %v243
  %880 = vmatmul.f32.gmra.mxu0 %v859
  %v881 = vpop.f32.mrf.mxu0
  %v882 = vadd.f32 %v857, %v881
  %883 = vmatmul.f32.gmra.mxu0 %v862
  %v884 = vpop.f32.mrf.mxu0
  %v885 = vadd.f32 %v857, %v884
  %886 = vdwg.mxu0
  %v887 = vtanh.pop %v882
  %v888 = vtanh.pop %v885
  %v889 = vperm.slane %v246, 0
  %v890 = vmul.f32 %v887, %v889
  %v891 = vmul.f32 %v888, %v889
  %v892 = vsel %vm125, %v890, 0.0
  %893 = vadd.xlane.f32.xlu0 %v892
  %v894 = vpop.xlane.xlu0 %893
  %v895 = vsel %vm125, %v891, 0.0
  %896 = vadd.xlane.f32.xlu0 %v895
  %v897 = vpop.xlane.xlu0 %896
  %v899 = vrot.slane %v894, 2
  %v901 = vrot.slane %v894, 4
  %v903 = vrot.slane %v894, 6
  %v906 = vrot.slane %v897, 2
  %v908 = vrot.slane %v897, 4
  %v910 = vrot.slane %v897, 6
  %vm912 = vcmask 7168
  %v913 = vsel %vm912, %v894, %v899
  %vm914 = vcmask 15360
  %v915 = vsel %vm914, %v913, %v901
  %vm916 = vcmask 23552
  %v917 = vsel %vm916, %v915, %v903
  %vm918 = vcmask 31744
  %v919 = vsel %vm918, %v917, %v897
  %vm920 = vcmask 39936
  %v921 = vsel %vm920, %v919, %v906
  %vm922 = vcmask 48128
  %v923 = vsel %vm922, %v921, %v908
  %vm924 = vcmask 56320
  %v925 = vsel %vm924, %v923, %v910
  %vm926 = vcmask 58368
  %v927 = vsel %vm926, %v925, -inf
  %928 = vmax.xlane.f32.xlu0 %v927
  %v929 = vpop.xlane.xlu0 %928
  %v930 = vsub.f32 %v925, %v929
  %v931 = vmul.f32 %v930, 1.442695
  %v932 = vpow.pop %v931
  %v933 = vsel %vm926, %v932, 0.0
  %934 = vadd.xlane.f32.xlu0 %v933
  %v935 = vpop.xlane.xlu0 %934
  %v936 = vrcp.pop %v935
  %v937 = vmul.f32 %v932, %v936
  %939 = vset.pattern.permute.xlu0 0
  %940 = vperm.xlu0 %939, %v937
  %v941 = vpop.permute.xlu0 %940
  %v943 = vmul.f32 %v799, %v941
  %944 = vset.pattern.permute.xlu0 1
  %945 = vperm.xlu0 %944, %v937
  %v946 = vpop.permute.xlu0 %945
  %v947 = vrot.slane %v946, 6
  %v949 = vmul.f32 %v807, %v947
  %v951 = vrot.slane %v949, 2
  %v953 = vadd.f32 %v943, %v951
  %v955 = vrot.slane %v807, 2
  %v957 = vmax.f32 %v799, %v955
  %958 = vset.pattern.permute.xlu0 2
  %959 = vperm.xlu0 %958, %v937
  %v960 = vpop.permute.xlu0 %959
  %v961 = vrot.slane %v960, 4
  %v963 = vmul.f32 %v814, %v961
  %v965 = vrot.slane %v963, 4
  %v967 = vadd.f32 %v953, %v965
  %v969 = vrot.slane %v814, 4
  %v971 = vmax.f32 %v957, %v969
  %972 = vset.pattern.permute.xlu0 3
  %973 = vperm.xlu0 %972, %v937
  %v974 = vpop.permute.xlu0 %973
  %v975 = vrot.slane %v974, 2
  %v977 = vmul.f32 %v822, %v975
  %v979 = vrot.slane %v977, 6
  %v981 = vadd.f32 %v967, %v979
  %v983 = vrot.slane %v822, 6
  %v985 = vmax.f32 %v971, %v983
  %986 = vset.pattern.permute.xlu0 4
  %987 = vperm.xlu0 %986, %v937
  %v988 = vpop.permute.xlu0 %987
  %v990 = vmul.f32 %v825, %v988
  %v991 = vadd.f32 %v981, %v990
  %v992 = vmax.f32 %v985, %v825
  %993 = vset.pattern.permute.xlu0 5
  %994 = vperm.xlu0 %993, %v937
  %v995 = vpop.permute.xlu0 %994
  %v996 = vrot.slane %v995, 6
  %v998 = vmul.f32 %v833, %v996
  %v1000 = vrot.slane %v998, 2
  %v1002 = vadd.f32 %v991, %v1000
  %v1004 = vrot.slane %v833, 2
  %v1006 = vmax.f32 %v992, %v1004
  %1007 = vset.pattern.permute.xlu0 6
  %1008 = vperm.xlu0 %1007, %v937
  %v1009 = vpop.permute.xlu0 %1008
  %v1010 = vrot.slane %v1009, 4
  %v1012 = vmul.f32 %v840, %v1010
  %v1014 = vrot.slane %v1012, 4
  %v1016 = vadd.f32 %v1002, %v1014
  %v1018 = vrot.slane %v840, 4
  %v1020 = vmax.f32 %v1006, %v1018
  %1021 = vset.pattern.permute.xlu0 7
  %1022 = vperm.xlu0 %1021, %v937
  %v1023 = vpop.permute.xlu0 %1022
  %v1024 = vrot.slane %v1023, 2
  %v1026 = vmul.f32 %v848, %v1024
  %v1028 = vrot.slane %v1026, 6
  %v1030 = vadd.f32 %v1016, %v1028
  %v1032 = vrot.slane %v848, 6
  %v1034 = vmax.f32 %v1020, %v1032
  %1036 = vrot.lane.b32.xlu0 %v1030, 16
  %v1037 = vpop.permute.xlu0 %1036
  %v1039 = vsel %vm125, %v1034, %v1037
  %v1040 = vsel %vm125, %v796, 0
  %1042 = vmatpush.msra.mxu0 0.0
  %1043 = vmatpush.msra.mxu0 0.0
  %1044 = vmatpush.msra.mxu0 0.0
  %1045 = vmatpush.msra.mxu0 0.0
  %1046 = vmatpush.msra.mxu0 0.0
  %1047 = vmatpush.msra.mxu0 0.0
  %1048 = vmatpush.msra.mxu0 0.0
  %1049 = vmatpush.msra.mxu0 0.0
  %1050 = vmatpush.msra.mxu0 0.0
  %1051 = vmatpush.msra.mxu0 0.0
  %1052 = vmatpush.msra.mxu0 0.0
  %1053 = vmatpush.msra.mxu0 0.0
  %1054 = vmatpush.msra.mxu0 0.0
  %1055 = vmatpush.msra.mxu0 0.0
  %1056 = vmatpush.msra.mxu0 %v241
  %1057 = vmatpush.msra.mxu0 %v240
  %1058 = vmatmul.f32.gmra.mxu0 %v1040
  %v1059 = vpop.f32.mrf.mxu0
  %v1060 = vadd.f32 %v248, %v1059
  %1061 = vdwg.mxu0
  %v1062 = vadd.f32 %v236, %v1060
  %v1063 = vxor.u32 %v1062, 2147483648
  %v1064 = vmul.f32 %v1063, 1.442695
  %v1065 = vpow.pop %v1064
  %v1066 = vadd.f32 %v1065, 1.0
  %v1067 = vrcp.pop %v1066
  %v1068 = vmul.f32 %v1066, %v1067
  %v1069 = vsub.f32 1.0, %v1068
  %v1070 = vmul.f32 %v1067, %v1069
  %v1071 = vadd.f32 %v1067, %v1070
  %vm1072 = vweird.f32 %v1066
  %vm1073 = vweird.f32 %v1067
  %vm1074 = vmor %vm1072, %vm1073
  %v1075 = vsel %vm1074, %v1067, %v1071
  %v1076 = vand.u32 2147483647, %v1066
  %vm1077 = vcmp.eq.f32.partialorder %v1076, 8.507059e+37
  %v1078 = vand.u32 %v1066, 2147483648
  %v1079 = vor.u32 1.1754944e-38, %v1078
  %v1080 = vsel %vm1077, %v1079, %v1075
  %v1081 = vmul.f32 1.0, %v1080
  %1083 = vrot.lane.b32.xlu0 %v1060, 96
  %v1084 = vpop.permute.xlu0 %1083
  %v1086 = vmul.f32 %v1081, %v1084
  %1088 = vrot.lane.b32.xlu0 %v1086, 32
  %v1089 = vpop.permute.xlu0 %1088
  %v1091 = vadd.f32 %v236, %v1089
  %v1092 = vtanh.pop %v1091
  %v1093 = vsub.f32 1.0, %v1081
  %1095 = vrot.lane.b32.xlu0 %v1092, 112
  %v1096 = vpop.permute.xlu0 %1095
  %v1098 = vmul.f32 %v1093, %v1096
  %v1100 = vmul.f32 %v1081, %v794
  %v1101 = vadd.f32 %v1098, %v1100
  %1103 = vrot.lane.b32.xlu0 %v1101, 112
  %v1104 = vpop.permute.xlu0 %1103
  %v1105 = vsel %vm125, %v1104, 0
  %1107 = vmatpush.msra.mxu0 0.0
  %1108 = vmatpush.msra.mxu0 0.0
  %1109 = vmatpush.msra.mxu0 0.0
  %1110 = vmatpush.msra.mxu0 0.0
  %1111 = vmatpush.msra.mxu0 0.0
  %1112 = vmatpush.msra.mxu0 0.0
  %1113 = vmatpush.msra.mxu0 0.0
  %1114 = vmatpush.msra.mxu0 0.0
  %1115 = vmatpush.msra.mxu0 0.0
  %1116 = vmatpush.msra.mxu0 0.0
  %1117 = vmatpush.msra.mxu0 0.0
  %1118 = vmatpush.msra.mxu0 0.0
  %1119 = vmatpush.msra.mxu0 0.0
  %1120 = vmatpush.msra.mxu0 0.0
  %1121 = vmatpush.msra.mxu0 %v241
  %1122 = vmatpush.msra.mxu0 %v240
  %1123 = vmatmul.f32.gmra.mxu0 %v1105
  %v1124 = vpop.f32.mrf.mxu0
  %v1125 = vadd.f32 %v248, %v1124
  %1126 = vdwg.mxu0
  %v1128 = vrot.slane %v1125, 6
  %v1130 = vadd.f32 %v236, %v1128
  %v1131 = vxor.u32 %v1130, 2147483648
  %v1132 = vmul.f32 %v1131, 1.442695
  %v1133 = vpow.pop %v1132
  %v1134 = vadd.f32 %v1133, 1.0
  %v1135 = vrcp.pop %v1134
  %v1136 = vmul.f32 %v1134, %v1135
  %v1137 = vsub.f32 1.0, %v1136
  %v1138 = vmul.f32 %v1135, %v1137
  %v1139 = vadd.f32 %v1135, %v1138
  %vm1140 = vweird.f32 %v1134
  %vm1141 = vweird.f32 %v1135
  %vm1142 = vmor %vm1140, %vm1141
  %v1143 = vsel %vm1142, %v1135, %v1139
  %v1144 = vand.u32 2147483647, %v1134
  %vm1145 = vcmp.eq.f32.partialorder %v1144, 8.507059e+37
  %v1146 = vand.u32 %v1134, 2147483648
  %v1147 = vor.u32 1.1754944e-38, %v1146
  %v1148 = vsel %vm1145, %v1147, %v1143
  %v1149 = vmul.f32 1.0, %v1148
  %1150 = vrot.lane.b32.xlu0 %v1128, 96
  %v1151 = vpop.permute.xlu0 %1150
  %v1153 = vmul.f32 %v1149, %v1151
  %1155 = vrot.lane.b32.xlu0 %v1153, 32
  %v1156 = vpop.permute.xlu0 %1155
  %v1158 = vadd.f32 %v236, %v1156
  %v1159 = vtanh.pop %v1158
  %v1160 = vsub.f32 1.0, %v1149
  %1162 = vrot.lane.b32.xlu0 %v1159, 112
  %v1163 = vpop.permute.xlu0 %1162
  %v1165 = vmul.f32 %v1160, %v1163
  %v1166 = vrot.slane %v1101, 6
  %v1168 = vmul.f32 %v1149, %v1166
  %v1169 = vadd.f32 %v1165, %v1168
  %v1171 = vrot.slane %v1169, 2
  %1172 = vrot.lane.b32.xlu0 %v1171, 112
  %v1173 = vpop.permute.xlu0 %1172
  %v1174 = vsel %vm125, %v1173, 0
  %1176 = vmatpush.msra.mxu0 0.0
  %1177 = vmatpush.msra.mxu0 0.0
  %1178 = vmatpush.msra.mxu0 0.0
  %1179 = vmatpush.msra.mxu0 0.0
  %1180 = vmatpush.msra.mxu0 0.0
  %1181 = vmatpush.msra.mxu0 0.0
  %1182 = vmatpush.msra.mxu0 0.0
  %1183 = vmatpush.msra.mxu0 0.0
  %1184 = vmatpush.msra.mxu0 0.0
  %1185 = vmatpush.msra.mxu0 0.0
  %1186 = vmatpush.msra.mxu0 0.0
  %1187 = vmatpush.msra.mxu0 0.0
  %1188 = vmatpush.msra.mxu0 0.0
  %1189 = vmatpush.msra.mxu0 0.0
  %1190 = vmatpush.msra.mxu0 %v241
  %1191 = vmatpush.msra.mxu0 %v240
  %1192 = vmatmul.f32.gmra.mxu0 %v1174
  %v1193 = vpop.f32.mrf.mxu0
  %v1194 = vadd.f32 %v248, %v1193
  %1195 = vdwg.mxu0
  %v1197 = vrot.slane %v1194, 4
  %v1199 = vadd.f32 %v236, %v1197
  %v1200 = vxor.u32 %v1199, 2147483648
  %v1201 = vmul.f32 %v1200, 1.442695
  %v1202 = vpow.pop %v1201
  %v1203 = vadd.f32 %v1202, 1.0
  %v1204 = vrcp.pop %v1203
  %v1205 = vmul.f32 %v1203, %v1204
  %v1206 = vsub.f32 1.0, %v1205
  %v1207 = vmul.f32 %v1204, %v1206
  %v1208 = vadd.f32 %v1204, %v1207
  %vm1209 = vweird.f32 %v1203
  %vm1210 = vweird.f32 %v1204
  %vm1211 = vmor %vm1209, %vm1210
  %v1212 = vsel %vm1211, %v1204, %v1208
  %v1213 = vand.u32 2147483647, %v1203
  %vm1214 = vcmp.eq.f32.partialorder %v1213, 8.507059e+37
  %v1215 = vand.u32 %v1203, 2147483648
  %v1216 = vor.u32 1.1754944e-38, %v1215
  %v1217 = vsel %vm1214, %v1216, %v1212
  %v1218 = vmul.f32 1.0, %v1217
  %1219 = vrot.lane.b32.xlu0 %v1197, 96
  %v1220 = vpop.permute.xlu0 %1219
  %v1222 = vmul.f32 %v1218, %v1220
  %1224 = vrot.lane.b32.xlu0 %v1222, 32
  %v1225 = vpop.permute.xlu0 %1224
  %v1227 = vadd.f32 %v236, %v1225
  %v1228 = vtanh.pop %v1227
  %v1229 = vsub.f32 1.0, %v1218
  %1231 = vrot.lane.b32.xlu0 %v1228, 112
  %v1232 = vpop.permute.xlu0 %1231
  %v1234 = vmul.f32 %v1229, %v1232
  %v1235 = vrot.slane %v1169, 6
  %v1237 = vmul.f32 %v1218, %v1235
  %v1238 = vadd.f32 %v1234, %v1237
  %v1240 = vrot.slane %v1238, 4
  %1241 = vrot.lane.b32.xlu0 %v1240, 112
  %v1242 = vpop.permute.xlu0 %1241
  %v1243 = vsel %vm125, %v1242, 0
  %1245 = vmatpush.msra.mxu0 0.0
  %1246 = vmatpush.msra.mxu0 0.0
  %1247 = vmatpush.msra.mxu0 0.0
  %1248 = vmatpush.msra.mxu0 0.0
  %1249 = vmatpush.msra.mxu0 0.0
  %1250 = vmatpush.msra.mxu0 0.0
  %1251 = vmatpush.msra.mxu0 0.0
  %1252 = vmatpush.msra.mxu0 0.0
  %1253 = vmatpush.msra.mxu0 0.0
  %1254 = vmatpush.msra.mxu0 0.0
  %1255 = vmatpush.msra.mxu0 0.0
  %1256 = vmatpush.msra.mxu0 0.0
  %1257 = vmatpush.msra.mxu0 0.0
  %1258 = vmatpush.msra.mxu0 0.0
  %1259 = vmatpush.msra.mxu0 %v241
  %1260 = vmatpush.msra.mxu0 %v240
  %1261 = vmatmul.f32.gmra.mxu0 %v1243
  %v1262 = vpop.f32.mrf.mxu0
  %v1263 = vadd.f32 %v248, %v1262
  %1264 = vdwg.mxu0
  %v1266 = vrot.slane %v1263, 2
  %v1268 = vadd.f32 %v236, %v1266
  %v1269 = vxor.u32 %v1268, 2147483648
  %v1270 = vmul.f32 %v1269, 1.442695
  %v1271 = vpow.pop %v1270
  %v1272 = vadd.f32 %v1271, 1.0
  %v1273 = vrcp.pop %v1272
  %v1274 = vmul.f32 %v1272, %v1273
  %v1275 = vsub.f32 1.0, %v1274
  %v1276 = vmul.f32 %v1273, %v1275
  %v1277 = vadd.f32 %v1273, %v1276
  %vm1278 = vweird.f32 %v1272
  %vm1279 = vweird.f32 %v1273
  %vm1280 = vmor %vm1278, %vm1279
  %v1281 = vsel %vm1280, %v1273, %v1277
  %v1282 = vand.u32 2147483647, %v1272
  %vm1283 = vcmp.eq.f32.partialorder %v1282, 8.507059e+37
  %v1284 = vand.u32 %v1272, 2147483648
  %v1285 = vor.u32 1.1754944e-38, %v1284
  %v1286 = vsel %vm1283, %v1285, %v1281
  %v1287 = vmul.f32 1.0, %v1286
  %1288 = vrot.lane.b32.xlu0 %v1266, 96
  %v1289 = vpop.permute.xlu0 %1288
  %v1291 = vmul.f32 %v1287, %v1289
  %1293 = vrot.lane.b32.xlu0 %v1291, 32
  %v1294 = vpop.permute.xlu0 %1293
  %v1296 = vadd.f32 %v236, %v1294
  %v1297 = vtanh.pop %v1296
  %v1298 = vsub.f32 1.0, %v1287
  %1300 = vrot.lane.b32.xlu0 %v1297, 112
  %v1301 = vpop.permute.xlu0 %1300
  %v1303 = vmul.f32 %v1298, %v1301
  %v1304 = vrot.slane %v1238, 6
  %v1306 = vmul.f32 %v1287, %v1304
  %v1307 = vadd.f32 %v1303, %v1306
  %v1309 = vrot.slane %v1307, 6
  %1310 = vrot.lane.b32.xlu0 %v1309, 112
  %v1311 = vpop.permute.xlu0 %1310
  %v1312 = vsel %vm125, %v1311, 0
  %1314 = vmatpush.msra.mxu0 0.0
  %1315 = vmatpush.msra.mxu0 0.0
  %1316 = vmatpush.msra.mxu0 0.0
  %1317 = vmatpush.msra.mxu0 0.0
  %1318 = vmatpush.msra.mxu0 0.0
  %1319 = vmatpush.msra.mxu0 0.0
  %1320 = vmatpush.msra.mxu0 0.0
  %1321 = vmatpush.msra.mxu0 0.0
  %1322 = vmatpush.msra.mxu0 0.0
  %1323 = vmatpush.msra.mxu0 0.0
  %1324 = vmatpush.msra.mxu0 0.0
  %1325 = vmatpush.msra.mxu0 0.0
  %1326 = vmatpush.msra.mxu0 0.0
  %1327 = vmatpush.msra.mxu0 0.0
  %1328 = vmatpush.msra.mxu0 %v241
  %1329 = vmatpush.msra.mxu0 %v240
  %1330 = vmatmul.f32.gmra.mxu0 %v1312
  %v1331 = vpop.f32.mrf.mxu0
  %v1332 = vadd.f32 %v248, %v1331
  %1333 = vdwg.mxu0
  %v1334 = vadd.f32 %v237, %v1332
  %v1335 = vxor.u32 %v1334, 2147483648
  %v1336 = vmul.f32 %v1335, 1.442695
  %v1337 = vpow.pop %v1336
  %v1338 = vadd.f32 %v1337, 1.0
  %v1339 = vrcp.pop %v1338
  %v1340 = vmul.f32 %v1338, %v1339
  %v1341 = vsub.f32 1.0, %v1340
  %v1342 = vmul.f32 %v1339, %v1341
  %v1343 = vadd.f32 %v1339, %v1342
  %vm1344 = vweird.f32 %v1338
  %vm1345 = vweird.f32 %v1339
  %vm1346 = vmor %vm1344, %vm1345
  %v1347 = vsel %vm1346, %v1339, %v1343
  %v1348 = vand.u32 2147483647, %v1338
  %vm1349 = vcmp.eq.f32.partialorder %v1348, 8.507059e+37
  %v1350 = vand.u32 %v1338, 2147483648
  %v1351 = vor.u32 1.1754944e-38, %v1350
  %v1352 = vsel %vm1349, %v1351, %v1347
  %v1353 = vmul.f32 1.0, %v1352
  %1355 = vrot.lane.b32.xlu0 %v1332, 96
  %v1356 = vpop.permute.xlu0 %1355
  %v1358 = vmul.f32 %v1353, %v1356
  %1360 = vrot.lane.b32.xlu0 %v1358, 32
  %v1361 = vpop.permute.xlu0 %1360
  %v1363 = vadd.f32 %v237, %v1361
  %v1364 = vtanh.pop %v1363
  %v1365 = vsub.f32 1.0, %v1353
  %1367 = vrot.lane.b32.xlu0 %v1364, 112
  %v1368 = vpop.permute.xlu0 %1367
  %v1370 = vmul.f32 %v1365, %v1368
  %v1372 = vmul.f32 %v1353, %v1309
  %v1373 = vadd.f32 %v1370, %v1372
  %1375 = vrot.lane.b32.xlu0 %v1373, 112
  %v1376 = vpop.permute.xlu0 %1375
  %v1377 = vsel %vm125, %v1376, 0
  %1379 = vmatpush.msra.mxu0 0.0
  %1380 = vmatpush.msra.mxu0 0.0
  %1381 = vmatpush.msra.mxu0 0.0
  %1382 = vmatpush.msra.mxu0 0.0
  %1383 = vmatpush.msra.mxu0 0.0
  %1384 = vmatpush.msra.mxu0 0.0
  %1385 = vmatpush.msra.mxu0 0.0
  %1386 = vmatpush.msra.mxu0 0.0
  %1387 = vmatpush.msra.mxu0 0.0
  %1388 = vmatpush.msra.mxu0 0.0
  %1389 = vmatpush.msra.mxu0 0.0
  %1390 = vmatpush.msra.mxu0 0.0
  %1391 = vmatpush.msra.mxu0 0.0
  %1392 = vmatpush.msra.mxu0 0.0
  %1393 = vmatpush.msra.mxu0 %v241
  %1394 = vmatpush.msra.mxu0 %v240
  %1395 = vmatmul.f32.gmra.mxu0 %v1377
  %v1396 = vpop.f32.mrf.mxu0
  %v1397 = vadd.f32 %v248, %v1396
  %1398 = vdwg.mxu0
  %v1400 = vrot.slane %v1397, 6
  %v1402 = vadd.f32 %v237, %v1400
  %v1403 = vxor.u32 %v1402, 2147483648
  %v1404 = vmul.f32 %v1403, 1.442695
  %v1405 = vpow.pop %v1404
  %v1406 = vadd.f32 %v1405, 1.0
  %v1407 = vrcp.pop %v1406
  %v1408 = vmul.f32 %v1406, %v1407
  %v1409 = vsub.f32 1.0, %v1408
  %v1410 = vmul.f32 %v1407, %v1409
  %v1411 = vadd.f32 %v1407, %v1410
  %vm1412 = vweird.f32 %v1406
  %vm1413 = vweird.f32 %v1407
  %vm1414 = vmor %vm1412, %vm1413
  %v1415 = vsel %vm1414, %v1407, %v1411
  %v1416 = vand.u32 2147483647, %v1406
  %vm1417 = vcmp.eq.f32.partialorder %v1416, 8.507059e+37
  %v1418 = vand.u32 %v1406, 2147483648
  %v1419 = vor.u32 1.1754944e-38, %v1418
  %v1420 = vsel %vm1417, %v1419, %v1415
  %v1421 = vmul.f32 1.0, %v1420
  %1422 = vrot.lane.b32.xlu0 %v1400, 96
  %v1423 = vpop.permute.xlu0 %1422
  %v1425 = vmul.f32 %v1421, %v1423
  %1427 = vrot.lane.b32.xlu0 %v1425, 32
  %v1428 = vpop.permute.xlu0 %1427
  %v1430 = vadd.f32 %v237, %v1428
  %v1431 = vtanh.pop %v1430
  %v1432 = vsub.f32 1.0, %v1421
  %1434 = vrot.lane.b32.xlu0 %v1431, 112
  %v1435 = vpop.permute.xlu0 %1434
  %v1437 = vmul.f32 %v1432, %v1435
  %v1438 = vrot.slane %v1373, 6
  %v1440 = vmul.f32 %v1421, %v1438
  %v1441 = vadd.f32 %v1437, %v1440
  %v1443 = vrot.slane %v1441, 2
  %1444 = vrot.lane.b32.xlu0 %v1443, 112
  %v1445 = vpop.permute.xlu0 %1444
  %v1446 = vsel %vm125, %v1445, 0
  %1448 = vmatpush.msra.mxu0 0.0
  %1449 = vmatpush.msra.mxu0 0.0
  %1450 = vmatpush.msra.mxu0 0.0
  %1451 = vmatpush.msra.mxu0 0.0
  %1452 = vmatpush.msra.mxu0 0.0
  %1453 = vmatpush.msra.mxu0 0.0
  %1454 = vmatpush.msra.mxu0 0.0
  %1455 = vmatpush.msra.mxu0 0.0
  %1456 = vmatpush.msra.mxu0 0.0
  %1457 = vmatpush.msra.mxu0 0.0
  %1458 = vmatpush.msra.mxu0 0.0
  %1459 = vmatpush.msra.mxu0 0.0
  %1460 = vmatpush.msra.mxu0 0.0
  %1461 = vmatpush.msra.mxu0 0.0
  %1462 = vmatpush.msra.mxu0 %v241
  %1463 = vmatpush.msra.mxu0 %v240
  %1464 = vmatmul.f32.gmra.mxu0 %v1446
  %v1465 = vpop.f32.mrf.mxu0
  %v1466 = vadd.f32 %v248, %v1465
  %1467 = vdwg.mxu0
  %v1469 = vrot.slane %v1466, 4
  %v1471 = vadd.f32 %v237, %v1469
  %v1472 = vxor.u32 %v1471, 2147483648
  %v1473 = vmul.f32 %v1472, 1.442695
  %v1474 = vpow.pop %v1473
  %v1475 = vadd.f32 %v1474, 1.0
  %v1476 = vrcp.pop %v1475
  %v1477 = vmul.f32 %v1475, %v1476
  %v1478 = vsub.f32 1.0, %v1477
  %v1479 = vmul.f32 %v1476, %v1478
  %v1480 = vadd.f32 %v1476, %v1479
  %vm1481 = vweird.f32 %v1475
  %vm1482 = vweird.f32 %v1476
  %vm1483 = vmor %vm1481, %vm1482
  %v1484 = vsel %vm1483, %v1476, %v1480
  %v1485 = vand.u32 2147483647, %v1475
  %vm1486 = vcmp.eq.f32.partialorder %v1485, 8.507059e+37
  %v1487 = vand.u32 %v1475, 2147483648
  %v1488 = vor.u32 1.1754944e-38, %v1487
  %v1489 = vsel %vm1486, %v1488, %v1484
  %v1490 = vmul.f32 1.0, %v1489
  %1491 = vrot.lane.b32.xlu0 %v1469, 96
  %v1492 = vpop.permute.xlu0 %1491
  %v1494 = vmul.f32 %v1490, %v1492
  %1496 = vrot.lane.b32.xlu0 %v1494, 32
  %v1497 = vpop.permute.xlu0 %1496
  %v1499 = vadd.f32 %v237, %v1497
  %v1500 = vtanh.pop %v1499
  %v1501 = vsub.f32 1.0, %v1490
  %1503 = vrot.lane.b32.xlu0 %v1500, 112
  %v1504 = vpop.permute.xlu0 %1503
  %v1506 = vmul.f32 %v1501, %v1504
  %v1507 = vrot.slane %v1441, 6
  %v1509 = vmul.f32 %v1490, %v1507
  %v1510 = vadd.f32 %v1506, %v1509
  %v1512 = vrot.slane %v1510, 4
  %1513 = vrot.lane.b32.xlu0 %v1512, 112
  %v1514 = vpop.permute.xlu0 %1513
  %v1515 = vsel %vm125, %v1514, 0
  %1517 = vmatpush.msra.mxu0 0.0
  %1518 = vmatpush.msra.mxu0 0.0
  %1519 = vmatpush.msra.mxu0 0.0
  %1520 = vmatpush.msra.mxu0 0.0
  %1521 = vmatpush.msra.mxu0 0.0
  %1522 = vmatpush.msra.mxu0 0.0
  %1523 = vmatpush.msra.mxu0 0.0
  %1524 = vmatpush.msra.mxu0 0.0
  %1525 = vmatpush.msra.mxu0 0.0
  %1526 = vmatpush.msra.mxu0 0.0
  %1527 = vmatpush.msra.mxu0 0.0
  %1528 = vmatpush.msra.mxu0 0.0
  %1529 = vmatpush.msra.mxu0 0.0
  %1530 = vmatpush.msra.mxu0 0.0
  %1531 = vmatpush.msra.mxu0 %v241
  %1532 = vmatpush.msra.mxu0 %v240
  %1533 = vmatmul.f32.gmra.mxu0 %v1515
  %v1534 = vpop.f32.mrf.mxu0
  %v1535 = vadd.f32 %v248, %v1534
  %1536 = vdwg.mxu0
  %v1538 = vrot.slane %v1535, 2
  %v1540 = vadd.f32 %v237, %v1538
  %v1541 = vxor.u32 %v1540, 2147483648
  %v1542 = vmul.f32 %v1541, 1.442695
  %v1543 = vpow.pop %v1542
  %v1544 = vadd.f32 %v1543, 1.0
  %v1545 = vrcp.pop %v1544
  %v1546 = vmul.f32 %v1544, %v1545
  %v1547 = vsub.f32 1.0, %v1546
  %v1548 = vmul.f32 %v1545, %v1547
  %v1549 = vadd.f32 %v1545, %v1548
  %vm1550 = vweird.f32 %v1544
  %vm1551 = vweird.f32 %v1545
  %vm1552 = vmor %vm1550, %vm1551
  %v1553 = vsel %vm1552, %v1545, %v1549
  %v1554 = vand.u32 2147483647, %v1544
  %vm1555 = vcmp.eq.f32.partialorder %v1554, 8.507059e+37
  %v1556 = vand.u32 %v1544, 2147483648
  %v1557 = vor.u32 1.1754944e-38, %v1556
  %v1558 = vsel %vm1555, %v1557, %v1553
  %v1559 = vmul.f32 1.0, %v1558
  %1560 = vrot.lane.b32.xlu0 %v1538, 96
  %v1561 = vpop.permute.xlu0 %1560
  %v1563 = vmul.f32 %v1559, %v1561
  %1565 = vrot.lane.b32.xlu0 %v1563, 32
  %v1566 = vpop.permute.xlu0 %1565
  %v1568 = vadd.f32 %v237, %v1566
  %v1569 = vtanh.pop %v1568
  %v1570 = vsub.f32 1.0, %v1559
  %1572 = vrot.lane.b32.xlu0 %v1569, 112
  %v1573 = vpop.permute.xlu0 %1572
  %v1575 = vmul.f32 %v1570, %v1573
  %v1576 = vrot.slane %v1510, 6
  %v1578 = vmul.f32 %v1559, %v1576
  %v1579 = vadd.f32 %v1575, %v1578
  %v1582 = vrot.slane %v1579, 6
  %1583 = vrot.lane.b32.xlu0 %v1582, 112
  %v1584 = vpop.permute.xlu0 %1583
  %v1586 = vsel %vm798, %v1104, %v1584
  %1587 = vrot.lane.b32.xlu0 %v1169, 112
  %v1588 = vpop.permute.xlu0 %1587
  %v1590 = vrot.slane %v1510, 2
  %1591 = vrot.lane.b32.xlu0 %v1590, 112
  %v1592 = vpop.permute.xlu0 %1591
  %v1594 = vsel %vm798, %v1588, %v1592
  %1595 = vrot.lane.b32.xlu0 %v1238, 112
  %v1596 = vpop.permute.xlu0 %1595
  %1598 = vrot.lane.b32.xlu0 %v1507, 112
  %v1599 = vpop.permute.xlu0 %1598
  %v1601 = vsel %vm798, %v1596, %v1599
  %1602 = vrot.lane.b32.xlu0 %v1307, 112
  %v1603 = vpop.permute.xlu0 %1602
  %v1605 = vrot.slane %v1373, 2
  %1606 = vrot.lane.b32.xlu0 %v1605, 112
  %v1607 = vpop.permute.xlu0 %1606
  %v1609 = vsel %vm798, %v1603, %v1607
  %v1612 = vsel %vm798, %v1376, %v1311
  %1613 = vrot.lane.b32.xlu0 %v1441, 112
  %v1614 = vpop.permute.xlu0 %1613
  %v1616 = vrot.slane %v1238, 2
  %1617 = vrot.lane.b32.xlu0 %v1616, 112
  %v1618 = vpop.permute.xlu0 %1617
  %v1620 = vsel %vm798, %v1614, %v1618
  %1621 = vrot.lane.b32.xlu0 %v1510, 112
  %v1622 = vpop.permute.xlu0 %1621
  %1624 = vrot.lane.b32.xlu0 %v1235, 112
  %v1625 = vpop.permute.xlu0 %1624
  %v1627 = vsel %vm798, %v1622, %v1625
  %1628 = vrot.lane.b32.xlu0 %v1579, 112
  %v1629 = vpop.permute.xlu0 %1628
  %v1631 = vrot.slane %v1101, 2
  %1632 = vrot.lane.b32.xlu0 %v1631, 112
  %v1633 = vpop.permute.xlu0 %1632
  %v1635 = vsel %vm798, %v1629, %v1633
  %v1636 = vsel %vm64, %v1586, %v1594
  %v1637 = vsel %vm850, %v1636, %v1601
  %v1638 = vsel %vm852, %v1637, %v1609
  %v1639 = vsel %vm64, %v1612, %v1620
  %v1640 = vsel %vm850, %v1639, %v1627
  %v1641 = vsel %vm852, %v1640, %v1635
  %v1643 = vsel %vm125, %v1638, 0
  %v1646 = vsel %vm125, %v1641, 0
  %1648 = vmatpush.msra.mxu0 0.0
  %1649 = vmatpush.msra.mxu0 0.0
  %1650 = vmatpush.msra.mxu0 0.0
  %1651 = vmatpush.msra.mxu0 0.0
  %1652 = vmatpush.msra.mxu0 0.0
  %1653 = vmatpush.msra.mxu0 0.0
  %1654 = vmatpush.msra.mxu0 0.0
  %1655 = vmatpush.msra.mxu0 0.0
  %1656 = vmatpush.msra.mxu0 0.0
  %1657 = vmatpush.msra.mxu0 0.0
  %1658 = vmatpush.msra.mxu0 0.0
  %1659 = vmatpush.msra.mxu0 0.0
  %1660 = vmatpush.msra.mxu0 0.0
  %1661 = vmatpush.msra.mxu0 0.0
  %1662 = vmatpush.msra.mxu0 %v244
  %1663 = vmatpush.msra.mxu0 %v243
  %1664 = vmatmul.f32.gmra.mxu0 %v1643
  %v1665 = vpop.f32.mrf.mxu0
  %v1666 = vadd.f32 %v857, %v1665
  %1667 = vmatmul.f32.gmra.mxu0 %v1646
  %v1668 = vpop.f32.mrf.mxu0
  %v1669 = vadd.f32 %v857, %v1668
  %1670 = vdwg.mxu0
  %v1671 = vtanh.pop %v1666
  %v1672 = vtanh.pop %v1669
  %v1673 = vmul.f32 %v1671, %v889
  %v1674 = vmul.f32 %v1672, %v889
  %v1675 = vsel %vm125, %v1673, 0.0
  %1676 = vadd.xlane.f32.xlu0 %v1675
  %v1677 = vpop.xlane.xlu0 %1676
  %v1678 = vsel %vm125, %v1674, 0.0
  %1679 = vadd.xlane.f32.xlu0 %v1678
  %v1680 = vpop.xlane.xlu0 %1679
  %v1682 = vrot.slane %v1677, 2
  %v1684 = vrot.slane %v1677, 4
  %v1686 = vrot.slane %v1677, 6
  %v1689 = vrot.slane %v1680, 2
  %v1691 = vrot.slane %v1680, 4
  %v1693 = vrot.slane %v1680, 6
  %v1695 = vsel %vm912, %v1677, %v1682
  %v1696 = vsel %vm914, %v1695, %v1684
  %v1697 = vsel %vm916, %v1696, %v1686
  %v1698 = vsel %vm918, %v1697, %v1680
  %v1699 = vsel %vm920, %v1698, %v1689
  %v1700 = vsel %vm922, %v1699, %v1691
  %v1701 = vsel %vm924, %v1700, %v1693
  %v1702 = vsel %vm926, %v1701, -inf
  %1703 = vmax.xlane.f32.xlu0 %v1702
  %v1704 = vpop.xlane.xlu0 %1703
  %v1705 = vsub.f32 %v1701, %v1704
  %v1706 = vmul.f32 %v1705, 1.442695
  %v1707 = vpow.pop %v1706
  %v1708 = vsel %vm926, %v1707, 0.0
  %1709 = vadd.xlane.f32.xlu0 %v1708
  %v1710 = vpop.xlane.xlu0 %1709
  %v1711 = vrcp.pop %v1710
  %v1712 = vmul.f32 %v1707, %v1711
  %1714 = vset.pattern.permute.xlu0 0
  %1715 = vperm.xlu0 %1714, %v1712
  %v1716 = vpop.permute.xlu0 %1715
  %v1718 = vmul.f32 %v1586, %v1716
  %1719 = vset.pattern.permute.xlu0 1
  %1720 = vperm.xlu0 %1719, %v1712
  %v1721 = vpop.permute.xlu0 %1720
  %v1722 = vrot.slane %v1721, 6
  %v1724 = vmul.f32 %v1594, %v1722
  %v1726 = vrot.slane %v1724, 2
  %v1728 = vadd.f32 %v1718, %v1726
  %v1730 = vrot.slane %v1594, 2
  %v1732 = vmax.f32 %v1586, %v1730
  %1733 = vset.pattern.permute.xlu0 2
  %1734 = vperm.xlu0 %1733, %v1712
  %v1735 = vpop.permute.xlu0 %1734
  %v1736 = vrot.slane %v1735, 4
  %v1738 = vmul.f32 %v1601, %v1736
  %v1740 = vrot.slane %v1738, 4
  %v1742 = vadd.f32 %v1728, %v1740
  %v1744 = vrot.slane %v1601, 4
  %v1746 = vmax.f32 %v1732, %v1744
  %1747 = vset.pattern.permute.xlu0 3
  %1748 = vperm.xlu0 %1747, %v1712
  %v1749 = vpop.permute.xlu0 %1748
  %v1750 = vrot.slane %v1749, 2
  %v1752 = vmul.f32 %v1609, %v1750
  %v1754 = vrot.slane %v1752, 6
  %v1756 = vadd.f32 %v1742, %v1754
  %v1758 = vrot.slane %v1609, 6
  %v1760 = vmax.f32 %v1746, %v1758
  %1761 = vset.pattern.permute.xlu0 4
  %1762 = vperm.xlu0 %1761, %v1712
  %v1763 = vpop.permute.xlu0 %1762
  %v1765 = vmul.f32 %v1612, %v1763
  %v1766 = vadd.f32 %v1756, %v1765
  %v1767 = vmax.f32 %v1760, %v1612
  %1768 = vset.pattern.permute.xlu0 5
  %1769 = vperm.xlu0 %1768, %v1712
  %v1770 = vpop.permute.xlu0 %1769
  %v1771 = vrot.slane %v1770, 6
  %v1773 = vmul.f32 %v1620, %v1771
  %v1775 = vrot.slane %v1773, 2
  %v1777 = vadd.f32 %v1766, %v1775
  %v1779 = vrot.slane %v1620, 2
  %v1781 = vmax.f32 %v1767, %v1779
  %1782 = vset.pattern.permute.xlu0 6
  %1783 = vperm.xlu0 %1782, %v1712
  %v1784 = vpop.permute.xlu0 %1783
  %v1785 = vrot.slane %v1784, 4
  %v1787 = vmul.f32 %v1627, %v1785
  %v1789 = vrot.slane %v1787, 4
  %v1791 = vadd.f32 %v1777, %v1789
  %v1793 = vrot.slane %v1627, 4
  %v1795 = vmax.f32 %v1781, %v1793
  %1796 = vset.pattern.permute.xlu0 7
  %1797 = vperm.xlu0 %1796, %v1712
  %v1798 = vpop.permute.xlu0 %1797
  %v1799 = vrot.slane %v1798, 2
  %v1801 = vmul.f32 %v1635, %v1799
  %v1803 = vrot.slane %v1801, 6
  %v1805 = vadd.f32 %v1791, %v1803
  %v1807 = vrot.slane %v1635, 6
  %v1809 = vmax.f32 %v1795, %v1807
  %1811 = vrot.lane.b32.xlu0 %v1805, 16
  %v1812 = vpop.permute.xlu0 %1811
  %v1814 = vsel %vm125, %v1809, %v1812
  %v1815 = vsel %vm125, %v1584, 0
  %1817 = vmatpush.msra.mxu0 0.0
  %1818 = vmatpush.msra.mxu0 0.0
  %1819 = vmatpush.msra.mxu0 0.0
  %1820 = vmatpush.msra.mxu0 0.0
  %1821 = vmatpush.msra.mxu0 0.0
  %1822 = vmatpush.msra.mxu0 0.0
  %1823 = vmatpush.msra.mxu0 0.0
  %1824 = vmatpush.msra.mxu0 0.0
  %1825 = vmatpush.msra.mxu0 0.0
  %1826 = vmatpush.msra.mxu0 0.0
  %1827 = vmatpush.msra.mxu0 0.0
  %1828 = vmatpush.msra.mxu0 0.0
  %1829 = vmatpush.msra.mxu0 0.0
  %1830 = vmatpush.msra.mxu0 0.0
  %1831 = vmatpush.msra.mxu0 %v241
  %1832 = vmatpush.msra.mxu0 %v240
  %1833 = vmatmul.f32.gmra.mxu0 %v1815
  %v1834 = vpop.f32.mrf.mxu0
  %v1835 = vadd.f32 %v248, %v1834
  %1836 = vdwg.mxu0
  %v1837 = vadd.f32 %v238, %v1835
  %v1838 = vxor.u32 %v1837, 2147483648
  %v1839 = vmul.f32 %v1838, 1.442695
  %v1840 = vpow.pop %v1839
  %v1841 = vadd.f32 %v1840, 1.0
  %v1842 = vrcp.pop %v1841
  %v1843 = vmul.f32 %v1841, %v1842
  %v1844 = vsub.f32 1.0, %v1843
  %v1845 = vmul.f32 %v1842, %v1844
  %v1846 = vadd.f32 %v1842, %v1845
  %vm1847 = vweird.f32 %v1841
  %vm1848 = vweird.f32 %v1842
  %vm1849 = vmor %vm1847, %vm1848
  %v1850 = vsel %vm1849, %v1842, %v1846
  %v1851 = vand.u32 2147483647, %v1841
  %vm1852 = vcmp.eq.f32.partialorder %v1851, 8.507059e+37
  %v1853 = vand.u32 %v1841, 2147483648
  %v1854 = vor.u32 1.1754944e-38, %v1853
  %v1855 = vsel %vm1852, %v1854, %v1850
  %v1856 = vmul.f32 1.0, %v1855
  %1858 = vrot.lane.b32.xlu0 %v1835, 96
  %v1859 = vpop.permute.xlu0 %1858
  %v1861 = vmul.f32 %v1856, %v1859
  %1863 = vrot.lane.b32.xlu0 %v1861, 32
  %v1864 = vpop.permute.xlu0 %1863
  %v1866 = vadd.f32 %v238, %v1864
  %v1867 = vtanh.pop %v1866
  %v1868 = vsub.f32 1.0, %v1856
  %1870 = vrot.lane.b32.xlu0 %v1867, 112
  %v1871 = vpop.permute.xlu0 %1870
  %v1873 = vmul.f32 %v1868, %v1871
  %v1875 = vmul.f32 %v1856, %v1582
  %v1876 = vadd.f32 %v1873, %v1875
  %1878 = vrot.lane.b32.xlu0 %v1876, 112
  %v1879 = vpop.permute.xlu0 %1878
  %v1880 = vsel %vm125, %v1879, 0
  %1882 = vmatpush.msra.mxu0 0.0
  %1883 = vmatpush.msra.mxu0 0.0
  %1884 = vmatpush.msra.mxu0 0.0
  %1885 = vmatpush.msra.mxu0 0.0
  %1886 = vmatpush.msra.mxu0 0.0
  %1887 = vmatpush.msra.mxu0 0.0
  %1888 = vmatpush.msra.mxu0 0.0
  %1889 = vmatpush.msra.mxu0 0.0
  %1890 = vmatpush.msra.mxu0 0.0
  %1891 = vmatpush.msra.mxu0 0.0
  %1892 = vmatpush.msra.mxu0 0.0
  %1893 = vmatpush.msra.mxu0 0.0
  %1894 = vmatpush.msra.mxu0 0.0
  %1895 = vmatpush.msra.mxu0 0.0
  %1896 = vmatpush.msra.mxu0 %v241
  %1897 = vmatpush.msra.mxu0 %v240
  %1898 = vmatmul.f32.gmra.mxu0 %v1880
  %v1899 = vpop.f32.mrf.mxu0
  %v1900 = vadd.f32 %v248, %v1899
  %1901 = vdwg.mxu0
  %v1903 = vrot.slane %v1900, 6
  %v1905 = vadd.f32 %v238, %v1903
  %v1906 = vxor.u32 %v1905, 2147483648
  %v1907 = vmul.f32 %v1906, 1.442695
  %v1908 = vpow.pop %v1907
  %v1909 = vadd.f32 %v1908, 1.0
  %v1910 = vrcp.pop %v1909
  %v1911 = vmul.f32 %v1909, %v1910
  %v1912 = vsub.f32 1.0, %v1911
  %v1913 = vmul.f32 %v1910, %v1912
  %v1914 = vadd.f32 %v1910, %v1913
  %vm1915 = vweird.f32 %v1909
  %vm1916 = vweird.f32 %v1910
  %vm1917 = vmor %vm1915, %vm1916
  %v1918 = vsel %vm1917, %v1910, %v1914
  %v1919 = vand.u32 2147483647, %v1909
  %vm1920 = vcmp.eq.f32.partialorder %v1919, 8.507059e+37
  %v1921 = vand.u32 %v1909, 2147483648
  %v1922 = vor.u32 1.1754944e-38, %v1921
  %v1923 = vsel %vm1920, %v1922, %v1918
  %v1924 = vmul.f32 1.0, %v1923
  %1925 = vrot.lane.b32.xlu0 %v1903, 96
  %v1926 = vpop.permute.xlu0 %1925
  %v1928 = vmul.f32 %v1924, %v1926
  %1930 = vrot.lane.b32.xlu0 %v1928, 32
  %v1931 = vpop.permute.xlu0 %1930
  %v1933 = vadd.f32 %v238, %v1931
  %v1934 = vtanh.pop %v1933
  %v1935 = vsub.f32 1.0, %v1924
  %1937 = vrot.lane.b32.xlu0 %v1934, 112
  %v1938 = vpop.permute.xlu0 %1937
  %v1940 = vmul.f32 %v1935, %v1938
  %v1941 = vrot.slane %v1876, 6
  %v1943 = vmul.f32 %v1924, %v1941
  %v1944 = vadd.f32 %v1940, %v1943
  %v1946 = vrot.slane %v1944, 2
  %1947 = vrot.lane.b32.xlu0 %v1946, 112
  %v1948 = vpop.permute.xlu0 %1947
  %v1949 = vsel %vm125, %v1948, 0
  %1951 = vmatpush.msra.mxu0 0.0
  %1952 = vmatpush.msra.mxu0 0.0
  %1953 = vmatpush.msra.mxu0 0.0
  %1954 = vmatpush.msra.mxu0 0.0
  %1955 = vmatpush.msra.mxu0 0.0
  %1956 = vmatpush.msra.mxu0 0.0
  %1957 = vmatpush.msra.mxu0 0.0
  %1958 = vmatpush.msra.mxu0 0.0
  %1959 = vmatpush.msra.mxu0 0.0
  %1960 = vmatpush.msra.mxu0 0.0
  %1961 = vmatpush.msra.mxu0 0.0
  %1962 = vmatpush.msra.mxu0 0.0
  %1963 = vmatpush.msra.mxu0 0.0
  %1964 = vmatpush.msra.mxu0 0.0
  %1965 = vmatpush.msra.mxu0 %v241
  %1966 = vmatpush.msra.mxu0 %v240
  %1967 = vmatmul.f32.gmra.mxu0 %v1949
  %v1968 = vpop.f32.mrf.mxu0
  %v1969 = vadd.f32 %v248, %v1968
  %1970 = vdwg.mxu0
  %v1972 = vrot.slane %v1969, 4
  %v1974 = vadd.f32 %v238, %v1972
  %v1975 = vxor.u32 %v1974, 2147483648
  %v1976 = vmul.f32 %v1975, 1.442695
  %v1977 = vpow.pop %v1976
  %v1978 = vadd.f32 %v1977, 1.0
  %v1979 = vrcp.pop %v1978
  %v1980 = vmul.f32 %v1978, %v1979
  %v1981 = vsub.f32 1.0, %v1980
  %v1982 = vmul.f32 %v1979, %v1981
  %v1983 = vadd.f32 %v1979, %v1982
  %vm1984 = vweird.f32 %v1978
  %vm1985 = vweird.f32 %v1979
  %vm1986 = vmor %vm1984, %vm1985
  %v1987 = vsel %vm1986, %v1979, %v1983
  %v1988 = vand.u32 2147483647, %v1978
  %vm1989 = vcmp.eq.f32.partialorder %v1988, 8.507059e+37
  %v1990 = vand.u32 %v1978, 2147483648
  %v1991 = vor.u32 1.1754944e-38, %v1990
  %v1992 = vsel %vm1989, %v1991, %v1987
  %v1993 = vmul.f32 1.0, %v1992
  %1994 = vrot.lane.b32.xlu0 %v1972, 96
  %v1995 = vpop.permute.xlu0 %1994
  %v1997 = vmul.f32 %v1993, %v1995
  %1999 = vrot.lane.b32.xlu0 %v1997, 32
  %v2000 = vpop.permute.xlu0 %1999
  %v2002 = vadd.f32 %v238, %v2000
  %v2003 = vtanh.pop %v2002
  %v2004 = vsub.f32 1.0, %v1993
  %2006 = vrot.lane.b32.xlu0 %v2003, 112
  %v2007 = vpop.permute.xlu0 %2006
  %v2009 = vmul.f32 %v2004, %v2007
  %v2010 = vrot.slane %v1944, 6
  %v2012 = vmul.f32 %v1993, %v2010
  %v2013 = vadd.f32 %v2009, %v2012
  %v2015 = vrot.slane %v2013, 4
  %2016 = vrot.lane.b32.xlu0 %v2015, 112
  %v2017 = vpop.permute.xlu0 %2016
  %v2018 = vsel %vm125, %v2017, 0
  %2020 = vmatpush.msra.mxu0 0.0
  %2021 = vmatpush.msra.mxu0 0.0
  %2022 = vmatpush.msra.mxu0 0.0
  %2023 = vmatpush.msra.mxu0 0.0
  %2024 = vmatpush.msra.mxu0 0.0
  %2025 = vmatpush.msra.mxu0 0.0
  %2026 = vmatpush.msra.mxu0 0.0
  %2027 = vmatpush.msra.mxu0 0.0
  %2028 = vmatpush.msra.mxu0 0.0
  %2029 = vmatpush.msra.mxu0 0.0
  %2030 = vmatpush.msra.mxu0 0.0
  %2031 = vmatpush.msra.mxu0 0.0
  %2032 = vmatpush.msra.mxu0 0.0
  %2033 = vmatpush.msra.mxu0 0.0
  %2034 = vmatpush.msra.mxu0 %v241
  %2035 = vmatpush.msra.mxu0 %v240
  %2036 = vmatmul.f32.gmra.mxu0 %v2018
  %v2037 = vpop.f32.mrf.mxu0
  %v2038 = vadd.f32 %v248, %v2037
  %2039 = vdwg.mxu0
  %v2041 = vrot.slane %v2038, 2
  %v2043 = vadd.f32 %v238, %v2041
  %v2044 = vxor.u32 %v2043, 2147483648
  %v2045 = vmul.f32 %v2044, 1.442695
  %v2046 = vpow.pop %v2045
  %v2047 = vadd.f32 %v2046, 1.0
  %v2048 = vrcp.pop %v2047
  %v2049 = vmul.f32 %v2047, %v2048
  %v2050 = vsub.f32 1.0, %v2049
  %v2051 = vmul.f32 %v2048, %v2050
  %v2052 = vadd.f32 %v2048, %v2051
  %vm2053 = vweird.f32 %v2047
  %vm2054 = vweird.f32 %v2048
  %vm2055 = vmor %vm2053, %vm2054
  %v2056 = vsel %vm2055, %v2048, %v2052
  %v2057 = vand.u32 2147483647, %v2047
  %vm2058 = vcmp.eq.f32.partialorder %v2057, 8.507059e+37
  %v2059 = vand.u32 %v2047, 2147483648
  %v2060 = vor.u32 1.1754944e-38, %v2059
  %v2061 = vsel %vm2058, %v2060, %v2056
  %v2062 = vmul.f32 1.0, %v2061
  %2063 = vrot.lane.b32.xlu0 %v2041, 96
  %v2064 = vpop.permute.xlu0 %2063
  %v2066 = vmul.f32 %v2062, %v2064
  %2068 = vrot.lane.b32.xlu0 %v2066, 32
  %v2069 = vpop.permute.xlu0 %2068
  %v2071 = vadd.f32 %v238, %v2069
  %v2072 = vtanh.pop %v2071
  %v2073 = vsub.f32 1.0, %v2062
  %2075 = vrot.lane.b32.xlu0 %v2072, 112
  %v2076 = vpop.permute.xlu0 %2075
  %v2078 = vmul.f32 %v2073, %v2076
  %v2079 = vrot.slane %v2013, 6
  %v2081 = vmul.f32 %v2062, %v2079
  %v2082 = vadd.f32 %v2078, %v2081
  %v2084 = vrot.slane %v2082, 6
  %2085 = vrot.lane.b32.xlu0 %v2084, 112
  %v2086 = vpop.permute.xlu0 %2085
  %v2087 = vsel %vm125, %v2086, 0
  %2089 = vmatpush.msra.mxu0 0.0
  %2090 = vmatpush.msra.mxu0 0.0
  %2091 = vmatpush.msra.mxu0 0.0
  %2092 = vmatpush.msra.mxu0 0.0
  %2093 = vmatpush.msra.mxu0 0.0
  %2094 = vmatpush.msra.mxu0 0.0
  %2095 = vmatpush.msra.mxu0 0.0
  %2096 = vmatpush.msra.mxu0 0.0
  %2097 = vmatpush.msra.mxu0 0.0
  %2098 = vmatpush.msra.mxu0 0.0
  %2099 = vmatpush.msra.mxu0 0.0
  %2100 = vmatpush.msra.mxu0 0.0
  %2101 = vmatpush.msra.mxu0 0.0
  %2102 = vmatpush.msra.mxu0 0.0
  %2103 = vmatpush.msra.mxu0 %v241
  %2104 = vmatpush.msra.mxu0 %v240
  %2105 = vmatmul.f32.gmra.mxu0 %v2087
  %v2106 = vpop.f32.mrf.mxu0
  %v2107 = vadd.f32 %v248, %v2106
  %2108 = vdwg.mxu0
  %v2109 = vadd.f32 %v239, %v2107
  %v2110 = vxor.u32 %v2109, 2147483648
  %v2111 = vmul.f32 %v2110, 1.442695
  %v2112 = vpow.pop %v2111
  %v2113 = vadd.f32 %v2112, 1.0
  %v2114 = vrcp.pop %v2113
  %v2115 = vmul.f32 %v2113, %v2114
  %v2116 = vsub.f32 1.0, %v2115
  %v2117 = vmul.f32 %v2114, %v2116
  %v2118 = vadd.f32 %v2114, %v2117
  %vm2119 = vweird.f32 %v2113
  %vm2120 = vweird.f32 %v2114
  %vm2121 = vmor %vm2119, %vm2120
  %v2122 = vsel %vm2121, %v2114, %v2118
  %v2123 = vand.u32 2147483647, %v2113
  %vm2124 = vcmp.eq.f32.partialorder %v2123, 8.507059e+37
  %v2125 = vand.u32 %v2113, 2147483648
  %v2126 = vor.u32 1.1754944e-38, %v2125
  %v2127 = vsel %vm2124, %v2126, %v2122
  %v2128 = vmul.f32 1.0, %v2127
  %2130 = vrot.lane.b32.xlu0 %v2107, 96
  %v2131 = vpop.permute.xlu0 %2130
  %v2133 = vmul.f32 %v2128, %v2131
  %2135 = vrot.lane.b32.xlu0 %v2133, 32
  %v2136 = vpop.permute.xlu0 %2135
  %v2138 = vadd.f32 %v239, %v2136
  %v2139 = vtanh.pop %v2138
  %v2140 = vsub.f32 1.0, %v2128
  %2142 = vrot.lane.b32.xlu0 %v2139, 112
  %v2143 = vpop.permute.xlu0 %2142
  %v2145 = vmul.f32 %v2140, %v2143
  %v2147 = vmul.f32 %v2128, %v2084
  %v2148 = vadd.f32 %v2145, %v2147
  %2150 = vrot.lane.b32.xlu0 %v2148, 112
  %v2151 = vpop.permute.xlu0 %2150
  %v2152 = vsel %vm125, %v2151, 0
  %2154 = vmatpush.msra.mxu0 0.0
  %2155 = vmatpush.msra.mxu0 0.0
  %2156 = vmatpush.msra.mxu0 0.0
  %2157 = vmatpush.msra.mxu0 0.0
  %2158 = vmatpush.msra.mxu0 0.0
  %2159 = vmatpush.msra.mxu0 0.0
  %2160 = vmatpush.msra.mxu0 0.0
  %2161 = vmatpush.msra.mxu0 0.0
  %2162 = vmatpush.msra.mxu0 0.0
  %2163 = vmatpush.msra.mxu0 0.0
  %2164 = vmatpush.msra.mxu0 0.0
  %2165 = vmatpush.msra.mxu0 0.0
  %2166 = vmatpush.msra.mxu0 0.0
  %2167 = vmatpush.msra.mxu0 0.0
  %2168 = vmatpush.msra.mxu0 %v241
  %2169 = vmatpush.msra.mxu0 %v240
  %2170 = vmatmul.f32.gmra.mxu0 %v2152
  %v2171 = vpop.f32.mrf.mxu0
  %v2172 = vadd.f32 %v248, %v2171
  %2173 = vdwg.mxu0
  %v2175 = vrot.slane %v2172, 6
  %v2177 = vadd.f32 %v239, %v2175
  %v2178 = vxor.u32 %v2177, 2147483648
  %v2179 = vmul.f32 %v2178, 1.442695
  %v2180 = vpow.pop %v2179
  %v2181 = vadd.f32 %v2180, 1.0
  %v2182 = vrcp.pop %v2181
  %v2183 = vmul.f32 %v2181, %v2182
  %v2184 = vsub.f32 1.0, %v2183
  %v2185 = vmul.f32 %v2182, %v2184
  %v2186 = vadd.f32 %v2182, %v2185
  %vm2187 = vweird.f32 %v2181
  %vm2188 = vweird.f32 %v2182
  %vm2189 = vmor %vm2187, %vm2188
  %v2190 = vsel %vm2189, %v2182, %v2186
  %v2191 = vand.u32 2147483647, %v2181
  %vm2192 = vcmp.eq.f32.partialorder %v2191, 8.507059e+37
  %v2193 = vand.u32 %v2181, 2147483648
  %v2194 = vor.u32 1.1754944e-38, %v2193
  %v2195 = vsel %vm2192, %v2194, %v2190
  %v2196 = vmul.f32 1.0, %v2195
  %2197 = vrot.lane.b32.xlu0 %v2175, 96
  %v2198 = vpop.permute.xlu0 %2197
  %v2200 = vmul.f32 %v2196, %v2198
  %2202 = vrot.lane.b32.xlu0 %v2200, 32
  %v2203 = vpop.permute.xlu0 %2202
  %v2205 = vadd.f32 %v239, %v2203
  %v2206 = vtanh.pop %v2205
  %v2207 = vsub.f32 1.0, %v2196
  %2209 = vrot.lane.b32.xlu0 %v2206, 112
  %v2210 = vpop.permute.xlu0 %2209
  %v2212 = vmul.f32 %v2207, %v2210
  %v2213 = vrot.slane %v2148, 6
  %v2215 = vmul.f32 %v2196, %v2213
  %v2216 = vadd.f32 %v2212, %v2215
  %v2218 = vrot.slane %v2216, 2
  %2219 = vrot.lane.b32.xlu0 %v2218, 112
  %v2220 = vpop.permute.xlu0 %2219
  %v2221 = vsel %vm125, %v2220, 0
  %2223 = vmatpush.msra.mxu0 0.0
  %2224 = vmatpush.msra.mxu0 0.0
  %2225 = vmatpush.msra.mxu0 0.0
  %2226 = vmatpush.msra.mxu0 0.0
  %2227 = vmatpush.msra.mxu0 0.0
  %2228 = vmatpush.msra.mxu0 0.0
  %2229 = vmatpush.msra.mxu0 0.0
  %2230 = vmatpush.msra.mxu0 0.0
  %2231 = vmatpush.msra.mxu0 0.0
  %2232 = vmatpush.msra.mxu0 0.0
  %2233 = vmatpush.msra.mxu0 0.0
  %2234 = vmatpush.msra.mxu0 0.0
  %2235 = vmatpush.msra.mxu0 0.0
  %2236 = vmatpush.msra.mxu0 0.0
  %2237 = vmatpush.msra.mxu0 %v241
  %2238 = vmatpush.msra.mxu0 %v240
  %2239 = vmatmul.f32.gmra.mxu0 %v2221
  %v2240 = vpop.f32.mrf.mxu0
  %v2241 = vadd.f32 %v248, %v2240
  %2242 = vdwg.mxu0
  %v2244 = vrot.slane %v2241, 4
  %v2246 = vadd.f32 %v239, %v2244
  %v2247 = vxor.u32 %v2246, 2147483648
  %v2248 = vmul.f32 %v2247, 1.442695
  %v2249 = vpow.pop %v2248
  %v2250 = vadd.f32 %v2249, 1.0
  %v2251 = vrcp.pop %v2250
  %v2252 = vmul.f32 %v2250, %v2251
  %v2253 = vsub.f32 1.0, %v2252
  %v2254 = vmul.f32 %v2251, %v2253
  %v2255 = vadd.f32 %v2251, %v2254
  %vm2256 = vweird.f32 %v2250
  %vm2257 = vweird.f32 %v2251
  %vm2258 = vmor %vm2256, %vm2257
  %v2259 = vsel %vm2258, %v2251, %v2255
  %v2260 = vand.u32 2147483647, %v2250
  %vm2261 = vcmp.eq.f32.partialorder %v2260, 8.507059e+37
  %v2262 = vand.u32 %v2250, 2147483648
  %v2263 = vor.u32 1.1754944e-38, %v2262
  %v2264 = vsel %vm2261, %v2263, %v2259
  %v2265 = vmul.f32 1.0, %v2264
  %2266 = vrot.lane.b32.xlu0 %v2244, 96
  %v2267 = vpop.permute.xlu0 %2266
  %v2269 = vmul.f32 %v2265, %v2267
  %2271 = vrot.lane.b32.xlu0 %v2269, 32
  %v2272 = vpop.permute.xlu0 %2271
  %v2274 = vadd.f32 %v239, %v2272
  %v2275 = vtanh.pop %v2274
  %v2276 = vsub.f32 1.0, %v2265
  %2278 = vrot.lane.b32.xlu0 %v2275, 112
  %v2279 = vpop.permute.xlu0 %2278
  %v2281 = vmul.f32 %v2276, %v2279
  %v2282 = vrot.slane %v2216, 6
  %v2284 = vmul.f32 %v2265, %v2282
  %v2285 = vadd.f32 %v2281, %v2284
  %v2287 = vrot.slane %v2285, 4
  %2288 = vrot.lane.b32.xlu0 %v2287, 112
  %v2289 = vpop.permute.xlu0 %2288
  %v2290 = vsel %vm125, %v2289, 0
  %2292 = vmatpush.msra.mxu0 0.0
  %2293 = vmatpush.msra.mxu0 0.0
  %2294 = vmatpush.msra.mxu0 0.0
  %2295 = vmatpush.msra.mxu0 0.0
  %2296 = vmatpush.msra.mxu0 0.0
  %2297 = vmatpush.msra.mxu0 0.0
  %2298 = vmatpush.msra.mxu0 0.0
  %2299 = vmatpush.msra.mxu0 0.0
  %2300 = vmatpush.msra.mxu0 0.0
  %2301 = vmatpush.msra.mxu0 0.0
  %2302 = vmatpush.msra.mxu0 0.0
  %2303 = vmatpush.msra.mxu0 0.0
  %2304 = vmatpush.msra.mxu0 0.0
  %2305 = vmatpush.msra.mxu0 0.0
  %2306 = vmatpush.msra.mxu0 %v241
  %2307 = vmatpush.msra.mxu0 %v240
  %2308 = vmatmul.f32.gmra.mxu0 %v2290
  %v2309 = vpop.f32.mrf.mxu0
  %v2310 = vadd.f32 %v248, %v2309
  %2311 = vdwg.mxu0
  %v2313 = vrot.slane %v2310, 2
  %v2315 = vadd.f32 %v239, %v2313
  %v2316 = vxor.u32 %v2315, 2147483648
  %v2317 = vmul.f32 %v2316, 1.442695
  %v2318 = vpow.pop %v2317
  %v2319 = vadd.f32 %v2318, 1.0
  %v2320 = vrcp.pop %v2319
  %v2321 = vmul.f32 %v2319, %v2320
  %v2322 = vsub.f32 1.0, %v2321
  %v2323 = vmul.f32 %v2320, %v2322
  %v2324 = vadd.f32 %v2320, %v2323
  %vm2325 = vweird.f32 %v2319
  %vm2326 = vweird.f32 %v2320
  %vm2327 = vmor %vm2325, %vm2326
  %v2328 = vsel %vm2327, %v2320, %v2324
  %v2329 = vand.u32 2147483647, %v2319
  %vm2330 = vcmp.eq.f32.partialorder %v2329, 8.507059e+37
  %v2331 = vand.u32 %v2319, 2147483648
  %v2332 = vor.u32 1.1754944e-38, %v2331
  %v2333 = vsel %vm2330, %v2332, %v2328
  %v2334 = vmul.f32 1.0, %v2333
  %2335 = vrot.lane.b32.xlu0 %v2313, 96
  %v2336 = vpop.permute.xlu0 %2335
  %v2338 = vmul.f32 %v2334, %v2336
  %2340 = vrot.lane.b32.xlu0 %v2338, 32
  %v2341 = vpop.permute.xlu0 %2340
  %v2343 = vadd.f32 %v239, %v2341
  %v2344 = vtanh.pop %v2343
  %v2345 = vsub.f32 1.0, %v2334
  %2347 = vrot.lane.b32.xlu0 %v2344, 112
  %v2348 = vpop.permute.xlu0 %2347
  %v2350 = vmul.f32 %v2345, %v2348
  %v2351 = vrot.slane %v2285, 6
  %v2353 = vmul.f32 %v2334, %v2351
  %v2354 = vadd.f32 %v2350, %v2353
  %v2357 = vrot.slane %v2354, 6
  %2358 = vrot.lane.b32.xlu0 %v2357, 112
  %v2359 = vpop.permute.xlu0 %2358
  %v2361 = vsel %vm798, %v1879, %v2359
  %2362 = vrot.lane.b32.xlu0 %v1944, 112
  %v2363 = vpop.permute.xlu0 %2362
  %v2365 = vrot.slane %v2285, 2
  %2366 = vrot.lane.b32.xlu0 %v2365, 112
  %v2367 = vpop.permute.xlu0 %2366
  %v2369 = vsel %vm798, %v2363, %v2367
  %2370 = vrot.lane.b32.xlu0 %v2013, 112
  %v2371 = vpop.permute.xlu0 %2370
  %2373 = vrot.lane.b32.xlu0 %v2282, 112
  %v2374 = vpop.permute.xlu0 %2373
  %v2376 = vsel %vm798, %v2371, %v2374
  %2377 = vrot.lane.b32.xlu0 %v2082, 112
  %v2378 = vpop.permute.xlu0 %2377
  %v2380 = vrot.slane %v2148, 2
  %2381 = vrot.lane.b32.xlu0 %v2380, 112
  %v2382 = vpop.permute.xlu0 %2381
  %v2384 = vsel %vm798, %v2378, %v2382
  %v2387 = vsel %vm798, %v2151, %v2086
  %2388 = vrot.lane.b32.xlu0 %v2216, 112
  %v2389 = vpop.permute.xlu0 %2388
  %v2391 = vrot.slane %v2013, 2
  %2392 = vrot.lane.b32.xlu0 %v2391, 112
  %v2393 = vpop.permute.xlu0 %2392
  %v2395 = vsel %vm798, %v2389, %v2393
  %2396 = vrot.lane.b32.xlu0 %v2285, 112
  %v2397 = vpop.permute.xlu0 %2396
  %2399 = vrot.lane.b32.xlu0 %v2010, 112
  %v2400 = vpop.permute.xlu0 %2399
  %v2402 = vsel %vm798, %v2397, %v2400
  %2403 = vrot.lane.b32.xlu0 %v2354, 112
  %v2404 = vpop.permute.xlu0 %2403
  %v2406 = vrot.slane %v1876, 2
  %2407 = vrot.lane.b32.xlu0 %v2406, 112
  %v2408 = vpop.permute.xlu0 %2407
  %v2410 = vsel %vm798, %v2404, %v2408
  %v2411 = vsel %vm64, %v2361, %v2369
  %v2412 = vsel %vm850, %v2411, %v2376
  %v2413 = vsel %vm852, %v2412, %v2384
  %v2414 = vsel %vm64, %v2387, %v2395
  %v2415 = vsel %vm850, %v2414, %v2402
  %v2416 = vsel %vm852, %v2415, %v2410
  %v2418 = vsel %vm125, %v2413, 0
  %v2421 = vsel %vm125, %v2416, 0
  %2423 = vmatpush.msra.mxu0 0.0
  %2424 = vmatpush.msra.mxu0 0.0
  %2425 = vmatpush.msra.mxu0 0.0
  %2426 = vmatpush.msra.mxu0 0.0
  %2427 = vmatpush.msra.mxu0 0.0
  %2428 = vmatpush.msra.mxu0 0.0
  %2429 = vmatpush.msra.mxu0 0.0
  %2430 = vmatpush.msra.mxu0 0.0
  %2431 = vmatpush.msra.mxu0 0.0
  %2432 = vmatpush.msra.mxu0 0.0
  %2433 = vmatpush.msra.mxu0 0.0
  %2434 = vmatpush.msra.mxu0 0.0
  %2435 = vmatpush.msra.mxu0 0.0
  %2436 = vmatpush.msra.mxu0 0.0
  %2437 = vmatpush.msra.mxu0 %v244
  %2438 = vmatpush.msra.mxu0 %v243
  %2439 = vmatmul.f32.gmra.mxu0 %v2418
  %v2440 = vpop.f32.mrf.mxu0
  %v2441 = vadd.f32 %v857, %v2440
  %2442 = vmatmul.f32.gmra.mxu0 %v2421
  %v2443 = vpop.f32.mrf.mxu0
  %v2444 = vadd.f32 %v857, %v2443
  %2445 = vdwg.mxu0
  %v2446 = vtanh.pop %v2441
  %v2447 = vtanh.pop %v2444
  %v2448 = vmul.f32 %v2446, %v889
  %v2449 = vmul.f32 %v2447, %v889
  %v2450 = vsel %vm125, %v2448, 0.0
  %2451 = vadd.xlane.f32.xlu0 %v2450
  %v2452 = vpop.xlane.xlu0 %2451
  %v2453 = vsel %vm125, %v2449, 0.0
  %2454 = vadd.xlane.f32.xlu0 %v2453
  %v2455 = vpop.xlane.xlu0 %2454
  %v2457 = vrot.slane %v2452, 2
  %v2459 = vrot.slane %v2452, 4
  %v2461 = vrot.slane %v2452, 6
  %v2464 = vrot.slane %v2455, 2
  %v2466 = vrot.slane %v2455, 4
  %v2468 = vrot.slane %v2455, 6
  %v2470 = vsel %vm912, %v2452, %v2457
  %v2471 = vsel %vm914, %v2470, %v2459
  %v2472 = vsel %vm916, %v2471, %v2461
  %v2473 = vsel %vm918, %v2472, %v2455
  %v2474 = vsel %vm920, %v2473, %v2464
  %v2475 = vsel %vm922, %v2474, %v2466
  %v2476 = vsel %vm924, %v2475, %v2468
  %v2477 = vsel %vm926, %v2476, -inf
  %2478 = vmax.xlane.f32.xlu0 %v2477
  %v2479 = vpop.xlane.xlu0 %2478
  %v2480 = vsub.f32 %v2476, %v2479
  %v2481 = vmul.f32 %v2480, 1.442695
  %v2482 = vpow.pop %v2481
  %v2483 = vsel %vm926, %v2482, 0.0
  %2484 = vadd.xlane.f32.xlu0 %v2483
  %v2485 = vpop.xlane.xlu0 %2484
  %v2486 = vrcp.pop %v2485
  %v2487 = vmul.f32 %v2482, %v2486
  %2489 = vset.pattern.permute.xlu0 0
  %2490 = vperm.xlu0 %2489, %v2487
  %v2491 = vpop.permute.xlu0 %2490
  %v2493 = vmul.f32 %v2361, %v2491
  %2494 = vset.pattern.permute.xlu0 1
  %2495 = vperm.xlu0 %2494, %v2487
  %v2496 = vpop.permute.xlu0 %2495
  %v2497 = vrot.slane %v2496, 6
  %v2499 = vmul.f32 %v2369, %v2497
  %v2501 = vrot.slane %v2499, 2
  %v2503 = vadd.f32 %v2493, %v2501
  %v2505 = vrot.slane %v2369, 2
  %v2507 = vmax.f32 %v2361, %v2505
  %2508 = vset.pattern.permute.xlu0 2
  %2509 = vperm.xlu0 %2508, %v2487
  %v2510 = vpop.permute.xlu0 %2509
  %v2511 = vrot.slane %v2510, 4
  %v2513 = vmul.f32 %v2376, %v2511
  %v2515 = vrot.slane %v2513, 4
  %v2517 = vadd.f32 %v2503, %v2515
  %v2519 = vrot.slane %v2376, 4
  %v2521 = vmax.f32 %v2507, %v2519
  %2522 = vset.pattern.permute.xlu0 3
  %2523 = vperm.xlu0 %2522, %v2487
  %v2524 = vpop.permute.xlu0 %2523
  %v2525 = vrot.slane %v2524, 2
  %v2527 = vmul.f32 %v2384, %v2525
  %v2529 = vrot.slane %v2527, 6
  %v2531 = vadd.f32 %v2517, %v2529
  %v2533 = vrot.slane %v2384, 6
  %v2535 = vmax.f32 %v2521, %v2533
  %2536 = vset.pattern.permute.xlu0 4
  %2537 = vperm.xlu0 %2536, %v2487
  %v2538 = vpop.permute.xlu0 %2537
  %v2540 = vmul.f32 %v2387, %v2538
  %v2541 = vadd.f32 %v2531, %v2540
  %v2542 = vmax.f32 %v2535, %v2387
  %2543 = vset.pattern.permute.xlu0 5
  %2544 = vperm.xlu0 %2543, %v2487
  %v2545 = vpop.permute.xlu0 %2544
  %v2546 = vrot.slane %v2545, 6
  %v2548 = vmul.f32 %v2395, %v2546
  %v2550 = vrot.slane %v2548, 2
  %v2552 = vadd.f32 %v2541, %v2550
  %v2554 = vrot.slane %v2395, 2
  %v2556 = vmax.f32 %v2542, %v2554
  %2557 = vset.pattern.permute.xlu0 6
  %2558 = vperm.xlu0 %2557, %v2487
  %v2559 = vpop.permute.xlu0 %2558
  %v2560 = vrot.slane %v2559, 4
  %v2562 = vmul.f32 %v2402, %v2560
  %v2564 = vrot.slane %v2562, 4
  %v2566 = vadd.f32 %v2552, %v2564
  %v2568 = vrot.slane %v2402, 4
  %v2570 = vmax.f32 %v2556, %v2568
  %2571 = vset.pattern.permute.xlu0 7
  %2572 = vperm.xlu0 %2571, %v2487
  %v2573 = vpop.permute.xlu0 %2572
  %v2574 = vrot.slane %v2573, 2
  %v2576 = vmul.f32 %v2410, %v2574
  %v2578 = vrot.slane %v2576, 6
  %v2580 = vadd.f32 %v2566, %v2578
  %v2582 = vrot.slane %v2410, 6
  %v2584 = vmax.f32 %v2570, %v2582
  %2586 = vrot.lane.b32.xlu0 %v2580, 16
  %v2587 = vpop.permute.xlu0 %2586
  %v2589 = vsel %vm125, %v2584, %v2587
  %v2591 = vrot.slane %v1814, 6
  %v2594 = vrot.slane %v2589, 4
  %v2596 = vsel %vm64, %v1039, %v2591
  %v2597 = vsel %vm850, %v2596, %v2594
  %v2599 = vrot.slane %v1039, 4
  %v2601 = vsel %vm64, %v2589, %v2591
  %v2602 = vsel %vm850, %v2601, %v2599
  %v2603 = vld [vmem:[%s0 + $0xf8] sm:$0xff]
  %v2604 = vld [vmem:[%s0 + $0x100] sm:$0xff]
  %v2605 = vld [vmem:[%s0 + $0x108] sm:$0xff]
  %v2606 = vld [vmem:[%s0 + $0x110] sm:$0xff]
  %v2607 = vld [vmem:[%s0 + $0x118] sm:$0xff]
  %v2608 = vld [vmem:[%s0 + $0x120] sm:$0xff]
  %v2609 = vld [vmem:[%s0 + $0x128] sm:$0xff]
  %v2610 = vld [vmem:[%s0 + $0x130] sm:$0xff]
  %vm2611 = vcmask 261120
  %v2613 = vsel %vm2611, %v2602, 0
  %2615 = vmatpush.msra.mxu0 0.0
  %2616 = vmatpush.msra.mxu0 0.0
  %2617 = vmatpush.msra.mxu0 0.0
  %2618 = vmatpush.msra.mxu0 0.0
  %2619 = vmatpush.msra.mxu0 0.0
  %2620 = vmatpush.msra.mxu0 0.0
  %2621 = vmatpush.msra.mxu0 0.0
  %2622 = vmatpush.msra.mxu0 0.0
  %2623 = vmatpush.msra.mxu0 0.0
  %2624 = vmatpush.msra.mxu0 0.0
  %2625 = vmatpush.msra.mxu0 0.0
  %2626 = vmatpush.msra.mxu0 0.0
  %2627 = vmatpush.msra.mxu0 %v2610
  %2628 = vmatpush.msra.mxu0 %v2609
  %2629 = vmatpush.msra.mxu0 %v2608
  %2630 = vmatpush.msra.mxu0 %v2607
  %2631 = vmatmul.f32.gmra.mxu0 %v2613
  %v2632 = vpop.f32.mrf.mxu0
  %v2633 = vadd.f32 0.0, %v2632
  %2634 = vdwg.mxu0
  %v2636 = vsel %vm2611, %v2597, 0
  %2638 = vmatpush.msra.mxu0 0.0
  %2639 = vmatpush.msra.mxu0 0.0
  %2640 = vmatpush.msra.mxu0 0.0
  %2641 = vmatpush.msra.mxu0 0.0
  %2642 = vmatpush.msra.mxu0 0.0
  %2643 = vmatpush.msra.mxu0 0.0
  %2644 = vmatpush.msra.mxu0 0.0
  %2645 = vmatpush.msra.mxu0 0.0
  %2646 = vmatpush.msra.mxu0 0.0
  %2647 = vmatpush.msra.mxu0 0.0
  %2648 = vmatpush.msra.mxu0 0.0
  %2649 = vmatpush.msra.mxu0 0.0
  %2650 = vmatpush.msra.mxu0 %v2606
  %2651 = vmatpush.msra.mxu0 %v2605
  %2652 = vmatpush.msra.mxu0 %v2604
  %2653 = vmatpush.msra.mxu0 %v2603
  %2654 = vmatmul.f32.gmra.mxu0 %v2636
  %v2655 = vpop.f32.mrf.mxu0
  %v2656 = vadd.f32 %v2633, %v2655
  %2657 = vdwg.mxu0
  %v2658 = vld [vmem:[%s0 + $0x148] sm:$0x1]
  %v2659 = vperm.slane %v2658, 0
  %v2660 = vadd.f32 %v2656, %v2659
  %v2661 = vld [vmem:[%s0 + $0x138] sm:$0xff]
  %v2662 = vld [vmem:[%s0 + $0x140] sm:$0xff]
  %v2663 = vld [vmem:[%s0 + $0x150] sm:$0x1]
  %v2664 = vld [vmem:[%s0 + $0x1c0] sm:$0x3]
  %v2665 = vperm.slane %v2663, 0
  %v2667 = vsel %vm125, %v2664, 0
  %2669 = vmatpush.msra.mxu0 0.0
  %2670 = vmatpush.msra.mxu0 0.0
  %2671 = vmatpush.msra.mxu0 0.0
  %2672 = vmatpush.msra.mxu0 0.0
  %2673 = vmatpush.msra.mxu0 0.0
  %2674 = vmatpush.msra.mxu0 0.0
  %2675 = vmatpush.msra.mxu0 0.0
  %2676 = vmatpush.msra.mxu0 0.0
  %2677 = vmatpush.msra.mxu0 0.0
  %2678 = vmatpush.msra.mxu0 0.0
  %2679 = vmatpush.msra.mxu0 0.0
  %2680 = vmatpush.msra.mxu0 0.0
  %2681 = vmatpush.msra.mxu0 0.0
  %2682 = vmatpush.msra.mxu0 0.0
  %2683 = vmatpush.msra.mxu0 %v2662
  %2684 = vmatpush.msra.mxu0 %v2661
  %2685 = vmatmul.f32.gmra.mxu0 %v2667
  %v2686 = vpop.f32.mrf.mxu0
  %v2687 = vadd.f32 %v2665, %v2686
  %2688 = vdwg.mxu0
  %v2689 = vadd.f32 %v2660, %v2687
  %v2690 = vxor.u32 %v2689, 2147483648
  %v2691 = vmul.f32 %v2690, 1.442695
  %v2692 = vpow.pop %v2691
  %v2693 = vadd.f32 %v2692, 1.0
  %v2694 = vrcp.pop %v2693
  %v2695 = vmul.f32 %v2693, %v2694
  %v2696 = vsub.f32 1.0, %v2695
  %v2697 = vmul.f32 %v2694, %v2696
  %v2698 = vadd.f32 %v2694, %v2697
  %vm2699 = vweird.f32 %v2693
  %vm2700 = vweird.f32 %v2694
  %vm2701 = vmor %vm2699, %vm2700
  %v2702 = vsel %vm2701, %v2694, %v2698
  %v2703 = vand.u32 2147483647, %v2693
  %vm2704 = vcmp.eq.f32.partialorder %v2703, 8.507059e+37
  %v2705 = vand.u32 %v2693, 2147483648
  %v2706 = vor.u32 1.1754944e-38, %v2705
  %v2707 = vsel %vm2704, %v2706, %v2702
  %v2708 = vmul.f32 1.0, %v2707
  %2710 = vrot.lane.b32.xlu0 %v2687, 96
  %v2711 = vpop.permute.xlu0 %2710
  %v2713 = vmul.f32 %v2708, %v2711
  %2715 = vrot.lane.b32.xlu0 %v2713, 32
  %v2716 = vpop.permute.xlu0 %2715
  %v2718 = vadd.f32 %v2660, %v2716
  %v2719 = vtanh.pop %v2718
  %v2720 = vsub.f32 1.0, %v2708
  %2722 = vrot.lane.b32.xlu0 %v2719, 112
  %v2723 = vpop.permute.xlu0 %2722
  %v2725 = vmul.f32 %v2720, %v2723
  %2726 = vrot.lane.b32.xlu0 %v2664, 16
  %v2727 = vpop.permute.xlu0 %2726
  %v2729 = vmul.f32 %v2708, %v2727
  %v2730 = vadd.f32 %v2725, %v2729
  %2732 = vrot.lane.b32.xlu0 %v2730, 112
  %v2733 = vpop.permute.xlu0 %2732
  %v2734 = vsel %vm125, %v2733, 0
  %2736 = vmatpush.msra.mxu0 0.0
  %2737 = vmatpush.msra.mxu0 0.0
  %2738 = vmatpush.msra.mxu0 0.0
  %2739 = vmatpush.msra.mxu0 0.0
  %2740 = vmatpush.msra.mxu0 0.0
  %2741 = vmatpush.msra.mxu0 0.0
  %2742 = vmatpush.msra.mxu0 0.0
  %2743 = vmatpush.msra.mxu0 0.0
  %2744 = vmatpush.msra.mxu0 0.0
  %2745 = vmatpush.msra.mxu0 0.0
  %2746 = vmatpush.msra.mxu0 0.0
  %2747 = vmatpush.msra.mxu0 0.0
  %2748 = vmatpush.msra.mxu0 0.0
  %2749 = vmatpush.msra.mxu0 0.0
  %2750 = vmatpush.msra.mxu0 %v2662
  %2751 = vmatpush.msra.mxu0 %v2661
  %2752 = vmatmul.f32.gmra.mxu0 %v2734
  %v2753 = vpop.f32.mrf.mxu0
  %v2754 = vadd.f32 %v2665, %v2753
  %2755 = vdwg.mxu0
  %v2757 = vrot.slane %v2754, 6
  %v2759 = vadd.f32 %v2660, %v2757
  %v2760 = vxor.u32 %v2759, 2147483648
  %v2761 = vmul.f32 %v2760, 1.442695
  %v2762 = vpow.pop %v2761
  %v2763 = vadd.f32 %v2762, 1.0
  %v2764 = vrcp.pop %v2763
  %v2765 = vmul.f32 %v2763, %v2764
  %v2766 = vsub.f32 1.0, %v2765
  %v2767 = vmul.f32 %v2764, %v2766
  %v2768 = vadd.f32 %v2764, %v2767
  %vm2769 = vweird.f32 %v2763
  %vm2770 = vweird.f32 %v2764
  %vm2771 = vmor %vm2769, %vm2770
  %v2772 = vsel %vm2771, %v2764, %v2768
  %v2773 = vand.u32 2147483647, %v2763
  %vm2774 = vcmp.eq.f32.partialorder %v2773, 8.507059e+37
  %v2775 = vand.u32 %v2763, 2147483648
  %v2776 = vor.u32 1.1754944e-38, %v2775
  %v2777 = vsel %vm2774, %v2776, %v2772
  %v2778 = vmul.f32 1.0, %v2777
  %2779 = vrot.lane.b32.xlu0 %v2757, 96
  %v2780 = vpop.permute.xlu0 %2779
  %v2782 = vmul.f32 %v2778, %v2780
  %2784 = vrot.lane.b32.xlu0 %v2782, 32
  %v2785 = vpop.permute.xlu0 %2784
  %v2787 = vadd.f32 %v2660, %v2785
  %v2788 = vtanh.pop %v2787
  %v2789 = vsub.f32 1.0, %v2778
  %2791 = vrot.lane.b32.xlu0 %v2788, 112
  %v2792 = vpop.permute.xlu0 %2791
  %v2794 = vmul.f32 %v2789, %v2792
  %v2795 = vrot.slane %v2730, 6
  %v2797 = vmul.f32 %v2778, %v2795
  %v2798 = vadd.f32 %v2794, %v2797
  %v2800 = vrot.slane %v2798, 2
  %2801 = vrot.lane.b32.xlu0 %v2800, 112
  %v2802 = vpop.permute.xlu0 %2801
  %v2803 = vsel %vm125, %v2802, 0
  %2805 = vmatpush.msra.mxu0 0.0
  %2806 = vmatpush.msra.mxu0 0.0
  %2807 = vmatpush.msra.mxu0 0.0
  %2808 = vmatpush.msra.mxu0 0.0
  %2809 = vmatpush.msra.mxu0 0.0
  %2810 = vmatpush.msra.mxu0 0.0
  %2811 = vmatpush.msra.mxu0 0.0
  %2812 = vmatpush.msra.mxu0 0.0
  %2813 = vmatpush.msra.mxu0 0.0
  %2814 = vmatpush.msra.mxu0 0.0
  %2815 = vmatpush.msra.mxu0 0.0
  %2816 = vmatpush.msra.mxu0 0.0
  %2817 = vmatpush.msra.mxu0 0.0
  %2818 = vmatpush.msra.mxu0 0.0
  %2819 = vmatpush.msra.mxu0 %v2662
  %2820 = vmatpush.msra.mxu0 %v2661
  %2821 = vmatmul.f32.gmra.mxu0 %v2803
  %v2822 = vpop.f32.mrf.mxu0
  %v2823 = vadd.f32 %v2665, %v2822
  %2824 = vdwg.mxu0
  %v2826 = vrot.slane %v2823, 4
  %v2828 = vadd.f32 %v2660, %v2826
  %v2829 = vxor.u32 %v2828, 2147483648
  %v2830 = vmul.f32 %v2829, 1.442695
  %v2831 = vpow.pop %v2830
  %v2832 = vadd.f32 %v2831, 1.0
  %v2833 = vrcp.pop %v2832
  %v2834 = vmul.f32 %v2832, %v2833
  %v2835 = vsub.f32 1.0, %v2834
  %v2836 = vmul.f32 %v2833, %v2835
  %v2837 = vadd.f32 %v2833, %v2836
  %vm2838 = vweird.f32 %v2832
  %vm2839 = vweird.f32 %v2833
  %vm2840 = vmor %vm2838, %vm2839
  %v2841 = vsel %vm2840, %v2833, %v2837
  %v2842 = vand.u32 2147483647, %v2832
  %vm2843 = vcmp.eq.f32.partialorder %v2842, 8.507059e+37
  %v2844 = vand.u32 %v2832, 2147483648
  %v2845 = vor.u32 1.1754944e-38, %v2844
  %v2846 = vsel %vm2843, %v2845, %v2841
  %v2847 = vmul.f32 1.0, %v2846
  %2848 = vrot.lane.b32.xlu0 %v2826, 96
  %v2849 = vpop.permute.xlu0 %2848
  %v2851 = vmul.f32 %v2847, %v2849
  %2853 = vrot.lane.b32.xlu0 %v2851, 32
  %v2854 = vpop.permute.xlu0 %2853
  %v2856 = vadd.f32 %v2660, %v2854
  %v2857 = vtanh.pop %v2856
  %v2858 = vsub.f32 1.0, %v2847
  %2860 = vrot.lane.b32.xlu0 %v2857, 112
  %v2861 = vpop.permute.xlu0 %2860
  %v2863 = vmul.f32 %v2858, %v2861
  %v2864 = vrot.slane %v2798, 6
  %v2866 = vmul.f32 %v2847, %v2864
  %v2867 = vadd.f32 %v2863, %v2866
  %v2870 = vrot.slane %v2867, 4
  %2871 = vrot.lane.b32.xlu0 %v2870, 112
  %v2872 = vpop.permute.xlu0 %2871
  %v2874 = vsel %vm798, %v2733, %v2872
  %2875 = vrot.lane.b32.xlu0 %v2798, 112
  %v2876 = vpop.permute.xlu0 %2875
  %2878 = vrot.lane.b32.xlu0 %v2867, 112
  %v2879 = vpop.permute.xlu0 %2878
  %v2881 = vrot.slane %v2730, 4
  %2882 = vrot.lane.b32.xlu0 %v2881, 112
  %v2883 = vpop.permute.xlu0 %2882
  %v2885 = vsel %vm798, %v2879, %v2883
  %v2886 = vsel %vm64, %v2874, %v2876
  %v2887 = vsel %vm850, %v2886, %v2885
  %v2888 = vld [vmem:[%s0 + $0x158] sm:$0xff]
  %v2889 = vld [vmem:[%s0 + $0x160] sm:$0xff]
  %v2890 = vld [vmem:[%s0 + $0x168] sm:$0x1]
  %v2891 = vperm.slane %v2890, 0
  %v2893 = vsel %vm125, %v2887, 0
  %2895 = vmatpush.msra.mxu0 0.0
  %2896 = vmatpush.msra.mxu0 0.0
  %2897 = vmatpush.msra.mxu0 0.0
  %2898 = vmatpush.msra.mxu0 0.0
  %2899 = vmatpush.msra.mxu0 0.0
  %2900 = vmatpush.msra.mxu0 0.0
  %2901 = vmatpush.msra.mxu0 0.0
  %2902 = vmatpush.msra.mxu0 0.0
  %2903 = vmatpush.msra.mxu0 0.0
  %2904 = vmatpush.msra.mxu0 0.0
  %2905 = vmatpush.msra.mxu0 0.0
  %2906 = vmatpush.msra.mxu0 0.0
  %2907 = vmatpush.msra.mxu0 0.0
  %2908 = vmatpush.msra.mxu0 0.0
  %2909 = vmatpush.msra.mxu0 %v2889
  %2910 = vmatpush.msra.mxu0 %v2888
  %2911 = vmatmul.f32.gmra.mxu0 %v2893
  %v2912 = vpop.f32.mrf.mxu0
  %v2913 = vadd.f32 %v2891, %v2912
  %2914 = vdwg.mxu0
  %v2915 = vtanh.pop %v2913
  %v2916 = vld [vmem:[%s0 + $0x170] sm:$0x1]
  %v2917 = vperm.slane %v2916, 0
  %v2918 = vmul.f32 %v2915, %v2917
  %vm2919 = vcmask 128000
  %v2920 = vsel %vm2919, %v2918, 0.0
  %2921 = vadd.xlane.f32.xlu0 %v2920
  %v2922 = vpop.xlane.xlu0 %2921
  %v2924 = vrot.slane %v2922, 2
  %v2926 = vrot.slane %v2922, 4
  %v2928 = vsel %vm912, %v2922, %v2924
  %v2929 = vsel %vm914, %v2928, %v2926
  %vm2930 = vcmask 17408
  %v2931 = vsel %vm2930, %v2929, -inf
  %2932 = vmax.xlane.f32.xlu0 %v2931
  %v2933 = vpop.xlane.xlu0 %2932
  %v2934 = vsub.f32 %v2929, %v2933
  %v2935 = vmul.f32 %v2934, 1.442695
  %v2936 = vpow.pop %v2935
  %v2937 = vsel %vm2930, %v2936, 0.0
  %2938 = vadd.xlane.f32.xlu0 %v2937
  %v2939 = vpop.xlane.xlu0 %2938
  %v2940 = vrcp.pop %v2939
  %v2941 = vmul.f32 %v2936, %v2940
  %2943 = vset.pattern.permute.xlu0 0
  %2944 = vperm.xlu0 %2943, %v2941
  %v2945 = vpop.permute.xlu0 %2944
  %v2947 = vmul.f32 %v2874, %v2945
  %2948 = vset.pattern.permute.xlu0 1
  %2949 = vperm.xlu0 %2948, %v2941
  %v2950 = vpop.permute.xlu0 %2949
  %v2951 = vrot.slane %v2950, 6
  %v2953 = vmul.f32 %v2876, %v2951
  %v2955 = vrot.slane %v2953, 2
  %v2957 = vadd.f32 %v2947, %v2955
  %v2959 = vrot.slane %v2876, 2
  %v2961 = vmax.f32 %v2874, %v2959
  %2962 = vset.pattern.permute.xlu0 2
  %2963 = vperm.xlu0 %2962, %v2941
  %v2964 = vpop.permute.xlu0 %2963
  %v2965 = vrot.slane %v2964, 4
  %v2967 = vmul.f32 %v2885, %v2965
  %v2969 = vrot.slane %v2967, 4
  %v2971 = vadd.f32 %v2957, %v2969
  %v2973 = vrot.slane %v2885, 4
  %v2975 = vmax.f32 %v2961, %v2973
  %2977 = vrot.lane.b32.xlu0 %v2971, 16
  %v2978 = vpop.permute.xlu0 %2977
  %v2980 = vsel %vm125, %v2975, %v2978
  %v2981 = vld [vmem:[%s0 + $0x190] sm:$0xff]
  %v2982 = vld [vmem:[%s0 + $0x198] sm:$0xff]
  %v2983 = vld [vmem:[%s0 + $0x1a0] sm:$0xff]
  %v2984 = vld [vmem:[%s0 + $0x1a8] sm:$0xff]
  %v2985 = vld [vmem:[%s0 + $0x1b0] sm:$0x1]
  %v2986 = vperm.slane %v2985, 0
  %v2988 = vsel %vm2611, %v2980, 0
  %2990 = vmatpush.msra.mxu0 0.0
  %2991 = vmatpush.msra.mxu0 0.0
  %2992 = vmatpush.msra.mxu0 0.0
  %2993 = vmatpush.msra.mxu0 0.0
  %2994 = vmatpush.msra.mxu0 0.0
  %2995 = vmatpush.msra.mxu0 0.0
  %2996 = vmatpush.msra.mxu0 0.0
  %2997 = vmatpush.msra.mxu0 0.0
  %2998 = vmatpush.msra.mxu0 0.0
  %2999 = vmatpush.msra.mxu0 0.0
  %3000 = vmatpush.msra.mxu0 0.0
  %3001 = vmatpush.msra.mxu0 0.0
  %3002 = vmatpush.msra.mxu0 %v2984
  %3003 = vmatpush.msra.mxu0 %v2983
  %3004 = vmatpush.msra.mxu0 %v2982
  %3005 = vmatpush.msra.mxu0 %v2981
  %3006 = vmatmul.f32.gmra.mxu0 %v2988
  %v3007 = vpop.f32.mrf.mxu0
  %v3008 = vadd.f32 %v2986, %v3007
  %3009 = vdwg.mxu0
  %v3010 = vld [vmem:[%s0 + $0x178] sm:$0xff]
  %v3011 = vld [vmem:[%s0 + $0x180] sm:$0xff]
  %v3012 = vld [vmem:[%s0 + $0x188] sm:$0x1]
  %v3013 = vperm.slane %v3012, 0
  %3014 = vmatpush.msra.mxu0 0.0
  %3015 = vmatpush.msra.mxu0 0.0
  %3016 = vmatpush.msra.mxu0 0.0
  %3017 = vmatpush.msra.mxu0 0.0
  %3018 = vmatpush.msra.mxu0 0.0
  %3019 = vmatpush.msra.mxu0 0.0
  %3020 = vmatpush.msra.mxu0 0.0
  %3021 = vmatpush.msra.mxu0 0.0
  %3022 = vmatpush.msra.mxu0 0.0
  %3023 = vmatpush.msra.mxu0 0.0
  %3024 = vmatpush.msra.mxu0 0.0
  %3025 = vmatpush.msra.mxu0 0.0
  %3026 = vmatpush.msra.mxu0 0.0
  %3027 = vmatpush.msra.mxu0 0.0
  %3028 = vmatpush.msra.mxu0 %v3011
  %3029 = vmatpush.msra.mxu0 %v3010
  %3030 = vmatmul.f32.gmra.mxu0 %v2893
  %v3031 = vpop.f32.mrf.mxu0
  %v3032 = vadd.f32 %v3013, %v3031
  %3033 = vdwg.mxu0
  %3035 = vrot.lane.b32.xlu0 %v3032, 5
  %v3036 = vpop.permute.xlu0 %3035
  %v3038 = vrot.slane %v3032, 2
  %3039 = vrot.lane.b32.xlu0 %v3038, 13
  %v3040 = vpop.permute.xlu0 %3039
  %v3042 = vrot.slane %v3032, 4
  %3043 = vrot.lane.b32.xlu0 %v3042, 21
  %v3044 = vpop.permute.xlu0 %3043
  %v3046 = vsel %vm920, %v3008, %v3036
  %vm3047 = vcmask 105472
  %v3048 = vsel %vm3047, %v3046, %v3040
  %vm3049 = vcmask 171008
  %v3050 = vsel %vm3049, %v3048, %v3044
  %vm3051 = vcmask 236544
  %v3052 = vsel %vm3051, %v3050, 0.0
  %3053 = vst [vmem:[%s1] sm:$0x3] %v3052
  // Predicated region
  $region6: #{hierarchical_bigru_max_forward.1} parent=0 // pred_check
    _
  $region7: #{hierarchical_bigru_max_forward.1} parent=0 // pred_check_branch
    %3055 = sbr.rel (0) target = $region9
  $region8: #{hierarchical_bigru_max_forward.1} parent=0 // pred_region
    _
  $region9: #{hierarchical_bigru_max_forward.1} parent=0 // pred_fallthru
    _
  // Predicated region
  $region10: #{hierarchical_bigru_max_forward.1} parent=0 // pred_check
    _
  $region11: #{hierarchical_bigru_max_forward.1} parent=0 // pred_check_branch
    %3057 = sbr.rel (0) target = $region13
  $region12: #{hierarchical_bigru_max_forward.1} parent=0 // pred_region
    _
  $region13: #{hierarchical_bigru_max_forward.1} parent=0 // pred_fallthru
    _

</llo_original>
